<compile_context>
chip_gen: v7x
topology: tpu7x:2x2x1
jax: 0.10.0
libtpu: 0.0.40
codegen_flags: <defaults>
</compile_context>

<pallas_src>
import random

import jax
import jax.numpy as jnp
from jax import lax
from jax.experimental import pallas as pl
from jax.experimental.pallas import tpu as pltpu

# ----- small, deterministic hyper-parameters consistent with the module __init__ -----
VOCAB = 32            # input_dim == output_dim == len(vocab)
EMB = 16              # emb_dim
ENC_HID = 8           # enc_hid_dim  (bi-GRU -> 2*ENC_HID features)
DEC_HID = 8           # dec_hid_dim  (decoder hidden state is 2*DEC_HID)
ATTN = DEC_HID
PAD_IDX, UNK_IDX, SOS_IDX, EOS_IDX = 0, 1, 2, 3
VEXT_PAD = 128        # lane-dense padded width for the extended-vocab distribution

VMEM = pltpu.MemorySpace.VMEM
SMEM = pltpu.MemorySpace.SMEM


def _vspec():
    return pl.BlockSpec(memory_space=VMEM)


# ---------------------------------------------------------------------------
# Fused bidirectional-GRU encoder kernel (embedding lookup + whole sequence,
# both directions, fc-tanh head; outputs written in place, no scratch)
# ---------------------------------------------------------------------------
def _bigru_encoder_kernel(ids_ref, emb_ref,
                          wihf_ref, whhf_ref, bihf_ref, bhhf_ref,
                          wihb_ref, whhb_ref, bihb_ref, bhhb_ref,
                          fcw_ref, fcb_ref,
                          enc_ref, hid_ref):
    S, B, _ = ids_ref.shape
    H = whhf_ref.shape[0]
    V = emb_ref.shape[0]

    emb_tab = emb_ref[...]
    tok_iota = lax.broadcasted_iota(jnp.int32, (B, V), 1)
    wf, uf, bif, bhf = wihf_ref[...], whhf_ref[...], bihf_ref[...], bhhf_ref[...]
    wb, ub, bib, bhb = wihb_ref[...], whhb_ref[...], bihb_ref[...], bhhb_ref[...]

    def embed_row(ids_row):                               # [B,1] int32 -> [B,EMB]
        ids_c = jnp.where(ids_row >= V, UNK_IDX, ids_row)   # filter_oov in-kernel
        return jnp.dot((tok_iota == ids_c).astype(jnp.float32), emb_tab,
                       preferred_element_type=jnp.float32)

    def cell(x, h, w, u, bi, bh):
        gi = jnp.dot(x, w, preferred_element_type=jnp.float32) + bi
        gh = jnp.dot(h, u, preferred_element_type=jnp.float32) + bh
        r = jax.nn.sigmoid(gi[:, 0:H] + gh[:, 0:H])
        z = jax.nn.sigmoid(gi[:, H:2 * H] + gh[:, H:2 * H])
        n = jnp.tanh(gi[:, 2 * H:3 * H] + r * gh[:, 2 * H:3 * H])
        return (1.0 - z) * n + z * h

    def body(t, carry):
        hf, hb = carry
        hf = cell(embed_row(ids_ref[t]), hf, wf, uf, bif, bhf)
        hb = cell(embed_row(ids_ref[S - 1 - t]), hb, wb, ub, bib, bhb)
        enc_ref[t, :, 0:H] = hf                           # write in place (fwd half)
        enc_ref[S - 1 - t, :, H:2 * H] = hb               # write in place (bwd half)
        return hf, hb

    h0 = jnp.zeros((B, H), jnp.float32)
    hf, hb = lax.fori_loop(0, S, body, (h0, h0), unroll=True)

    hid_ref[...] = jnp.tanh(
        jnp.dot(hf, fcw_ref[0:H, :], preferred_element_type=jnp.float32)
        + jnp.dot(hb, fcw_ref[H:2 * H, :], preferred_element_type=jnp.float32)
        + fcb_ref[...])


def bi_gru_encode(ids, p, prefix):
    """Fused bi-GRU encoder: int token ids [S,B] -> ([S,B,2H], [B,O])."""
    S, B = ids.shape
    H = ENC_HID
    O = p[prefix + '_fc_w'].shape[1]
    ids3 = ids.astype(jnp.int32)[:, :, None]              # [S,B,1]
    return pl.pallas_call(
        _bigru_encoder_kernel,
        out_shape=(jax.ShapeDtypeStruct((S, B, 2 * H), jnp.float32),
                   jax.ShapeDtypeStruct((B, O), jnp.float32)),
        in_specs=[_vspec()] * 12,
        out_specs=(_vspec(), _vspec()),
    )(ids3, p['emb'],
      p[prefix + '_wih_f'], p[prefix + '_whh_f'], p[prefix + '_bih_f'], p[prefix + '_bhh_f'],
      p[prefix + '_wih_b'], p[prefix + '_whh_b'], p[prefix + '_bih_b'], p[prefix + '_bhh_b'],
      p[prefix + '_fc_w'], p[prefix + '_fc_b'])


# ---------------------------------------------------------------------------
# Fused pointer-generator decoder loop kernel.  BOTH reconstruction loops run in this
# single call, batch-stacked (rows [0:B) = src-recon, rows [B:2B) = tfidf-recon).
# ---------------------------------------------------------------------------
def _decoder_loop_kernel(tf_ref, issrc_ref, start_ref, teach_ref, h0_ref, enc_ref,
                         mask_ref, ids_ref, emb_ref,
                         wa_h_ref, wa_e_ref, ba_ref, va_ref,
                         wih_e_ref, wih_c_ref, whh_ref, bih_ref, bhh_ref,
                         wo_h_ref, wo_c_ref, wo_e_ref, bo_ref,
                         out_ref, pred_ref, hfin_ref,
                         encproj_sc, onehot_sc):
    T, B, VP = out_ref.shape
    S = enc_ref.shape[1]
    D2 = h0_ref.shape[1]          # 2 * DEC_HID
    V = emb_ref.shape[0]          # VOCAB

    # ---------- step-invariant precompute, hoisted out of the decode loop ----------
    wa_e = wa_e_ref[...]
    for b in range(B):                                    # static, tiny
        encproj_sc[b] = jnp.dot(enc_ref[b], wa_e, preferred_element_type=jnp.float32)
    onehot_sc[...] = (lax.broadcasted_iota(jnp.int32, (B, S, VP), 2)
                      == ids_ref[...][:, :, None]).astype(jnp.float32)

    emb_tab = emb_ref[...]
    wa_h, ba = wa_h_ref[...], ba_ref[...]
    va3 = va_ref[...][None]                               # [1,1,A]
    wih_e, wih_c = wih_e_ref[...], wih_c_ref[...]
    whh, bih, bhh = whh_ref[...], bih_ref[...], bhh_ref[...]
    wo_h, wo_c, wo_e, bo = wo_h_ref[...], wo_c_ref[...], wo_e_ref[...], bo_ref[...]
    mask = mask_ref[...]                                  # [B, S]
    is_src = issrc_ref[...] > 0                           # [B, 1] bool: problem select
    tok_iota = lax.broadcasted_iota(jnp.int32, (B, V), 1)
    ext_iota = lax.broadcasted_iota(jnp.int32, (B, VP), 1)

    out_ref[0] = jnp.zeros((B, VP), jnp.float32)
    pred_ref[0] = jnp.zeros((B, 1), jnp.int32)

    def step(t, carry):
        h, tok = carry                                    # [B,D2] f32, [B,1] i32
        # embedding lookup (OOV -> <unk>) as a one-hot matmul on the MXU
        tok_c = jnp.where(tok >= V, UNK_IDX, tok)
        emb = jnp.dot((tok_iota == tok_c).astype(jnp.float32), emb_tab,
                      preferred_element_type=jnp.float32)          # [B, EMB]

        # ---- additive (Bahdanau) attention; batched over all source positions ----
        hp = jnp.dot(h, wa_h, preferred_element_type=jnp.float32) + ba    # [B, A]
        tanh3 = jnp.tanh(encproj_sc[...] + hp[:, None, :])                # [B, S, A]
        scores = jnp.sum(tanh3 * va3, axis=-1)                            # [B, S]
        scores = jnp.where(mask > 0.5, scores, -1e9)
        mx = jnp.max(scores, axis=-1, keepdims=True)
        pexp = jnp.exp(scores - mx)
        attn = pexp / jnp.sum(pexp, axis=-1, keepdims=True)               # [B, S]

        # context on the MXU: [B,1,S] @ [B,S,2E] -> [B,2E]
        context = jnp.einsum('bqs,bse->bqe', attn[:, None, :], enc_ref[...],
                             preferred_element_type=jnp.float32)[:, 0, :]

        # ---- GRU step (summed partial matmuls: no per-step lane concats) ----
        gi = (jnp.dot(emb, wih_e, preferred_element_type=jnp.float32)
              + jnp.dot(context, wih_c, preferred_element_type=jnp.float32) + bih)
        gh = jnp.dot(h, whh, preferred_element_type=jnp.float32) + bhh
        r = jax.nn.sigmoid(gi[:, 0:D2] + gh[:, 0:D2])
        z = jax.nn.sigmoid(gi[:, D2:2 * D2] + gh[:, D2:2 * D2])
        n = jnp.tanh(gi[:, 2 * D2:3 * D2] + r * gh[:, 2 * D2:3 * D2])
        h_new = (1.0 - z) * n + z * h

        # ---- vocab logits + both p_gen heads in one projection ([.., V+2]) ----
        proj = (jnp.dot(h_new, wo_h, preferred_element_type=jnp.float32)
                + jnp.dot(context, wo_c, preferred_element_type=jnp.float32)
                + jnp.dot(emb, wo_e, preferred_element_type=jnp.float32) + bo)
        logits = proj[:, 0:V]
        lm = jnp.max(logits, axis=-1, keepdims=True)
        le = jnp.exp(logits - lm)
        vocab_dist = le / jnp.sum(le, axis=-1, keepdims=True)             # [B, V]
        p_gen = jax.nn.sigmoid(
            jnp.where(is_src, proj[:, V:V + 1], proj[:, V + 1:V + 2]))    # [B, 1]

        # ---- pointer-generator mixing + scatter_add over the extended vocab ----
        vocab_ext = jnp.concatenate(
            [p_gen * vocab_dist, jnp.zeros((B, VP - V), jnp.float32)], axis=-1)
        w_attn = (1.0 - p_gen) * attn                                     # [B, S]
        scattered = jnp.einsum('bqs,bsv->bqv', w_attn[:, None, :], onehot_sc[...],
                               preferred_element_type=jnp.float32)[:, 0, :]
        final = vocab_ext + scattered                                     # [B, VP]

        # in-kernel argmax (first maximal index, matching torch/jnp argmax)
        fm = jnp.max(final, axis=-1, keepdims=True)
        top = jnp.min(jnp.where(final >= fm, ext_iota, VP),
                      axis=-1, keepdims=True).astype(jnp.int32)           # [B, 1]

        out_ref[t] = final
        pred_ref[t] = top

        # per-problem teacher-forcing flag from SMEM (scalar reads)
        tf_vec = jnp.where(is_src, tf_ref[t, 0], tf_ref[t, 1])            # [B, 1] i32
        next_tok = jnp.where(tf_vec > 0, teach_ref[t], top)
        return h_new, next_tok

    h_last, _ = lax.fori_loop(1, T, step, (h0_ref[...], start_ref[...]), unroll=True)
    hfin_ref[...] = h_last


def run_merged_decoder(p, tf_m, is_src, start_m, teach_m, h0_m, enc_m, mask_m, ids_m):
    T, Bt, _ = teach_m.shape
    S = enc_m.shape[1]
    outs, preds, _ = pl.pallas_call(
        _decoder_loop_kernel,
        out_shape=(jax.ShapeDtypeStruct((T, Bt, VEXT_PAD), jnp.float32),
                   jax.ShapeDtypeStruct((T, Bt, 1), jnp.int32),
                   jax.ShapeDtypeStruct((Bt, 2 * DEC_HID), jnp.float32)),
        in_specs=[pl.BlockSpec(memory_space=SMEM)] + [_vspec()] * 21,
        out_specs=(_vspec(), _vspec(), _vspec()),
        scratch_shapes=[pltpu.VMEM((Bt, S, ATTN), jnp.float32),
                        pltpu.VMEM((Bt, S, VEXT_PAD), jnp.float32)],
    )(tf_m, is_src, start_m, teach_m, h0_m, enc_m, mask_m, ids_m,
      p['emb'], p['wa_h'], p['wa_e'], p['ba'], p['va'],
      p['dec_wih_e'], p['dec_wih_c'], p['dec_whh'], p['dec_bih'], p['dec_bhh'],
      p['wo_h_all'], p['wo_c_all'], p['wo_e_all'], p['bo_all'])
    return outs, preds


# ---------------------------------------------------------------------------
# Parameter init and full forward pass (plain-JAX glue only does layout plumbing)
# ---------------------------------------------------------------------------
def init_params(key):
    keys = list(jax.random.split(key, 48))
    it = iter(keys)

    def rnd(shape, scale=0.1):
        return (jax.random.normal(next(it), shape) * scale).astype(jnp.float32)

    p = {}
    emb = rnd((VOCAB, EMB))
    p['emb'] = emb.at[PAD_IDX].set(0.0)                   # padding_idx row is zero

    def gru_params(prefix, in_dim, hid):
        for d in ('f', 'b'):
            p[f'{prefix}_wih_{d}'] = rnd((in_dim, 3 * hid))
            p[f'{prefix}_whh_{d}'] = rnd((hid, 3 * hid))
            p[f'{prefix}_bih_{d}'] = rnd((1, 3 * hid))
            p[f'{prefix}_bhh_{d}'] = rnd((1, 3 * hid))

    # DualEncoder: shared bi-GRU applied to src and prev, fc -> DEC_HID each half
    gru_params('dual', EMB, ENC_HID)
    p['dual_fc_w'] = rnd((2 * ENC_HID, DEC_HID))
    p['dual_fc_b'] = rnd((1, DEC_HID))
    # Encoder (tfidf / summary re-encoding): bi-GRU, fc -> 2*DEC_HID
    gru_params('enc', EMB, ENC_HID)
    p['enc_fc_w'] = rnd((2 * ENC_HID, 2 * DEC_HID))
    p['enc_fc_b'] = rnd((1, 2 * DEC_HID))
    # Attention
    p['wa_h'] = rnd((2 * DEC_HID, ATTN))
    p['wa_e'] = rnd((2 * ENC_HID, ATTN))
    p['ba'] = rnd((1, ATTN))
    p['va'] = rnd((1, ATTN))
    # Decoder GRU (input = [emb ; context] -> summed partial matmuls)
    p['dec_wih_e'] = rnd((EMB, 6 * DEC_HID))
    p['dec_wih_c'] = rnd((2 * ENC_HID, 6 * DEC_HID))
    p['dec_whh'] = rnd((2 * DEC_HID, 6 * DEC_HID))
    p['dec_bih'] = rnd((1, 6 * DEC_HID))
    p['dec_bhh'] = rnd((1, 6 * DEC_HID))
    # Output projection (split over [h_new ; context ; emb])
    p['wo_h'] = rnd((2 * DEC_HID, VOCAB))
    p['wo_c'] = rnd((2 * ENC_HID, VOCAB))
    p['wo_e'] = rnd((EMB, VOCAB))
    p['bo'] = rnd((1, VOCAB))
    # pointer-generator heads (src loop): w_context, w_hidden, w_input(+bias)
    p['wc'] = rnd((2 * ENC_HID, 1)); p['wh'] = rnd((2 * DEC_HID, 1))
    p['wi'] = rnd((EMB, 1)); p['bi'] = rnd((1, 1))
    # pointer-generator heads (tfidf loop): w_wordtfidf, w_hiddentfidf, w_input_idf(+bias)
    p['wct'] = rnd((2 * ENC_HID, 1)); p['wht'] = rnd((2 * DEC_HID, 1))
    p['wit'] = rnd((EMB, 1)); p['bit'] = rnd((1, 1))

    # vocab-logit + BOTH p_gen heads share the same per-step projection:
    # columns [0:V) = vocab logits, col V = src-loop p_gen logit, col V+1 = tfidf one.
    p['wo_h_all'] = jnp.concatenate([p['wo_h'], p['wh'], p['wht']], axis=1)  # [16, V+2]
    p['wo_c_all'] = jnp.concatenate([p['wo_c'], p['wc'], p['wct']], axis=1)
    p['wo_e_all'] = jnp.concatenate([p['wo_e'], p['wi'], p['wit']], axis=1)
    p['bo_all'] = jnp.concatenate([p['bo'], p['bi'], p['bit']], axis=1)
    return p


def ae_forward(p, src, src_len, prev_gentext, tfidf_tensor, tfidf_tensor_ext,
               src_ext, max_oov_len, desired_length, teacher_forcing_ratio, py_rng):
    B = src.shape[1]
    trg = src
    T1 = int(src_len)                 # trg_len_summary (fresh module)
    T2 = int(desired_length)
    S_src, S_prev = src.shape[0], prev_gentext.shape[0]
    vext = VOCAB + max_oov_len
    assert vext <= VEXT_PAD, "extended vocab must fit in the lane-dense 128 padding"

    # ----- DualEncoder (shared bi-GRU): batch-merge src & prev into ONE launch -----
    if S_src == S_prev:
        ids_dual = jnp.concatenate([src, prev_gentext], axis=1).astype(jnp.int32)
        enc_dual, hid_dual = bi_gru_encode(ids_dual, p, 'dual')       # [S,2B,2H],[2B,DH]
        enc_src_out, enc_prev_out = enc_dual[:, :B], enc_dual[:, B:]
        h_src, h_prev = hid_dual[:B], hid_dual[B:]
    else:                              # unequal lengths: fall back to two launches
        enc_src_out, h_src = bi_gru_encode(src.astype(jnp.int32), p, 'dual')
        enc_prev_out, h_prev = bi_gru_encode(prev_gentext.astype(jnp.int32), p, 'dual')
    stacked_enc = jnp.concatenate([enc_src_out, enc_prev_out], axis=0)    # [2S, B, 2H]
    stacked_hidden = jnp.concatenate([h_src, h_prev], axis=-1)            # [B, 2*DEC_HID]

    # ----- tfidf Encoder -----
    tfidf_enc, tfidf_hidden = bi_gru_encode(tfidf_tensor.astype(jnp.int32), p, 'enc')

    # ----- build the merged decoder problem (rows 0..B-1 src-recon, B..2B-1 tfidf) -----
    S1, S2 = stacked_enc.shape[0], T2
    S_max, T_max = max(S1, S2), max(T1, T2)

    cat_tokens = jnp.concatenate([src, prev_gentext], axis=0)             # [S1, B]
    mask1 = (cat_tokens != PAD_IDX).T.astype(jnp.float32)                 # [B, S1]
    mask2 = (tfidf_tensor != PAD_IDX).T.astype(jnp.float32)               # [B, S2]
    ids1 = jnp.concatenate([src_ext, prev_gentext], axis=0).T.astype(jnp.int32)
    ids2 = tfidf_tensor_ext.T.astype(jnp.int32)

    def pad_s(x, cur_s):
        if cur_s == S_max:
            return x
        pads = [(0, 0)] * x.ndim
        pads[1] = (0, S_max - cur_s)
        return jnp.pad(x, pads)

    mask_m = jnp.concatenate([pad_s(mask1, S1), pad_s(mask2, S2)], axis=0)   # [2B,S_max]
    ids_m = jnp.concatenate([pad_s(ids1, S1), pad_s(ids2, S2)], axis=0)
    enc1_b = pad_s(jnp.transpose(stacked_enc, (1, 0, 2)), S1)                # [B,S_max,2H]
    enc2_b = pad_s(jnp.transpose(tfidf_enc, (1, 0, 2)), S2)
    enc_m = jnp.concatenate([enc1_b, enc2_b], axis=0)                        # [2B,S_max,2H]
    h0_m = jnp.concatenate([stacked_hidden, tfidf_hidden], axis=0)           # [2B, 2*DH]
    start_m = jnp.concatenate([trg[0], tfidf_tensor[0]], axis=0).astype(jnp.int32)[:, None]
    is_src = jnp.concatenate([jnp.ones((B, 1), jnp.int32),
                              jnp.zeros((B, 1), jnp.int32)], axis=0)

    # teacher-forcing flags: keep exact RNG draw count/order of the reference
    tf1 = [0]
    for _ in range(1, T1):
        r = py_rng.random()
        tf1.append(1 if (T1 < trg.shape[0] and r < teacher_forcing_ratio) else 0)
    tf2 = [0]
    for _ in range(1, T2):
        tf2.append(1 if py_rng.random() < teacher_forcing_ratio else 0)
    tf1 += [0] * (T_max - T1)
    tf2 += [0] * (T_max - T2)
    tf_m = jnp.asarray(list(zip(tf1, tf2)), jnp.int32)                       # [T_max, 2]

    n1 = min(T_max, trg.shape[0])
    teach1 = jnp.zeros((T_max, B), jnp.int32).at[:n1].set(trg[:n1].astype(jnp.int32))
    teach2 = jnp.zeros((T_max, B), jnp.int32).at[:T2].set(tfidf_tensor.astype(jnp.int32))
    teach_m = jnp.concatenate([teach1, teach2], axis=1)[:, :, None]          # [T_max,2B,1]

    # ----- ONE fused decoder launch for both reconstruction loops -----
    outs, preds = run_merged_decoder(p, tf_m, is_src, start_m, teach_m, h0_m,
                                     enc_m, mask_m, ids_m)
    outputs = outs[:T1, :B, :vext]                 # input-text reconstruction
    output_sum_recons = outs[:T2, B:, :vext]       # tfidf-constraint reconstruction
    preds_idf = preds[:T2, B:, 0]                  # [T2, B] int32 (row 0 is zeros)

    # ----- re-encode the generated constraint; reuse tfidf_hidden for hidden_src -----
    pad_rows = max(0, src_ext.shape[0] - preds_idf.shape[0])
    outputs_pred = jnp.pad(preds_idf, ((0, pad_rows), (0, 0)),
                           constant_values=EOS_IDX).astype(jnp.int32)
    _, hidden_sum = bi_gru_encode(outputs_pred, p, 'enc')
    hidden_src = tfidf_hidden                      # identical to the reference recompute
    return outputs, output_sum_recons, hidden_sum, hidden_src


if __name__ == "__main__":
    key = jax.random.PRNGKey(0)
    pkey, k1, k2, k3, k4, k5 = jax.random.split(key, 6)
    params = init_params(pkey)

    B, S_SRC, S_PREV, DESIRED_LEN, MAX_OOV = 2, 8, 8, 6, 4
    src = jax.random.randint(k1, (S_SRC, B), 4, VOCAB, dtype=jnp.int32)
    prev_gentext = jax.random.randint(k2, (S_PREV, B), 4, VOCAB + MAX_OOV, dtype=jnp.int32)
    tfidf_tensor = jax.random.randint(k3, (DESIRED_LEN, B), 4, VOCAB, dtype=jnp.int32)
    tfidf_tensor_ext = jax.random.randint(k4, (DESIRED_LEN, B), 4, VOCAB + MAX_OOV,
                                          dtype=jnp.int32)
    src_ext = jax.random.randint(k5, (S_SRC, B), 4, VOCAB + MAX_OOV, dtype=jnp.int32)
    src_len = S_SRC

    py_rng = random.Random(0)          # deterministic stand-in for `random.random()`
    outs = ae_forward(params, src, src_len, prev_gentext, tfidf_tensor,
                      tfidf_tensor_ext, src_ext, MAX_OOV, DESIRED_LEN,
                      teacher_forcing_ratio=0.0, py_rng=py_rng)
    jax.block_until_ready(outs)
    print("KERNEL_OK")
</pallas_src>

<mosaic_0001>
module attributes {stable_mosaic.version = 11 : i64} {
  func.func @_bigru_encoder_kernel(%arg0: memref<8x4x1xi32, #tpu.memory_space<vmem>>, %arg1: memref<32x16xf32, #tpu.memory_space<vmem>>, %arg2: memref<16x24xf32, #tpu.memory_space<vmem>>, %arg3: memref<8x24xf32, #tpu.memory_space<vmem>>, %arg4: memref<1x24xf32, #tpu.memory_space<vmem>>, %arg5: memref<1x24xf32, #tpu.memory_space<vmem>>, %arg6: memref<16x24xf32, #tpu.memory_space<vmem>>, %arg7: memref<8x24xf32, #tpu.memory_space<vmem>>, %arg8: memref<1x24xf32, #tpu.memory_space<vmem>>, %arg9: memref<1x24xf32, #tpu.memory_space<vmem>>, %arg10: memref<16x8xf32, #tpu.memory_space<vmem>>, %arg11: memref<1x8xf32, #tpu.memory_space<vmem>>, %arg12: memref<8x4x16xf32, #tpu.memory_space<vmem>>, %arg13: memref<4x8xf32, #tpu.memory_space<vmem>>) attributes {dimension_semantics = [], scalar_prefetch = 0 : i64, scratch_operands = 0 : i64, tpu.core_type = #tpu.core_type<tc>} {
    %c0 = arith.constant 0 : index
    %c0_0 = arith.constant 0 : index
    %0 = vector.load %arg1[%c0, %c0_0] : memref<32x16xf32, #tpu.memory_space<vmem>>, vector<32x16xf32>
    %1 = tpu.iota {dimensions = array<i32: 1>} : vector<4x32xi32>
    %c0_1 = arith.constant 0 : index
    %c0_2 = arith.constant 0 : index
    %2 = vector.load %arg2[%c0_1, %c0_2] : memref<16x24xf32, #tpu.memory_space<vmem>>, vector<16x24xf32>
    %c0_3 = arith.constant 0 : index
    %c0_4 = arith.constant 0 : index
    %3 = vector.load %arg3[%c0_3, %c0_4] : memref<8x24xf32, #tpu.memory_space<vmem>>, vector<8x24xf32>
    %c0_5 = arith.constant 0 : index
    %c0_6 = arith.constant 0 : index
    %4 = vector.load %arg4[%c0_5, %c0_6] : memref<1x24xf32, #tpu.memory_space<vmem>>, vector<1x24xf32>
    %c0_7 = arith.constant 0 : index
    %c0_8 = arith.constant 0 : index
    %5 = vector.load %arg5[%c0_7, %c0_8] : memref<1x24xf32, #tpu.memory_space<vmem>>, vector<1x24xf32>
    %c0_9 = arith.constant 0 : index
    %c0_10 = arith.constant 0 : index
    %6 = vector.load %arg6[%c0_9, %c0_10] : memref<16x24xf32, #tpu.memory_space<vmem>>, vector<16x24xf32>
    %c0_11 = arith.constant 0 : index
    %c0_12 = arith.constant 0 : index
    %7 = vector.load %arg7[%c0_11, %c0_12] : memref<8x24xf32, #tpu.memory_space<vmem>>, vector<8x24xf32>
    %c0_13 = arith.constant 0 : index
    %c0_14 = arith.constant 0 : index
    %8 = vector.load %arg8[%c0_13, %c0_14] : memref<1x24xf32, #tpu.memory_space<vmem>>, vector<1x24xf32>
    %c0_15 = arith.constant 0 : index
    %c0_16 = arith.constant 0 : index
    %9 = vector.load %arg9[%c0_15, %c0_16] : memref<1x24xf32, #tpu.memory_space<vmem>>, vector<1x24xf32>
    %cst = arith.constant 0.000000e+00 : f32
    %10 = vector.broadcast %cst : f32 to vector<4x8xf32>
    %c0_i32 = arith.constant 0 : i32
    %11 = arith.index_cast %c0_i32 : i32 to index
    %c0_17 = arith.constant 0 : index
    %c0_18 = arith.constant 0 : index
    %12 = vector.load %arg0[%11, %c0_17, %c0_18] : memref<8x4x1xi32, #tpu.memory_space<vmem>>, vector<1x4x1xi32>
    %13 = vector.shape_cast %12 : vector<1x4x1xi32> to vector<4x1xi32>
    %c32_i32 = arith.constant 32 : i32
    %14 = vector.broadcast %c32_i32 : i32 to vector<4x1xi32>
    %15 = arith.cmpi sge, %13, %14 : vector<4x1xi32>
    %c1_i32 = arith.constant 1 : i32
    %16 = vector.broadcast %c1_i32 : i32 to vector<4x1xi32>
    %17 = arith.select %15, %16, %13 : vector<4x1xi1>, vector<4x1xi32>
    %18 = vector.broadcast %17 : vector<4x1xi32> to vector<4x32xi32>
    %19 = arith.cmpi eq, %1, %18 : vector<4x32xi32>
    %20 = arith.extui %19 : vector<4x32xi1> to vector<4x32xi32>
    %21 = arith.sitofp %20 : vector<4x32xi32> to vector<4x32xf32>
    %cst_19 = arith.constant dense<0.000000e+00> : vector<4x16xf32>
    %22 = tpu.matmul %21, %0, %cst_19 {dimension_numbers = #tpu.dot_dimension_numbers<[1], [0], [0], [1], [0, 0, 1, 1], [], []>} : vector<4x32xf32>, vector<32x16xf32>, vector<4x16xf32> -> vector<4x16xf32>
    %cst_20 = arith.constant dense<0.000000e+00> : vector<4x24xf32>
    %23 = tpu.matmul %22, %2, %cst_20 {dimension_numbers = #tpu.dot_dimension_numbers<[1], [0], [0], [1], [0, 0, 1, 1], [], []>} : vector<4x16xf32>, vector<16x24xf32>, vector<4x24xf32> -> vector<4x24xf32>
    %24 = vector.broadcast %4 : vector<1x24xf32> to vector<4x24xf32>
    %25 = arith.addf %23, %24 : vector<4x24xf32>
    %cst_21 = arith.constant dense<0.000000e+00> : vector<4x24xf32>
    %26 = tpu.matmul %10, %3, %cst_21 {dimension_numbers = #tpu.dot_dimension_numbers<[1], [0], [0], [1], [0, 0, 1, 1], [], []>} : vector<4x8xf32>, vector<8x24xf32>, vector<4x24xf32> -> vector<4x24xf32>
    %27 = vector.broadcast %5 : vector<1x24xf32> to vector<4x24xf32>
    %28 = arith.addf %26, %27 : vector<4x24xf32>
    %29 = vector.extract_strided_slice %25 {offsets = [0, 0], sizes = [4, 8], strides = [1, 1]} : vector<4x24xf32> to vector<4x8xf32>
    %30 = vector.extract_strided_slice %28 {offsets = [0, 0], sizes = [4, 8], strides = [1, 1]} : vector<4x24xf32> to vector<4x8xf32>
    %31 = arith.addf %29, %30 : vector<4x8xf32>
    %32 = arith.negf %31 : vector<4x8xf32>
    %33 = math.exp %32 : vector<4x8xf32>
    %cst_22 = arith.constant 1.000000e+00 : f32
    %34 = vector.broadcast %cst_22 : f32 to vector<4x8xf32>
    %35 = arith.addf %34, %33 : vector<4x8xf32>
    %36 = arith.divf %34, %35 : vector<4x8xf32>
    %37 = vector.extract_strided_slice %25 {offsets = [0, 8], sizes = [4, 8], strides = [1, 1]} : vector<4x24xf32> to vector<4x8xf32>
    %38 = vector.extract_strided_slice %28 {offsets = [0, 8], sizes = [4, 8], strides = [1, 1]} : vector<4x24xf32> to vector<4x8xf32>
    %39 = arith.addf %37, %38 : vector<4x8xf32>
    %40 = arith.negf %39 : vector<4x8xf32>
    %41 = math.exp %40 : vector<4x8xf32>
    %cst_23 = arith.constant 1.000000e+00 : f32
    %42 = vector.broadcast %cst_23 : f32 to vector<4x8xf32>
    %43 = arith.addf %42, %41 : vector<4x8xf32>
    %44 = arith.divf %42, %43 : vector<4x8xf32>
    %45 = vector.extract_strided_slice %25 {offsets = [0, 16], sizes = [4, 8], strides = [1, 1]} : vector<4x24xf32> to vector<4x8xf32>
    %46 = vector.extract_strided_slice %28 {offsets = [0, 16], sizes = [4, 8], strides = [1, 1]} : vector<4x24xf32> to vector<4x8xf32>
    %47 = arith.mulf %36, %46 : vector<4x8xf32>
    %48 = arith.addf %45, %47 : vector<4x8xf32>
    %49 = math.tanh %48 : vector<4x8xf32>
    %cst_24 = arith.constant 1.000000e+00 : f32
    %50 = vector.broadcast %cst_24 : f32 to vector<4x8xf32>
    %51 = arith.subf %50, %44 : vector<4x8xf32>
    %52 = arith.mulf %51, %49 : vector<4x8xf32>
    %53 = arith.mulf %44, %10 : vector<4x8xf32>
    %54 = arith.addf %52, %53 : vector<4x8xf32>
    %c7_i32 = arith.constant 7 : i32
    %55 = arith.subi %c7_i32, %c0_i32 : i32
    %56 = arith.index_cast %55 : i32 to index
    %c0_25 = arith.constant 0 : index
    %c0_26 = arith.constant 0 : index
    %57 = vector.load %arg0[%56, %c0_25, %c0_26] : memref<8x4x1xi32, #tpu.memory_space<vmem>>, vector<1x4x1xi32>
    %58 = vector.shape_cast %57 : vector<1x4x1xi32> to vector<4x1xi32>
    %c32_i32_27 = arith.constant 32 : i32
    %59 = vector.broadcast %c32_i32_27 : i32 to vector<4x1xi32>
    %60 = arith.cmpi sge, %58, %59 : vector<4x1xi32>
    %c1_i32_28 = arith.constant 1 : i32
    %61 = vector.broadcast %c1_i32_28 : i32 to vector<4x1xi32>
    %62 = arith.select %60, %61, %58 : vector<4x1xi1>, vector<4x1xi32>
    %63 = vector.broadcast %62 : vector<4x1xi32> to vector<4x32xi32>
    %64 = arith.cmpi eq, %1, %63 : vector<4x32xi32>
    %65 = arith.extui %64 : vector<4x32xi1> to vector<4x32xi32>
    %66 = arith.sitofp %65 : vector<4x32xi32> to vector<4x32xf32>
    %cst_29 = arith.constant dense<0.000000e+00> : vector<4x16xf32>
    %67 = tpu.matmul %66, %0, %cst_29 {dimension_numbers = #tpu.dot_dimension_numbers<[1], [0], [0], [1], [0, 0, 1, 1], [], []>} : vector<4x32xf32>, vector<32x16xf32>, vector<4x16xf32> -> vector<4x16xf32>
    %cst_30 = arith.constant dense<0.000000e+00> : vector<4x24xf32>
    %68 = tpu.matmul %67, %6, %cst_30 {dimension_numbers = #tpu.dot_dimension_numbers<[1], [0], [0], [1], [0, 0, 1, 1], [], []>} : vector<4x16xf32>, vector<16x24xf32>, vector<4x24xf32> -> vector<4x24xf32>
    %69 = vector.broadcast %8 : vector<1x24xf32> to vector<4x24xf32>
    %70 = arith.addf %68, %69 : vector<4x24xf32>
    %cst_31 = arith.constant dense<0.000000e+00> : vector<4x24xf32>
    %71 = tpu.matmul %10, %7, %cst_31 {dimension_numbers = #tpu.dot_dimension_numbers<[1], [0], [0], [1], [0, 0, 1, 1], [], []>} : vector<4x8xf32>, vector<8x24xf32>, vector<4x24xf32> -> vector<4x24xf32>
    %72 = vector.broadcast %9 : vector<1x24xf32> to vector<4x24xf32>
    %73 = arith.addf %71, %72 : vector<4x24xf32>
    %74 = vector.extract_strided_slice %70 {offsets = [0, 0], sizes = [4, 8], strides = [1, 1]} : vector<4x24xf32> to vector<4x8xf32>
    %75 = vector.extract_strided_slice %73 {offsets = [0, 0], sizes = [4, 8], strides = [1, 1]} : vector<4x24xf32> to vector<4x8xf32>
    %76 = arith.addf %74, %75 : vector<4x8xf32>
    %77 = arith.negf %76 : vector<4x8xf32>
    %78 = math.exp %77 : vector<4x8xf32>
    %cst_32 = arith.constant 1.000000e+00 : f32
    %79 = vector.broadcast %cst_32 : f32 to vector<4x8xf32>
    %80 = arith.addf %79, %78 : vector<4x8xf32>
    %81 = arith.divf %79, %80 : vector<4x8xf32>
    %82 = vector.extract_strided_slice %70 {offsets = [0, 8], sizes = [4, 8], strides = [1, 1]} : vector<4x24xf32> to vector<4x8xf32>
    %83 = vector.extract_strided_slice %73 {offsets = [0, 8], sizes = [4, 8], strides = [1, 1]} : vector<4x24xf32> to vector<4x8xf32>
    %84 = arith.addf %82, %83 : vector<4x8xf32>
    %85 = arith.negf %84 : vector<4x8xf32>
    %86 = math.exp %85 : vector<4x8xf32>
    %cst_33 = arith.constant 1.000000e+00 : f32
    %87 = vector.broadcast %cst_33 : f32 to vector<4x8xf32>
    %88 = arith.addf %87, %86 : vector<4x8xf32>
    %89 = arith.divf %87, %88 : vector<4x8xf32>
    %90 = vector.extract_strided_slice %70 {offsets = [0, 16], sizes = [4, 8], strides = [1, 1]} : vector<4x24xf32> to vector<4x8xf32>
    %91 = vector.extract_strided_slice %73 {offsets = [0, 16], sizes = [4, 8], strides = [1, 1]} : vector<4x24xf32> to vector<4x8xf32>
    %92 = arith.mulf %81, %91 : vector<4x8xf32>
    %93 = arith.addf %90, %92 : vector<4x8xf32>
    %94 = math.tanh %93 : vector<4x8xf32>
    %cst_34 = arith.constant 1.000000e+00 : f32
    %95 = vector.broadcast %cst_34 : f32 to vector<4x8xf32>
    %96 = arith.subf %95, %89 : vector<4x8xf32>
    %97 = arith.mulf %96, %94 : vector<4x8xf32>
    %98 = arith.mulf %89, %10 : vector<4x8xf32>
    %99 = arith.addf %97, %98 : vector<4x8xf32>
    %100 = arith.index_cast %c0_i32 : i32 to index
    %c0_35 = arith.constant 0 : index
    %c0_36 = arith.constant 0 : index
    %101 = vector.load %arg12[%100, %c0_35, %c0_36] : memref<8x4x16xf32, #tpu.memory_space<vmem>>, vector<1x4x8xf32>
    %102 = vector.shape_cast %101 : vector<1x4x8xf32> to vector<4x8xf32>
    %103 = vector.shape_cast %54 : vector<4x8xf32> to vector<1x4x8xf32>
    tpu.vector_store %arg12[%100, %c0_35, %c0_36], %103 {strides = array<i32>} : memref<8x4x16xf32, #tpu.memory_space<vmem>>, vector<1x4x8xf32>,
    %c7_i32_37 = arith.constant 7 : i32
    %104 = arith.subi %c7_i32_37, %c0_i32 : i32
    %105 = arith.index_cast %104 : i32 to index
    %c0_38 = arith.constant 0 : index
    %c8 = arith.constant 8 : index
    %106 = vector.load %arg12[%105, %c0_38, %c8] : memref<8x4x16xf32, #tpu.memory_space<vmem>>, vector<1x4x8xf32>
    %107 = vector.shape_cast %106 : vector<1x4x8xf32> to vector<4x8xf32>
    %108 = vector.shape_cast %99 : vector<4x8xf32> to vector<1x4x8xf32>
    tpu.vector_store %arg12[%105, %c0_38, %c8], %108 {strides = array<i32>} : memref<8x4x16xf32, #tpu.memory_space<vmem>>, vector<1x4x8xf32>,
    %c1_i32_39 = arith.constant 1 : i32
    %109 = arith.index_cast %c1_i32_39 : i32 to index
    %c0_40 = arith.constant 0 : index
    %c0_41 = arith.constant 0 : index
    %110 = vector.load %arg0[%109, %c0_40, %c0_41] : memref<8x4x1xi32, #tpu.memory_space<vmem>>, vector<1x4x1xi32>
    %111 = vector.shape_cast %110 : vector<1x4x1xi32> to vector<4x1xi32>
    %c32_i32_42 = arith.constant 32 : i32
    %112 = vector.broadcast %c32_i32_42 : i32 to vector<4x1xi32>
    %113 = arith.cmpi sge, %111, %112 : vector<4x1xi32>
    %c1_i32_43 = arith.constant 1 : i32
    %114 = vector.broadcast %c1_i32_43 : i32 to vector<4x1xi32>
    %115 = arith.select %113, %114, %111 : vector<4x1xi1>, vector<4x1xi32>
    %116 = vector.broadcast %115 : vector<4x1xi32> to vector<4x32xi32>
    %117 = arith.cmpi eq, %1, %116 : vector<4x32xi32>
    %118 = arith.extui %117 : vector<4x32xi1> to vector<4x32xi32>
    %119 = arith.sitofp %118 : vector<4x32xi32> to vector<4x32xf32>
    %cst_44 = arith.constant dense<0.000000e+00> : vector<4x16xf32>
    %120 = tpu.matmul %119, %0, %cst_44 {dimension_numbers = #tpu.dot_dimension_numbers<[1], [0], [0], [1], [0, 0, 1, 1], [], []>} : vector<4x32xf32>, vector<32x16xf32>, vector<4x16xf32> -> vector<4x16xf32>
    %cst_45 = arith.constant dense<0.000000e+00> : vector<4x24xf32>
    %121 = tpu.matmul %120, %2, %cst_45 {dimension_numbers = #tpu.dot_dimension_numbers<[1], [0], [0], [1], [0, 0, 1, 1], [], []>} : vector<4x16xf32>, vector<16x24xf32>, vector<4x24xf32> -> vector<4x24xf32>
    %122 = vector.broadcast %4 : vector<1x24xf32> to vector<4x24xf32>
    %123 = arith.addf %121, %122 : vector<4x24xf32>
    %cst_46 = arith.constant dense<0.000000e+00> : vector<4x24xf32>
    %124 = tpu.matmul %54, %3, %cst_46 {dimension_numbers = #tpu.dot_dimension_numbers<[1], [0], [0], [1], [0, 0, 1, 1], [], []>} : vector<4x8xf32>, vector<8x24xf32>, vector<4x24xf32> -> vector<4x24xf32>
    %125 = vector.broadcast %5 : vector<1x24xf32> to vector<4x24xf32>
    %126 = arith.addf %124, %125 : vector<4x24xf32>
    %127 = vector.extract_strided_slice %123 {offsets = [0, 0], sizes = [4, 8], strides = [1, 1]} : vector<4x24xf32> to vector<4x8xf32>
    %128 = vector.extract_strided_slice %126 {offsets = [0, 0], sizes = [4, 8], strides = [1, 1]} : vector<4x24xf32> to vector<4x8xf32>
    %129 = arith.addf %127, %128 : vector<4x8xf32>
    %130 = arith.negf %129 : vector<4x8xf32>
    %131 = math.exp %130 : vector<4x8xf32>
    %cst_47 = arith.constant 1.000000e+00 : f32
    %132 = vector.broadcast %cst_47 : f32 to vector<4x8xf32>
    %133 = arith.addf %132, %131 : vector<4x8xf32>
    %134 = arith.divf %132, %133 : vector<4x8xf32>
    %135 = vector.extract_strided_slice %123 {offsets = [0, 8], sizes = [4, 8], strides = [1, 1]} : vector<4x24xf32> to vector<4x8xf32>
    %136 = vector.extract_strided_slice %126 {offsets = [0, 8], sizes = [4, 8], strides = [1, 1]} : vector<4x24xf32> to vector<4x8xf32>
    %137 = arith.addf %135, %136 : vector<4x8xf32>
    %138 = arith.negf %137 : vector<4x8xf32>
    %139 = math.exp %138 : vector<4x8xf32>
    %cst_48 = arith.constant 1.000000e+00 : f32
    %140 = vector.broadcast %cst_48 : f32 to vector<4x8xf32>
    %141 = arith.addf %140, %139 : vector<4x8xf32>
    %142 = arith.divf %140, %141 : vector<4x8xf32>
    %143 = vector.extract_strided_slice %123 {offsets = [0, 16], sizes = [4, 8], strides = [1, 1]} : vector<4x24xf32> to vector<4x8xf32>
    %144 = vector.extract_strided_slice %126 {offsets = [0, 16], sizes = [4, 8], strides = [1, 1]} : vector<4x24xf32> to vector<4x8xf32>
    %145 = arith.mulf %134, %144 : vector<4x8xf32>
    %146 = arith.addf %143, %145 : vector<4x8xf32>
    %147 = math.tanh %146 : vector<4x8xf32>
    %cst_49 = arith.constant 1.000000e+00 : f32
    %148 = vector.broadcast %cst_49 : f32 to vector<4x8xf32>
    %149 = arith.subf %148, %142 : vector<4x8xf32>
    %150 = arith.mulf %149, %147 : vector<4x8xf32>
    %151 = arith.mulf %142, %54 : vector<4x8xf32>
    %152 = arith.addf %150, %151 : vector<4x8xf32>
    %c7_i32_50 = arith.constant 7 : i32
    %153 = arith.subi %c7_i32_50, %c1_i32_39 : i32
    %154 = arith.index_cast %153 : i32 to index
    %c0_51 = arith.constant 0 : index
    %c0_52 = arith.constant 0 : index
    %155 = vector.load %arg0[%154, %c0_51, %c0_52] : memref<8x4x1xi32, #tpu.memory_space<vmem>>, vector<1x4x1xi32>
    %156 = vector.shape_cast %155 : vector<1x4x1xi32> to vector<4x1xi32>
    %c32_i32_53 = arith.constant 32 : i32
    %157 = vector.broadcast %c32_i32_53 : i32 to vector<4x1xi32>
    %158 = arith.cmpi sge, %156, %157 : vector<4x1xi32>
    %c1_i32_54 = arith.constant 1 : i32
    %159 = vector.broadcast %c1_i32_54 : i32 to vector<4x1xi32>
    %160 = arith.select %158, %159, %156 : vector<4x1xi1>, vector<4x1xi32>
    %161 = vector.broadcast %160 : vector<4x1xi32> to vector<4x32xi32>
    %162 = arith.cmpi eq, %1, %161 : vector<4x32xi32>
    %163 = arith.extui %162 : vector<4x32xi1> to vector<4x32xi32>
    %164 = arith.sitofp %163 : vector<4x32xi32> to vector<4x32xf32>
    %cst_55 = arith.constant dense<0.000000e+00> : vector<4x16xf32>
    %165 = tpu.matmul %164, %0, %cst_55 {dimension_numbers = #tpu.dot_dimension_numbers<[1], [0], [0], [1], [0, 0, 1, 1], [], []>} : vector<4x32xf32>, vector<32x16xf32>, vector<4x16xf32> -> vector<4x16xf32>
    %cst_56 = arith.constant dense<0.000000e+00> : vector<4x24xf32>
    %166 = tpu.matmul %165, %6, %cst_56 {dimension_numbers = #tpu.dot_dimension_numbers<[1], [0], [0], [1], [0, 0, 1, 1], [], []>} : vector<4x16xf32>, vector<16x24xf32>, vector<4x24xf32> -> vector<4x24xf32>
    %167 = vector.broadcast %8 : vector<1x24xf32> to vector<4x24xf32>
    %168 = arith.addf %166, %167 : vector<4x24xf32>
    %cst_57 = arith.constant dense<0.000000e+00> : vector<4x24xf32>
    %169 = tpu.matmul %99, %7, %cst_57 {dimension_numbers = #tpu.dot_dimension_numbers<[1], [0], [0], [1], [0, 0, 1, 1], [], []>} : vector<4x8xf32>, vector<8x24xf32>, vector<4x24xf32> -> vector<4x24xf32>
    %170 = vector.broadcast %9 : vector<1x24xf32> to vector<4x24xf32>
    %171 = arith.addf %169, %170 : vector<4x24xf32>
    %172 = vector.extract_strided_slice %168 {offsets = [0, 0], sizes = [4, 8], strides = [1, 1]} : vector<4x24xf32> to vector<4x8xf32>
    %173 = vector.extract_strided_slice %171 {offsets = [0, 0], sizes = [4, 8], strides = [1, 1]} : vector<4x24xf32> to vector<4x8xf32>
    %174 = arith.addf %172, %173 : vector<4x8xf32>
    %175 = arith.negf %174 : vector<4x8xf32>
    %176 = math.exp %175 : vector<4x8xf32>
    %cst_58 = arith.constant 1.000000e+00 : f32
    %177 = vector.broadcast %cst_58 : f32 to vector<4x8xf32>
    %178 = arith.addf %177, %176 : vector<4x8xf32>
    %179 = arith.divf %177, %178 : vector<4x8xf32>
    %180 = vector.extract_strided_slice %168 {offsets = [0, 8], sizes = [4, 8], strides = [1, 1]} : vector<4x24xf32> to vector<4x8xf32>
    %181 = vector.extract_strided_slice %171 {offsets = [0, 8], sizes = [4, 8], strides = [1, 1]} : vector<4x24xf32> to vector<4x8xf32>
    %182 = arith.addf %180, %181 : vector<4x8xf32>
    %183 = arith.negf %182 : vector<4x8xf32>
    %184 = math.exp %183 : vector<4x8xf32>
    %cst_59 = arith.constant 1.000000e+00 : f32
    %185 = vector.broadcast %cst_59 : f32 to vector<4x8xf32>
    %186 = arith.addf %185, %184 : vector<4x8xf32>
    %187 = arith.divf %185, %186 : vector<4x8xf32>
    %188 = vector.extract_strided_slice %168 {offsets = [0, 16], sizes = [4, 8], strides = [1, 1]} : vector<4x24xf32> to vector<4x8xf32>
    %189 = vector.extract_strided_slice %171 {offsets = [0, 16], sizes = [4, 8], strides = [1, 1]} : vector<4x24xf32> to vector<4x8xf32>
    %190 = arith.mulf %179, %189 : vector<4x8xf32>
    %191 = arith.addf %188, %190 : vector<4x8xf32>
    %192 = math.tanh %191 : vector<4x8xf32>
    %cst_60 = arith.constant 1.000000e+00 : f32
    %193 = vector.broadcast %cst_60 : f32 to vector<4x8xf32>
    %194 = arith.subf %193, %187 : vector<4x8xf32>
    %195 = arith.mulf %194, %192 : vector<4x8xf32>
    %196 = arith.mulf %187, %99 : vector<4x8xf32>
    %197 = arith.addf %195, %196 : vector<4x8xf32>
    %198 = arith.index_cast %c1_i32_39 : i32 to index
    %c0_61 = arith.constant 0 : index
    %c0_62 = arith.constant 0 : index
    %199 = vector.load %arg12[%198, %c0_61, %c0_62] : memref<8x4x16xf32, #tpu.memory_space<vmem>>, vector<1x4x8xf32>
    %200 = vector.shape_cast %199 : vector<1x4x8xf32> to vector<4x8xf32>
    %201 = vector.shape_cast %152 : vector<4x8xf32> to vector<1x4x8xf32>
    tpu.vector_store %arg12[%198, %c0_61, %c0_62], %201 {strides = array<i32>} : memref<8x4x16xf32, #tpu.memory_space<vmem>>, vector<1x4x8xf32>,
    %c7_i32_63 = arith.constant 7 : i32
    %202 = arith.subi %c7_i32_63, %c1_i32_39 : i32
    %203 = arith.index_cast %202 : i32 to index
    %c0_64 = arith.constant 0 : index
    %c8_65 = arith.constant 8 : index
    %204 = vector.load %arg12[%203, %c0_64, %c8_65] : memref<8x4x16xf32, #tpu.memory_space<vmem>>, vector<1x4x8xf32>
    %205 = vector.shape_cast %204 : vector<1x4x8xf32> to vector<4x8xf32>
    %206 = vector.shape_cast %197 : vector<4x8xf32> to vector<1x4x8xf32>
    tpu.vector_store %arg12[%203, %c0_64, %c8_65], %206 {strides = array<i32>} : memref<8x4x16xf32, #tpu.memory_space<vmem>>, vector<1x4x8xf32>,
    %c2_i32 = arith.constant 2 : i32
    %207 = arith.index_cast %c2_i32 : i32 to index
    %c0_66 = arith.constant 0 : index
    %c0_67 = arith.constant 0 : index
    %208 = vector.load %arg0[%207, %c0_66, %c0_67] : memref<8x4x1xi32, #tpu.memory_space<vmem>>, vector<1x4x1xi32>
    %209 = vector.shape_cast %208 : vector<1x4x1xi32> to vector<4x1xi32>
    %c32_i32_68 = arith.constant 32 : i32
    %210 = vector.broadcast %c32_i32_68 : i32 to vector<4x1xi32>
    %211 = arith.cmpi sge, %209, %210 : vector<4x1xi32>
    %c1_i32_69 = arith.constant 1 : i32
    %212 = vector.broadcast %c1_i32_69 : i32 to vector<4x1xi32>
    %213 = arith.select %211, %212, %209 : vector<4x1xi1>, vector<4x1xi32>
    %214 = vector.broadcast %213 : vector<4x1xi32> to vector<4x32xi32>
    %215 = arith.cmpi eq, %1, %214 : vector<4x32xi32>
    %216 = arith.extui %215 : vector<4x32xi1> to vector<4x32xi32>
    %217 = arith.sitofp %216 : vector<4x32xi32> to vector<4x32xf32>
    %cst_70 = arith.constant dense<0.000000e+00> : vector<4x16xf32>
    %218 = tpu.matmul %217, %0, %cst_70 {dimension_numbers = #tpu.dot_dimension_numbers<[1], [0], [0], [1], [0, 0, 1, 1], [], []>} : vector<4x32xf32>, vector<32x16xf32>, vector<4x16xf32> -> vector<4x16xf32>
    %cst_71 = arith.constant dense<0.000000e+00> : vector<4x24xf32>
    %219 = tpu.matmul %218, %2, %cst_71 {dimension_numbers = #tpu.dot_dimension_numbers<[1], [0], [0], [1], [0, 0, 1, 1], [], []>} : vector<4x16xf32>, vector<16x24xf32>, vector<4x24xf32> -> vector<4x24xf32>
    %220 = vector.broadcast %4 : vector<1x24xf32> to vector<4x24xf32>
    %221 = arith.addf %219, %220 : vector<4x24xf32>
    %cst_72 = arith.constant dense<0.000000e+00> : vector<4x24xf32>
    %222 = tpu.matmul %152, %3, %cst_72 {dimension_numbers = #tpu.dot_dimension_numbers<[1], [0], [0], [1], [0, 0, 1, 1], [], []>} : vector<4x8xf32>, vector<8x24xf32>, vector<4x24xf32> -> vector<4x24xf32>
    %223 = vector.broadcast %5 : vector<1x24xf32> to vector<4x24xf32>
    %224 = arith.addf %222, %223 : vector<4x24xf32>
    %225 = vector.extract_strided_slice %221 {offsets = [0, 0], sizes = [4, 8], strides = [1, 1]} : vector<4x24xf32> to vector<4x8xf32>
    %226 = vector.extract_strided_slice %224 {offsets = [0, 0], sizes = [4, 8], strides = [1, 1]} : vector<4x24xf32> to vector<4x8xf32>
    %227 = arith.addf %225, %226 : vector<4x8xf32>
    %228 = arith.negf %227 : vector<4x8xf32>
    %229 = math.exp %228 : vector<4x8xf32>
    %cst_73 = arith.constant 1.000000e+00 : f32
    %230 = vector.broadcast %cst_73 : f32 to vector<4x8xf32>
    %231 = arith.addf %230, %229 : vector<4x8xf32>
    %232 = arith.divf %230, %231 : vector<4x8xf32>
    %233 = vector.extract_strided_slice %221 {offsets = [0, 8], sizes = [4, 8], strides = [1, 1]} : vector<4x24xf32> to vector<4x8xf32>
    %234 = vector.extract_strided_slice %224 {offsets = [0, 8], sizes = [4, 8], strides = [1, 1]} : vector<4x24xf32> to vector<4x8xf32>
    %235 = arith.addf %233, %234 : vector<4x8xf32>
    %236 = arith.negf %235 : vector<4x8xf32>
    %237 = math.exp %236 : vector<4x8xf32>
    %cst_74 = arith.constant 1.000000e+00 : f32
    %238 = vector.broadcast %cst_74 : f32 to vector<4x8xf32>
    %239 = arith.addf %238, %237 : vector<4x8xf32>
    %240 = arith.divf %238, %239 : vector<4x8xf32>
    %241 = vector.extract_strided_slice %221 {offsets = [0, 16], sizes = [4, 8], strides = [1, 1]} : vector<4x24xf32> to vector<4x8xf32>
    %242 = vector.extract_strided_slice %224 {offsets = [0, 16], sizes = [4, 8], strides = [1, 1]} : vector<4x24xf32> to vector<4x8xf32>
    %243 = arith.mulf %232, %242 : vector<4x8xf32>
    %244 = arith.addf %241, %243 : vector<4x8xf32>
    %245 = math.tanh %244 : vector<4x8xf32>
    %cst_75 = arith.constant 1.000000e+00 : f32
    %246 = vector.broadcast %cst_75 : f32 to vector<4x8xf32>
    %247 = arith.subf %246, %240 : vector<4x8xf32>
    %248 = arith.mulf %247, %245 : vector<4x8xf32>
    %249 = arith.mulf %240, %152 : vector<4x8xf32>
    %250 = arith.addf %248, %249 : vector<4x8xf32>
    %c7_i32_76 = arith.constant 7 : i32
    %251 = arith.subi %c7_i32_76, %c2_i32 : i32
    %252 = arith.index_cast %251 : i32 to index
    %c0_77 = arith.constant 0 : index
    %c0_78 = arith.constant 0 : index
    %253 = vector.load %arg0[%252, %c0_77, %c0_78] : memref<8x4x1xi32, #tpu.memory_space<vmem>>, vector<1x4x1xi32>
    %254 = vector.shape_cast %253 : vector<1x4x1xi32> to vector<4x1xi32>
    %c32_i32_79 = arith.constant 32 : i32
    %255 = vector.broadcast %c32_i32_79 : i32 to vector<4x1xi32>
    %256 = arith.cmpi sge, %254, %255 : vector<4x1xi32>
    %c1_i32_80 = arith.constant 1 : i32
    %257 = vector.broadcast %c1_i32_80 : i32 to vector<4x1xi32>
    %258 = arith.select %256, %257, %254 : vector<4x1xi1>, vector<4x1xi32>
    %259 = vector.broadcast %258 : vector<4x1xi32> to vector<4x32xi32>
    %260 = arith.cmpi eq, %1, %259 : vector<4x32xi32>
    %261 = arith.extui %260 : vector<4x32xi1> to vector<4x32xi32>
    %262 = arith.sitofp %261 : vector<4x32xi32> to vector<4x32xf32>
    %cst_81 = arith.constant dense<0.000000e+00> : vector<4x16xf32>
    %263 = tpu.matmul %262, %0, %cst_81 {dimension_numbers = #tpu.dot_dimension_numbers<[1], [0], [0], [1], [0, 0, 1, 1], [], []>} : vector<4x32xf32>, vector<32x16xf32>, vector<4x16xf32> -> vector<4x16xf32>
    %cst_82 = arith.constant dense<0.000000e+00> : vector<4x24xf32>
    %264 = tpu.matmul %263, %6, %cst_82 {dimension_numbers = #tpu.dot_dimension_numbers<[1], [0], [0], [1], [0, 0, 1, 1], [], []>} : vector<4x16xf32>, vector<16x24xf32>, vector<4x24xf32> -> vector<4x24xf32>
    %265 = vector.broadcast %8 : vector<1x24xf32> to vector<4x24xf32>
    %266 = arith.addf %264, %265 : vector<4x24xf32>
    %cst_83 = arith.constant dense<0.000000e+00> : vector<4x24xf32>
    %267 = tpu.matmul %197, %7, %cst_83 {dimension_numbers = #tpu.dot_dimension_numbers<[1], [0], [0], [1], [0, 0, 1, 1], [], []>} : vector<4x8xf32>, vector<8x24xf32>, vector<4x24xf32> -> vector<4x24xf32>
    %268 = vector.broadcast %9 : vector<1x24xf32> to vector<4x24xf32>
    %269 = arith.addf %267, %268 : vector<4x24xf32>
    %270 = vector.extract_strided_slice %266 {offsets = [0, 0], sizes = [4, 8], strides = [1, 1]} : vector<4x24xf32> to vector<4x8xf32>
    %271 = vector.extract_strided_slice %269 {offsets = [0, 0], sizes = [4, 8], strides = [1, 1]} : vector<4x24xf32> to vector<4x8xf32>
    %272 = arith.addf %270, %271 : vector<4x8xf32>
    %273 = arith.negf %272 : vector<4x8xf32>
    %274 = math.exp %273 : vector<4x8xf32>
    %cst_84 = arith.constant 1.000000e+00 : f32
    %275 = vector.broadcast %cst_84 : f32 to vector<4x8xf32>
    %276 = arith.addf %275, %274 : vector<4x8xf32>
    %277 = arith.divf %275, %276 : vector<4x8xf32>
    %278 = vector.extract_strided_slice %266 {offsets = [0, 8], sizes = [4, 8], strides = [1, 1]} : vector<4x24xf32> to vector<4x8xf32>
    %279 = vector.extract_strided_slice %269 {offsets = [0, 8], sizes = [4, 8], strides = [1, 1]} : vector<4x24xf32> to vector<4x8xf32>
    %280 = arith.addf %278, %279 : vector<4x8xf32>
    %281 = arith.negf %280 : vector<4x8xf32>
    %282 = math.exp %281 : vector<4x8xf32>
    %cst_85 = arith.constant 1.000000e+00 : f32
    %283 = vector.broadcast %cst_85 : f32 to vector<4x8xf32>
    %284 = arith.addf %283, %282 : vector<4x8xf32>
    %285 = arith.divf %283, %284 : vector<4x8xf32>
    %286 = vector.extract_strided_slice %266 {offsets = [0, 16], sizes = [4, 8], strides = [1, 1]} : vector<4x24xf32> to vector<4x8xf32>
    %287 = vector.extract_strided_slice %269 {offsets = [0, 16], sizes = [4, 8], strides = [1, 1]} : vector<4x24xf32> to vector<4x8xf32>
    %288 = arith.mulf %277, %287 : vector<4x8xf32>
    %289 = arith.addf %286, %288 : vector<4x8xf32>
    %290 = math.tanh %289 : vector<4x8xf32>
    %cst_86 = arith.constant 1.000000e+00 : f32
    %291 = vector.broadcast %cst_86 : f32 to vector<4x8xf32>
    %292 = arith.subf %291, %285 : vector<4x8xf32>
    %293 = arith.mulf %292, %290 : vector<4x8xf32>
    %294 = arith.mulf %285, %197 : vector<4x8xf32>
    %295 = arith.addf %293, %294 : vector<4x8xf32>
    %296 = arith.index_cast %c2_i32 : i32 to index
    %c0_87 = arith.constant 0 : index
    %c0_88 = arith.constant 0 : index
    %297 = vector.load %arg12[%296, %c0_87, %c0_88] : memref<8x4x16xf32, #tpu.memory_space<vmem>>, vector<1x4x8xf32>
    %298 = vector.shape_cast %297 : vector<1x4x8xf32> to vector<4x8xf32>
    %299 = vector.shape_cast %250 : vector<4x8xf32> to vector<1x4x8xf32>
    tpu.vector_store %arg12[%296, %c0_87, %c0_88], %299 {strides = array<i32>} : memref<8x4x16xf32, #tpu.memory_space<vmem>>, vector<1x4x8xf32>,
    %c7_i32_89 = arith.constant 7 : i32
    %300 = arith.subi %c7_i32_89, %c2_i32 : i32
    %301 = arith.index_cast %300 : i32 to index
    %c0_90 = arith.constant 0 : index
    %c8_91 = arith.constant 8 : index
    %302 = vector.load %arg12[%301, %c0_90, %c8_91] : memref<8x4x16xf32, #tpu.memory_space<vmem>>, vector<1x4x8xf32>
    %303 = vector.shape_cast %302 : vector<1x4x8xf32> to vector<4x8xf32>
    %304 = vector.shape_cast %295 : vector<4x8xf32> to vector<1x4x8xf32>
    tpu.vector_store %arg12[%301, %c0_90, %c8_91], %304 {strides = array<i32>} : memref<8x4x16xf32, #tpu.memory_space<vmem>>, vector<1x4x8xf32>,
    %c3_i32 = arith.constant 3 : i32
    %305 = arith.index_cast %c3_i32 : i32 to index
    %c0_92 = arith.constant 0 : index
    %c0_93 = arith.constant 0 : index
    %306 = vector.load %arg0[%305, %c0_92, %c0_93] : memref<8x4x1xi32, #tpu.memory_space<vmem>>, vector<1x4x1xi32>
    %307 = vector.shape_cast %306 : vector<1x4x1xi32> to vector<4x1xi32>
    %c32_i32_94 = arith.constant 32 : i32
    %308 = vector.broadcast %c32_i32_94 : i32 to vector<4x1xi32>
    %309 = arith.cmpi sge, %307, %308 : vector<4x1xi32>
    %c1_i32_95 = arith.constant 1 : i32
    %310 = vector.broadcast %c1_i32_95 : i32 to vector<4x1xi32>
    %311 = arith.select %309, %310, %307 : vector<4x1xi1>, vector<4x1xi32>
    %312 = vector.broadcast %311 : vector<4x1xi32> to vector<4x32xi32>
    %313 = arith.cmpi eq, %1, %312 : vector<4x32xi32>
    %314 = arith.extui %313 : vector<4x32xi1> to vector<4x32xi32>
    %315 = arith.sitofp %314 : vector<4x32xi32> to vector<4x32xf32>
    %cst_96 = arith.constant dense<0.000000e+00> : vector<4x16xf32>
    %316 = tpu.matmul %315, %0, %cst_96 {dimension_numbers = #tpu.dot_dimension_numbers<[1], [0], [0], [1], [0, 0, 1, 1], [], []>} : vector<4x32xf32>, vector<32x16xf32>, vector<4x16xf32> -> vector<4x16xf32>
    %cst_97 = arith.constant dense<0.000000e+00> : vector<4x24xf32>
    %317 = tpu.matmul %316, %2, %cst_97 {dimension_numbers = #tpu.dot_dimension_numbers<[1], [0], [0], [1], [0, 0, 1, 1], [], []>} : vector<4x16xf32>, vector<16x24xf32>, vector<4x24xf32> -> vector<4x24xf32>
    %318 = vector.broadcast %4 : vector<1x24xf32> to vector<4x24xf32>
    %319 = arith.addf %317, %318 : vector<4x24xf32>
    %cst_98 = arith.constant dense<0.000000e+00> : vector<4x24xf32>
    %320 = tpu.matmul %250, %3, %cst_98 {dimension_numbers = #tpu.dot_dimension_numbers<[1], [0], [0], [1], [0, 0, 1, 1], [], []>} : vector<4x8xf32>, vector<8x24xf32>, vector<4x24xf32> -> vector<4x24xf32>
    %321 = vector.broadcast %5 : vector<1x24xf32> to vector<4x24xf32>
    %322 = arith.addf %320, %321 : vector<4x24xf32>
    %323 = vector.extract_strided_slice %319 {offsets = [0, 0], sizes = [4, 8], strides = [1, 1]} : vector<4x24xf32> to vector<4x8xf32>
    %324 = vector.extract_strided_slice %322 {offsets = [0, 0], sizes = [4, 8], strides = [1, 1]} : vector<4x24xf32> to vector<4x8xf32>
    %325 = arith.addf %323, %324 : vector<4x8xf32>
    %326 = arith.negf %325 : vector<4x8xf32>
    %327 = math.exp %326 : vector<4x8xf32>
    %cst_99 = arith.constant 1.000000e+00 : f32
    %328 = vector.broadcast %cst_99 : f32 to vector<4x8xf32>
    %329 = arith.addf %328, %327 : vector<4x8xf32>
    %330 = arith.divf %328, %329 : vector<4x8xf32>
    %331 = vector.extract_strided_slice %319 {offsets = [0, 8], sizes = [4, 8], strides = [1, 1]} : vector<4x24xf32> to vector<4x8xf32>
    %332 = vector.extract_strided_slice %322 {offsets = [0, 8], sizes = [4, 8], strides = [1, 1]} : vector<4x24xf32> to vector<4x8xf32>
    %333 = arith.addf %331, %332 : vector<4x8xf32>
    %334 = arith.negf %333 : vector<4x8xf32>
    %335 = math.exp %334 : vector<4x8xf32>
    %cst_100 = arith.constant 1.000000e+00 : f32
    %336 = vector.broadcast %cst_100 : f32 to vector<4x8xf32>
    %337 = arith.addf %336, %335 : vector<4x8xf32>
    %338 = arith.divf %336, %337 : vector<4x8xf32>
    %339 = vector.extract_strided_slice %319 {offsets = [0, 16], sizes = [4, 8], strides = [1, 1]} : vector<4x24xf32> to vector<4x8xf32>
    %340 = vector.extract_strided_slice %322 {offsets = [0, 16], sizes = [4, 8], strides = [1, 1]} : vector<4x24xf32> to vector<4x8xf32>
    %341 = arith.mulf %330, %340 : vector<4x8xf32>
    %342 = arith.addf %339, %341 : vector<4x8xf32>
    %343 = math.tanh %342 : vector<4x8xf32>
    %cst_101 = arith.constant 1.000000e+00 : f32
    %344 = vector.broadcast %cst_101 : f32 to vector<4x8xf32>
    %345 = arith.subf %344, %338 : vector<4x8xf32>
    %346 = arith.mulf %345, %343 : vector<4x8xf32>
    %347 = arith.mulf %338, %250 : vector<4x8xf32>
    %348 = arith.addf %346, %347 : vector<4x8xf32>
    %c7_i32_102 = arith.constant 7 : i32
    %349 = arith.subi %c7_i32_102, %c3_i32 : i32
    %350 = arith.index_cast %349 : i32 to index
    %c0_103 = arith.constant 0 : index
    %c0_104 = arith.constant 0 : index
    %351 = vector.load %arg0[%350, %c0_103, %c0_104] : memref<8x4x1xi32, #tpu.memory_space<vmem>>, vector<1x4x1xi32>
    %352 = vector.shape_cast %351 : vector<1x4x1xi32> to vector<4x1xi32>
    %c32_i32_105 = arith.constant 32 : i32
    %353 = vector.broadcast %c32_i32_105 : i32 to vector<4x1xi32>
    %354 = arith.cmpi sge, %352, %353 : vector<4x1xi32>
    %c1_i32_106 = arith.constant 1 : i32
    %355 = vector.broadcast %c1_i32_106 : i32 to vector<4x1xi32>
    %356 = arith.select %354, %355, %352 : vector<4x1xi1>, vector<4x1xi32>
    %357 = vector.broadcast %356 : vector<4x1xi32> to vector<4x32xi32>
    %358 = arith.cmpi eq, %1, %357 : vector<4x32xi32>
    %359 = arith.extui %358 : vector<4x32xi1> to vector<4x32xi32>
    %360 = arith.sitofp %359 : vector<4x32xi32> to vector<4x32xf32>
    %cst_107 = arith.constant dense<0.000000e+00> : vector<4x16xf32>
    %361 = tpu.matmul %360, %0, %cst_107 {dimension_numbers = #tpu.dot_dimension_numbers<[1], [0], [0], [1], [0, 0, 1, 1], [], []>} : vector<4x32xf32>, vector<32x16xf32>, vector<4x16xf32> -> vector<4x16xf32>
    %cst_108 = arith.constant dense<0.000000e+00> : vector<4x24xf32>
    %362 = tpu.matmul %361, %6, %cst_108 {dimension_numbers = #tpu.dot_dimension_numbers<[1], [0], [0], [1], [0, 0, 1, 1], [], []>} : vector<4x16xf32>, vector<16x24xf32>, vector<4x24xf32> -> vector<4x24xf32>
    %363 = vector.broadcast %8 : vector<1x24xf32> to vector<4x24xf32>
    %364 = arith.addf %362, %363 : vector<4x24xf32>
    %cst_109 = arith.constant dense<0.000000e+00> : vector<4x24xf32>
    %365 = tpu.matmul %295, %7, %cst_109 {dimension_numbers = #tpu.dot_dimension_numbers<[1], [0], [0], [1], [0, 0, 1, 1], [], []>} : vector<4x8xf32>, vector<8x24xf32>, vector<4x24xf32> -> vector<4x24xf32>
    %366 = vector.broadcast %9 : vector<1x24xf32> to vector<4x24xf32>
    %367 = arith.addf %365, %366 : vector<4x24xf32>
    %368 = vector.extract_strided_slice %364 {offsets = [0, 0], sizes = [4, 8], strides = [1, 1]} : vector<4x24xf32> to vector<4x8xf32>
    %369 = vector.extract_strided_slice %367 {offsets = [0, 0], sizes = [4, 8], strides = [1, 1]} : vector<4x24xf32> to vector<4x8xf32>
    %370 = arith.addf %368, %369 : vector<4x8xf32>
    %371 = arith.negf %370 : vector<4x8xf32>
    %372 = math.exp %371 : vector<4x8xf32>
    %cst_110 = arith.constant 1.000000e+00 : f32
    %373 = vector.broadcast %cst_110 : f32 to vector<4x8xf32>
    %374 = arith.addf %373, %372 : vector<4x8xf32>
    %375 = arith.divf %373, %374 : vector<4x8xf32>
    %376 = vector.extract_strided_slice %364 {offsets = [0, 8], sizes = [4, 8], strides = [1, 1]} : vector<4x24xf32> to vector<4x8xf32>
    %377 = vector.extract_strided_slice %367 {offsets = [0, 8], sizes = [4, 8], strides = [1, 1]} : vector<4x24xf32> to vector<4x8xf32>
    %378 = arith.addf %376, %377 : vector<4x8xf32>
    %379 = arith.negf %378 : vector<4x8xf32>
    %380 = math.exp %379 : vector<4x8xf32>
    %cst_111 = arith.constant 1.000000e+00 : f32
    %381 = vector.broadcast %cst_111 : f32 to vector<4x8xf32>
    %382 = arith.addf %381, %380 : vector<4x8xf32>
    %383 = arith.divf %381, %382 : vector<4x8xf32>
    %384 = vector.extract_strided_slice %364 {offsets = [0, 16], sizes = [4, 8], strides = [1, 1]} : vector<4x24xf32> to vector<4x8xf32>
    %385 = vector.extract_strided_slice %367 {offsets = [0, 16], sizes = [4, 8], strides = [1, 1]} : vector<4x24xf32> to vector<4x8xf32>
    %386 = arith.mulf %375, %385 : vector<4x8xf32>
    %387 = arith.addf %384, %386 : vector<4x8xf32>
    %388 = math.tanh %387 : vector<4x8xf32>
    %cst_112 = arith.constant 1.000000e+00 : f32
    %389 = vector.broadcast %cst_112 : f32 to vector<4x8xf32>
    %390 = arith.subf %389, %383 : vector<4x8xf32>
    %391 = arith.mulf %390, %388 : vector<4x8xf32>
    %392 = arith.mulf %383, %295 : vector<4x8xf32>
    %393 = arith.addf %391, %392 : vector<4x8xf32>
    %394 = arith.index_cast %c3_i32 : i32 to index
    %c0_113 = arith.constant 0 : index
    %c0_114 = arith.constant 0 : index
    %395 = vector.load %arg12[%394, %c0_113, %c0_114] : memref<8x4x16xf32, #tpu.memory_space<vmem>>, vector<1x4x8xf32>
    %396 = vector.shape_cast %395 : vector<1x4x8xf32> to vector<4x8xf32>
    %397 = vector.shape_cast %348 : vector<4x8xf32> to vector<1x4x8xf32>
    tpu.vector_store %arg12[%394, %c0_113, %c0_114], %397 {strides = array<i32>} : memref<8x4x16xf32, #tpu.memory_space<vmem>>, vector<1x4x8xf32>,
    %c7_i32_115 = arith.constant 7 : i32
    %398 = arith.subi %c7_i32_115, %c3_i32 : i32
    %399 = arith.index_cast %398 : i32 to index
    %c0_116 = arith.constant 0 : index
    %c8_117 = arith.constant 8 : index
    %400 = vector.load %arg12[%399, %c0_116, %c8_117] : memref<8x4x16xf32, #tpu.memory_space<vmem>>, vector<1x4x8xf32>
    %401 = vector.shape_cast %400 : vector<1x4x8xf32> to vector<4x8xf32>
    %402 = vector.shape_cast %393 : vector<4x8xf32> to vector<1x4x8xf32>
    tpu.vector_store %arg12[%399, %c0_116, %c8_117], %402 {strides = array<i32>} : memref<8x4x16xf32, #tpu.memory_space<vmem>>, vector<1x4x8xf32>,
    %c4_i32 = arith.constant 4 : i32
    %403 = arith.index_cast %c4_i32 : i32 to index
    %c0_118 = arith.constant 0 : index
    %c0_119 = arith.constant 0 : index
    %404 = vector.load %arg0[%403, %c0_118, %c0_119] : memref<8x4x1xi32, #tpu.memory_space<vmem>>, vector<1x4x1xi32>
    %405 = vector.shape_cast %404 : vector<1x4x1xi32> to vector<4x1xi32>
    %c32_i32_120 = arith.constant 32 : i32
    %406 = vector.broadcast %c32_i32_120 : i32 to vector<4x1xi32>
    %407 = arith.cmpi sge, %405, %406 : vector<4x1xi32>
    %c1_i32_121 = arith.constant 1 : i32
    %408 = vector.broadcast %c1_i32_121 : i32 to vector<4x1xi32>
    %409 = arith.select %407, %408, %405 : vector<4x1xi1>, vector<4x1xi32>
    %410 = vector.broadcast %409 : vector<4x1xi32> to vector<4x32xi32>
    %411 = arith.cmpi eq, %1, %410 : vector<4x32xi32>
    %412 = arith.extui %411 : vector<4x32xi1> to vector<4x32xi32>
    %413 = arith.sitofp %412 : vector<4x32xi32> to vector<4x32xf32>
    %cst_122 = arith.constant dense<0.000000e+00> : vector<4x16xf32>
    %414 = tpu.matmul %413, %0, %cst_122 {dimension_numbers = #tpu.dot_dimension_numbers<[1], [0], [0], [1], [0, 0, 1, 1], [], []>} : vector<4x32xf32>, vector<32x16xf32>, vector<4x16xf32> -> vector<4x16xf32>
    %cst_123 = arith.constant dense<0.000000e+00> : vector<4x24xf32>
    %415 = tpu.matmul %414, %2, %cst_123 {dimension_numbers = #tpu.dot_dimension_numbers<[1], [0], [0], [1], [0, 0, 1, 1], [], []>} : vector<4x16xf32>, vector<16x24xf32>, vector<4x24xf32> -> vector<4x24xf32>
    %416 = vector.broadcast %4 : vector<1x24xf32> to vector<4x24xf32>
    %417 = arith.addf %415, %416 : vector<4x24xf32>
    %cst_124 = arith.constant dense<0.000000e+00> : vector<4x24xf32>
    %418 = tpu.matmul %348, %3, %cst_124 {dimension_numbers = #tpu.dot_dimension_numbers<[1], [0], [0], [1], [0, 0, 1, 1], [], []>} : vector<4x8xf32>, vector<8x24xf32>, vector<4x24xf32> -> vector<4x24xf32>
    %419 = vector.broadcast %5 : vector<1x24xf32> to vector<4x24xf32>
    %420 = arith.addf %418, %419 : vector<4x24xf32>
    %421 = vector.extract_strided_slice %417 {offsets = [0, 0], sizes = [4, 8], strides = [1, 1]} : vector<4x24xf32> to vector<4x8xf32>
    %422 = vector.extract_strided_slice %420 {offsets = [0, 0], sizes = [4, 8], strides = [1, 1]} : vector<4x24xf32> to vector<4x8xf32>
    %423 = arith.addf %421, %422 : vector<4x8xf32>
    %424 = arith.negf %423 : vector<4x8xf32>
    %425 = math.exp %424 : vector<4x8xf32>
    %cst_125 = arith.constant 1.000000e+00 : f32
    %426 = vector.broadcast %cst_125 : f32 to vector<4x8xf32>
    %427 = arith.addf %426, %425 : vector<4x8xf32>
    %428 = arith.divf %426, %427 : vector<4x8xf32>
    %429 = vector.extract_strided_slice %417 {offsets = [0, 8], sizes = [4, 8], strides = [1, 1]} : vector<4x24xf32> to vector<4x8xf32>
    %430 = vector.extract_strided_slice %420 {offsets = [0, 8], sizes = [4, 8], strides = [1, 1]} : vector<4x24xf32> to vector<4x8xf32>
    %431 = arith.addf %429, %430 : vector<4x8xf32>
    %432 = arith.negf %431 : vector<4x8xf32>
    %433 = math.exp %432 : vector<4x8xf32>
    %cst_126 = arith.constant 1.000000e+00 : f32
    %434 = vector.broadcast %cst_126 : f32 to vector<4x8xf32>
    %435 = arith.addf %434, %433 : vector<4x8xf32>
    %436 = arith.divf %434, %435 : vector<4x8xf32>
    %437 = vector.extract_strided_slice %417 {offsets = [0, 16], sizes = [4, 8], strides = [1, 1]} : vector<4x24xf32> to vector<4x8xf32>
    %438 = vector.extract_strided_slice %420 {offsets = [0, 16], sizes = [4, 8], strides = [1, 1]} : vector<4x24xf32> to vector<4x8xf32>
    %439 = arith.mulf %428, %438 : vector<4x8xf32>
    %440 = arith.addf %437, %439 : vector<4x8xf32>
    %441 = math.tanh %440 : vector<4x8xf32>
    %cst_127 = arith.constant 1.000000e+00 : f32
    %442 = vector.broadcast %cst_127 : f32 to vector<4x8xf32>
    %443 = arith.subf %442, %436 : vector<4x8xf32>
    %444 = arith.mulf %443, %441 : vector<4x8xf32>
    %445 = arith.mulf %436, %348 : vector<4x8xf32>
    %446 = arith.addf %444, %445 : vector<4x8xf32>
    %c7_i32_128 = arith.constant 7 : i32
    %447 = arith.subi %c7_i32_128, %c4_i32 : i32
    %448 = arith.index_cast %447 : i32 to index
    %c0_129 = arith.constant 0 : index
    %c0_130 = arith.constant 0 : index
    %449 = vector.load %arg0[%448, %c0_129, %c0_130] : memref<8x4x1xi32, #tpu.memory_space<vmem>>, vector<1x4x1xi32>
    %450 = vector.shape_cast %449 : vector<1x4x1xi32> to vector<4x1xi32>
    %c32_i32_131 = arith.constant 32 : i32
    %451 = vector.broadcast %c32_i32_131 : i32 to vector<4x1xi32>
    %452 = arith.cmpi sge, %450, %451 : vector<4x1xi32>
    %c1_i32_132 = arith.constant 1 : i32
    %453 = vector.broadcast %c1_i32_132 : i32 to vector<4x1xi32>
    %454 = arith.select %452, %453, %450 : vector<4x1xi1>, vector<4x1xi32>
    %455 = vector.broadcast %454 : vector<4x1xi32> to vector<4x32xi32>
    %456 = arith.cmpi eq, %1, %455 : vector<4x32xi32>
    %457 = arith.extui %456 : vector<4x32xi1> to vector<4x32xi32>
    %458 = arith.sitofp %457 : vector<4x32xi32> to vector<4x32xf32>
    %cst_133 = arith.constant dense<0.000000e+00> : vector<4x16xf32>
    %459 = tpu.matmul %458, %0, %cst_133 {dimension_numbers = #tpu.dot_dimension_numbers<[1], [0], [0], [1], [0, 0, 1, 1], [], []>} : vector<4x32xf32>, vector<32x16xf32>, vector<4x16xf32> -> vector<4x16xf32>
    %cst_134 = arith.constant dense<0.000000e+00> : vector<4x24xf32>
    %460 = tpu.matmul %459, %6, %cst_134 {dimension_numbers = #tpu.dot_dimension_numbers<[1], [0], [0], [1], [0, 0, 1, 1], [], []>} : vector<4x16xf32>, vector<16x24xf32>, vector<4x24xf32> -> vector<4x24xf32>
    %461 = vector.broadcast %8 : vector<1x24xf32> to vector<4x24xf32>
    %462 = arith.addf %460, %461 : vector<4x24xf32>
    %cst_135 = arith.constant dense<0.000000e+00> : vector<4x24xf32>
    %463 = tpu.matmul %393, %7, %cst_135 {dimension_numbers = #tpu.dot_dimension_numbers<[1], [0], [0], [1], [0, 0, 1, 1], [], []>} : vector<4x8xf32>, vector<8x24xf32>, vector<4x24xf32> -> vector<4x24xf32>
    %464 = vector.broadcast %9 : vector<1x24xf32> to vector<4x24xf32>
    %465 = arith.addf %463, %464 : vector<4x24xf32>
    %466 = vector.extract_strided_slice %462 {offsets = [0, 0], sizes = [4, 8], strides = [1, 1]} : vector<4x24xf32> to vector<4x8xf32>
    %467 = vector.extract_strided_slice %465 {offsets = [0, 0], sizes = [4, 8], strides = [1, 1]} : vector<4x24xf32> to vector<4x8xf32>
    %468 = arith.addf %466, %467 : vector<4x8xf32>
    %469 = arith.negf %468 : vector<4x8xf32>
    %470 = math.exp %469 : vector<4x8xf32>
    %cst_136 = arith.constant 1.000000e+00 : f32
    %471 = vector.broadcast %cst_136 : f32 to vector<4x8xf32>
    %472 = arith.addf %471, %470 : vector<4x8xf32>
    %473 = arith.divf %471, %472 : vector<4x8xf32>
    %474 = vector.extract_strided_slice %462 {offsets = [0, 8], sizes = [4, 8], strides = [1, 1]} : vector<4x24xf32> to vector<4x8xf32>
    %475 = vector.extract_strided_slice %465 {offsets = [0, 8], sizes = [4, 8], strides = [1, 1]} : vector<4x24xf32> to vector<4x8xf32>
    %476 = arith.addf %474, %475 : vector<4x8xf32>
    %477 = arith.negf %476 : vector<4x8xf32>
    %478 = math.exp %477 : vector<4x8xf32>
    %cst_137 = arith.constant 1.000000e+00 : f32
    %479 = vector.broadcast %cst_137 : f32 to vector<4x8xf32>
    %480 = arith.addf %479, %478 : vector<4x8xf32>
    %481 = arith.divf %479, %480 : vector<4x8xf32>
    %482 = vector.extract_strided_slice %462 {offsets = [0, 16], sizes = [4, 8], strides = [1, 1]} : vector<4x24xf32> to vector<4x8xf32>
    %483 = vector.extract_strided_slice %465 {offsets = [0, 16], sizes = [4, 8], strides = [1, 1]} : vector<4x24xf32> to vector<4x8xf32>
    %484 = arith.mulf %473, %483 : vector<4x8xf32>
    %485 = arith.addf %482, %484 : vector<4x8xf32>
    %486 = math.tanh %485 : vector<4x8xf32>
    %cst_138 = arith.constant 1.000000e+00 : f32
    %487 = vector.broadcast %cst_138 : f32 to vector<4x8xf32>
    %488 = arith.subf %487, %481 : vector<4x8xf32>
    %489 = arith.mulf %488, %486 : vector<4x8xf32>
    %490 = arith.mulf %481, %393 : vector<4x8xf32>
    %491 = arith.addf %489, %490 : vector<4x8xf32>
    %492 = arith.index_cast %c4_i32 : i32 to index
    %c0_139 = arith.constant 0 : index
    %c0_140 = arith.constant 0 : index
    %493 = vector.load %arg12[%492, %c0_139, %c0_140] : memref<8x4x16xf32, #tpu.memory_space<vmem>>, vector<1x4x8xf32>
    %494 = vector.shape_cast %493 : vector<1x4x8xf32> to vector<4x8xf32>
    %495 = vector.shape_cast %446 : vector<4x8xf32> to vector<1x4x8xf32>
    tpu.vector_store %arg12[%492, %c0_139, %c0_140], %495 {strides = array<i32>} : memref<8x4x16xf32, #tpu.memory_space<vmem>>, vector<1x4x8xf32>,
    %c7_i32_141 = arith.constant 7 : i32
    %496 = arith.subi %c7_i32_141, %c4_i32 : i32
    %497 = arith.index_cast %496 : i32 to index
    %c0_142 = arith.constant 0 : index
    %c8_143 = arith.constant 8 : index
    %498 = vector.load %arg12[%497, %c0_142, %c8_143] : memref<8x4x16xf32, #tpu.memory_space<vmem>>, vector<1x4x8xf32>
    %499 = vector.shape_cast %498 : vector<1x4x8xf32> to vector<4x8xf32>
    %500 = vector.shape_cast %491 : vector<4x8xf32> to vector<1x4x8xf32>
    tpu.vector_store %arg12[%497, %c0_142, %c8_143], %500 {strides = array<i32>} : memref<8x4x16xf32, #tpu.memory_space<vmem>>, vector<1x4x8xf32>,
    %c5_i32 = arith.constant 5 : i32
    %501 = arith.index_cast %c5_i32 : i32 to index
    %c0_144 = arith.constant 0 : index
    %c0_145 = arith.constant 0 : index
    %502 = vector.load %arg0[%501, %c0_144, %c0_145] : memref<8x4x1xi32, #tpu.memory_space<vmem>>, vector<1x4x1xi32>
    %503 = vector.shape_cast %502 : vector<1x4x1xi32> to vector<4x1xi32>
    %c32_i32_146 = arith.constant 32 : i32
    %504 = vector.broadcast %c32_i32_146 : i32 to vector<4x1xi32>
    %505 = arith.cmpi sge, %503, %504 : vector<4x1xi32>
    %c1_i32_147 = arith.constant 1 : i32
    %506 = vector.broadcast %c1_i32_147 : i32 to vector<4x1xi32>
    %507 = arith.select %505, %506, %503 : vector<4x1xi1>, vector<4x1xi32>
    %508 = vector.broadcast %507 : vector<4x1xi32> to vector<4x32xi32>
    %509 = arith.cmpi eq, %1, %508 : vector<4x32xi32>
    %510 = arith.extui %509 : vector<4x32xi1> to vector<4x32xi32>
    %511 = arith.sitofp %510 : vector<4x32xi32> to vector<4x32xf32>
    %cst_148 = arith.constant dense<0.000000e+00> : vector<4x16xf32>
    %512 = tpu.matmul %511, %0, %cst_148 {dimension_numbers = #tpu.dot_dimension_numbers<[1], [0], [0], [1], [0, 0, 1, 1], [], []>} : vector<4x32xf32>, vector<32x16xf32>, vector<4x16xf32> -> vector<4x16xf32>
    %cst_149 = arith.constant dense<0.000000e+00> : vector<4x24xf32>
    %513 = tpu.matmul %512, %2, %cst_149 {dimension_numbers = #tpu.dot_dimension_numbers<[1], [0], [0], [1], [0, 0, 1, 1], [], []>} : vector<4x16xf32>, vector<16x24xf32>, vector<4x24xf32> -> vector<4x24xf32>
    %514 = vector.broadcast %4 : vector<1x24xf32> to vector<4x24xf32>
    %515 = arith.addf %513, %514 : vector<4x24xf32>
    %cst_150 = arith.constant dense<0.000000e+00> : vector<4x24xf32>
    %516 = tpu.matmul %446, %3, %cst_150 {dimension_numbers = #tpu.dot_dimension_numbers<[1], [0], [0], [1], [0, 0, 1, 1], [], []>} : vector<4x8xf32>, vector<8x24xf32>, vector<4x24xf32> -> vector<4x24xf32>
    %517 = vector.broadcast %5 : vector<1x24xf32> to vector<4x24xf32>
    %518 = arith.addf %516, %517 : vector<4x24xf32>
    %519 = vector.extract_strided_slice %515 {offsets = [0, 0], sizes = [4, 8], strides = [1, 1]} : vector<4x24xf32> to vector<4x8xf32>
    %520 = vector.extract_strided_slice %518 {offsets = [0, 0], sizes = [4, 8], strides = [1, 1]} : vector<4x24xf32> to vector<4x8xf32>
    %521 = arith.addf %519, %520 : vector<4x8xf32>
    %522 = arith.negf %521 : vector<4x8xf32>
    %523 = math.exp %522 : vector<4x8xf32>
    %cst_151 = arith.constant 1.000000e+00 : f32
    %524 = vector.broadcast %cst_151 : f32 to vector<4x8xf32>
    %525 = arith.addf %524, %523 : vector<4x8xf32>
    %526 = arith.divf %524, %525 : vector<4x8xf32>
    %527 = vector.extract_strided_slice %515 {offsets = [0, 8], sizes = [4, 8], strides = [1, 1]} : vector<4x24xf32> to vector<4x8xf32>
    %528 = vector.extract_strided_slice %518 {offsets = [0, 8], sizes = [4, 8], strides = [1, 1]} : vector<4x24xf32> to vector<4x8xf32>
    %529 = arith.addf %527, %528 : vector<4x8xf32>
    %530 = arith.negf %529 : vector<4x8xf32>
    %531 = math.exp %530 : vector<4x8xf32>
    %cst_152 = arith.constant 1.000000e+00 : f32
    %532 = vector.broadcast %cst_152 : f32 to vector<4x8xf32>
    %533 = arith.addf %532, %531 : vector<4x8xf32>
    %534 = arith.divf %532, %533 : vector<4x8xf32>
    %535 = vector.extract_strided_slice %515 {offsets = [0, 16], sizes = [4, 8], strides = [1, 1]} : vector<4x24xf32> to vector<4x8xf32>
    %536 = vector.extract_strided_slice %518 {offsets = [0, 16], sizes = [4, 8], strides = [1, 1]} : vector<4x24xf32> to vector<4x8xf32>
    %537 = arith.mulf %526, %536 : vector<4x8xf32>
    %538 = arith.addf %535, %537 : vector<4x8xf32>
    %539 = math.tanh %538 : vector<4x8xf32>
    %cst_153 = arith.constant 1.000000e+00 : f32
    %540 = vector.broadcast %cst_153 : f32 to vector<4x8xf32>
    %541 = arith.subf %540, %534 : vector<4x8xf32>
    %542 = arith.mulf %541, %539 : vector<4x8xf32>
    %543 = arith.mulf %534, %446 : vector<4x8xf32>
    %544 = arith.addf %542, %543 : vector<4x8xf32>
    %c7_i32_154 = arith.constant 7 : i32
    %545 = arith.subi %c7_i32_154, %c5_i32 : i32
    %546 = arith.index_cast %545 : i32 to index
    %c0_155 = arith.constant 0 : index
    %c0_156 = arith.constant 0 : index
    %547 = vector.load %arg0[%546, %c0_155, %c0_156] : memref<8x4x1xi32, #tpu.memory_space<vmem>>, vector<1x4x1xi32>
    %548 = vector.shape_cast %547 : vector<1x4x1xi32> to vector<4x1xi32>
    %c32_i32_157 = arith.constant 32 : i32
    %549 = vector.broadcast %c32_i32_157 : i32 to vector<4x1xi32>
    %550 = arith.cmpi sge, %548, %549 : vector<4x1xi32>
    %c1_i32_158 = arith.constant 1 : i32
    %551 = vector.broadcast %c1_i32_158 : i32 to vector<4x1xi32>
    %552 = arith.select %550, %551, %548 : vector<4x1xi1>, vector<4x1xi32>
    %553 = vector.broadcast %552 : vector<4x1xi32> to vector<4x32xi32>
    %554 = arith.cmpi eq, %1, %553 : vector<4x32xi32>
    %555 = arith.extui %554 : vector<4x32xi1> to vector<4x32xi32>
    %556 = arith.sitofp %555 : vector<4x32xi32> to vector<4x32xf32>
    %cst_159 = arith.constant dense<0.000000e+00> : vector<4x16xf32>
    %557 = tpu.matmul %556, %0, %cst_159 {dimension_numbers = #tpu.dot_dimension_numbers<[1], [0], [0], [1], [0, 0, 1, 1], [], []>} : vector<4x32xf32>, vector<32x16xf32>, vector<4x16xf32> -> vector<4x16xf32>
    %cst_160 = arith.constant dense<0.000000e+00> : vector<4x24xf32>
    %558 = tpu.matmul %557, %6, %cst_160 {dimension_numbers = #tpu.dot_dimension_numbers<[1], [0], [0], [1], [0, 0, 1, 1], [], []>} : vector<4x16xf32>, vector<16x24xf32>, vector<4x24xf32> -> vector<4x24xf32>
    %559 = vector.broadcast %8 : vector<1x24xf32> to vector<4x24xf32>
    %560 = arith.addf %558, %559 : vector<4x24xf32>
    %cst_161 = arith.constant dense<0.000000e+00> : vector<4x24xf32>
    %561 = tpu.matmul %491, %7, %cst_161 {dimension_numbers = #tpu.dot_dimension_numbers<[1], [0], [0], [1], [0, 0, 1, 1], [], []>} : vector<4x8xf32>, vector<8x24xf32>, vector<4x24xf32> -> vector<4x24xf32>
    %562 = vector.broadcast %9 : vector<1x24xf32> to vector<4x24xf32>
    %563 = arith.addf %561, %562 : vector<4x24xf32>
    %564 = vector.extract_strided_slice %560 {offsets = [0, 0], sizes = [4, 8], strides = [1, 1]} : vector<4x24xf32> to vector<4x8xf32>
    %565 = vector.extract_strided_slice %563 {offsets = [0, 0], sizes = [4, 8], strides = [1, 1]} : vector<4x24xf32> to vector<4x8xf32>
    %566 = arith.addf %564, %565 : vector<4x8xf32>
    %567 = arith.negf %566 : vector<4x8xf32>
    %568 = math.exp %567 : vector<4x8xf32>
    %cst_162 = arith.constant 1.000000e+00 : f32
    %569 = vector.broadcast %cst_162 : f32 to vector<4x8xf32>
    %570 = arith.addf %569, %568 : vector<4x8xf32>
    %571 = arith.divf %569, %570 : vector<4x8xf32>
    %572 = vector.extract_strided_slice %560 {offsets = [0, 8], sizes = [4, 8], strides = [1, 1]} : vector<4x24xf32> to vector<4x8xf32>
    %573 = vector.extract_strided_slice %563 {offsets = [0, 8], sizes = [4, 8], strides = [1, 1]} : vector<4x24xf32> to vector<4x8xf32>
    %574 = arith.addf %572, %573 : vector<4x8xf32>
    %575 = arith.negf %574 : vector<4x8xf32>
    %576 = math.exp %575 : vector<4x8xf32>
    %cst_163 = arith.constant 1.000000e+00 : f32
    %577 = vector.broadcast %cst_163 : f32 to vector<4x8xf32>
    %578 = arith.addf %577, %576 : vector<4x8xf32>
    %579 = arith.divf %577, %578 : vector<4x8xf32>
    %580 = vector.extract_strided_slice %560 {offsets = [0, 16], sizes = [4, 8], strides = [1, 1]} : vector<4x24xf32> to vector<4x8xf32>
    %581 = vector.extract_strided_slice %563 {offsets = [0, 16], sizes = [4, 8], strides = [1, 1]} : vector<4x24xf32> to vector<4x8xf32>
    %582 = arith.mulf %571, %581 : vector<4x8xf32>
    %583 = arith.addf %580, %582 : vector<4x8xf32>
    %584 = math.tanh %583 : vector<4x8xf32>
    %cst_164 = arith.constant 1.000000e+00 : f32
    %585 = vector.broadcast %cst_164 : f32 to vector<4x8xf32>
    %586 = arith.subf %585, %579 : vector<4x8xf32>
    %587 = arith.mulf %586, %584 : vector<4x8xf32>
    %588 = arith.mulf %579, %491 : vector<4x8xf32>
    %589 = arith.addf %587, %588 : vector<4x8xf32>
    %590 = arith.index_cast %c5_i32 : i32 to index
    %c0_165 = arith.constant 0 : index
    %c0_166 = arith.constant 0 : index
    %591 = vector.load %arg12[%590, %c0_165, %c0_166] : memref<8x4x16xf32, #tpu.memory_space<vmem>>, vector<1x4x8xf32>
    %592 = vector.shape_cast %591 : vector<1x4x8xf32> to vector<4x8xf32>
    %593 = vector.shape_cast %544 : vector<4x8xf32> to vector<1x4x8xf32>
    tpu.vector_store %arg12[%590, %c0_165, %c0_166], %593 {strides = array<i32>} : memref<8x4x16xf32, #tpu.memory_space<vmem>>, vector<1x4x8xf32>,
    %c7_i32_167 = arith.constant 7 : i32
    %594 = arith.subi %c7_i32_167, %c5_i32 : i32
    %595 = arith.index_cast %594 : i32 to index
    %c0_168 = arith.constant 0 : index
    %c8_169 = arith.constant 8 : index
    %596 = vector.load %arg12[%595, %c0_168, %c8_169] : memref<8x4x16xf32, #tpu.memory_space<vmem>>, vector<1x4x8xf32>
    %597 = vector.shape_cast %596 : vector<1x4x8xf32> to vector<4x8xf32>
    %598 = vector.shape_cast %589 : vector<4x8xf32> to vector<1x4x8xf32>
    tpu.vector_store %arg12[%595, %c0_168, %c8_169], %598 {strides = array<i32>} : memref<8x4x16xf32, #tpu.memory_space<vmem>>, vector<1x4x8xf32>,
    %c6_i32 = arith.constant 6 : i32
    %599 = arith.index_cast %c6_i32 : i32 to index
    %c0_170 = arith.constant 0 : index
    %c0_171 = arith.constant 0 : index
    %600 = vector.load %arg0[%599, %c0_170, %c0_171] : memref<8x4x1xi32, #tpu.memory_space<vmem>>, vector<1x4x1xi32>
    %601 = vector.shape_cast %600 : vector<1x4x1xi32> to vector<4x1xi32>
    %c32_i32_172 = arith.constant 32 : i32
    %602 = vector.broadcast %c32_i32_172 : i32 to vector<4x1xi32>
    %603 = arith.cmpi sge, %601, %602 : vector<4x1xi32>
    %c1_i32_173 = arith.constant 1 : i32
    %604 = vector.broadcast %c1_i32_173 : i32 to vector<4x1xi32>
    %605 = arith.select %603, %604, %601 : vector<4x1xi1>, vector<4x1xi32>
    %606 = vector.broadcast %605 : vector<4x1xi32> to vector<4x32xi32>
    %607 = arith.cmpi eq, %1, %606 : vector<4x32xi32>
    %608 = arith.extui %607 : vector<4x32xi1> to vector<4x32xi32>
    %609 = arith.sitofp %608 : vector<4x32xi32> to vector<4x32xf32>
    %cst_174 = arith.constant dense<0.000000e+00> : vector<4x16xf32>
    %610 = tpu.matmul %609, %0, %cst_174 {dimension_numbers = #tpu.dot_dimension_numbers<[1], [0], [0], [1], [0, 0, 1, 1], [], []>} : vector<4x32xf32>, vector<32x16xf32>, vector<4x16xf32> -> vector<4x16xf32>
    %cst_175 = arith.constant dense<0.000000e+00> : vector<4x24xf32>
    %611 = tpu.matmul %610, %2, %cst_175 {dimension_numbers = #tpu.dot_dimension_numbers<[1], [0], [0], [1], [0, 0, 1, 1], [], []>} : vector<4x16xf32>, vector<16x24xf32>, vector<4x24xf32> -> vector<4x24xf32>
    %612 = vector.broadcast %4 : vector<1x24xf32> to vector<4x24xf32>
    %613 = arith.addf %611, %612 : vector<4x24xf32>
    %cst_176 = arith.constant dense<0.000000e+00> : vector<4x24xf32>
    %614 = tpu.matmul %544, %3, %cst_176 {dimension_numbers = #tpu.dot_dimension_numbers<[1], [0], [0], [1], [0, 0, 1, 1], [], []>} : vector<4x8xf32>, vector<8x24xf32>, vector<4x24xf32> -> vector<4x24xf32>
    %615 = vector.broadcast %5 : vector<1x24xf32> to vector<4x24xf32>
    %616 = arith.addf %614, %615 : vector<4x24xf32>
    %617 = vector.extract_strided_slice %613 {offsets = [0, 0], sizes = [4, 8], strides = [1, 1]} : vector<4x24xf32> to vector<4x8xf32>
    %618 = vector.extract_strided_slice %616 {offsets = [0, 0], sizes = [4, 8], strides = [1, 1]} : vector<4x24xf32> to vector<4x8xf32>
    %619 = arith.addf %617, %618 : vector<4x8xf32>
    %620 = arith.negf %619 : vector<4x8xf32>
    %621 = math.exp %620 : vector<4x8xf32>
    %cst_177 = arith.constant 1.000000e+00 : f32
    %622 = vector.broadcast %cst_177 : f32 to vector<4x8xf32>
    %623 = arith.addf %622, %621 : vector<4x8xf32>
    %624 = arith.divf %622, %623 : vector<4x8xf32>
    %625 = vector.extract_strided_slice %613 {offsets = [0, 8], sizes = [4, 8], strides = [1, 1]} : vector<4x24xf32> to vector<4x8xf32>
    %626 = vector.extract_strided_slice %616 {offsets = [0, 8], sizes = [4, 8], strides = [1, 1]} : vector<4x24xf32> to vector<4x8xf32>
    %627 = arith.addf %625, %626 : vector<4x8xf32>
    %628 = arith.negf %627 : vector<4x8xf32>
    %629 = math.exp %628 : vector<4x8xf32>
    %cst_178 = arith.constant 1.000000e+00 : f32
    %630 = vector.broadcast %cst_178 : f32 to vector<4x8xf32>
    %631 = arith.addf %630, %629 : vector<4x8xf32>
    %632 = arith.divf %630, %631 : vector<4x8xf32>
    %633 = vector.extract_strided_slice %613 {offsets = [0, 16], sizes = [4, 8], strides = [1, 1]} : vector<4x24xf32> to vector<4x8xf32>
    %634 = vector.extract_strided_slice %616 {offsets = [0, 16], sizes = [4, 8], strides = [1, 1]} : vector<4x24xf32> to vector<4x8xf32>
    %635 = arith.mulf %624, %634 : vector<4x8xf32>
    %636 = arith.addf %633, %635 : vector<4x8xf32>
    %637 = math.tanh %636 : vector<4x8xf32>
    %cst_179 = arith.constant 1.000000e+00 : f32
    %638 = vector.broadcast %cst_179 : f32 to vector<4x8xf32>
    %639 = arith.subf %638, %632 : vector<4x8xf32>
    %640 = arith.mulf %639, %637 : vector<4x8xf32>
    %641 = arith.mulf %632, %544 : vector<4x8xf32>
    %642 = arith.addf %640, %641 : vector<4x8xf32>
    %c7_i32_180 = arith.constant 7 : i32
    %643 = arith.subi %c7_i32_180, %c6_i32 : i32
    %644 = arith.index_cast %643 : i32 to index
    %c0_181 = arith.constant 0 : index
    %c0_182 = arith.constant 0 : index
    %645 = vector.load %arg0[%644, %c0_181, %c0_182] : memref<8x4x1xi32, #tpu.memory_space<vmem>>, vector<1x4x1xi32>
    %646 = vector.shape_cast %645 : vector<1x4x1xi32> to vector<4x1xi32>
    %c32_i32_183 = arith.constant 32 : i32
    %647 = vector.broadcast %c32_i32_183 : i32 to vector<4x1xi32>
    %648 = arith.cmpi sge, %646, %647 : vector<4x1xi32>
    %c1_i32_184 = arith.constant 1 : i32
    %649 = vector.broadcast %c1_i32_184 : i32 to vector<4x1xi32>
    %650 = arith.select %648, %649, %646 : vector<4x1xi1>, vector<4x1xi32>
    %651 = vector.broadcast %650 : vector<4x1xi32> to vector<4x32xi32>
    %652 = arith.cmpi eq, %1, %651 : vector<4x32xi32>
    %653 = arith.extui %652 : vector<4x32xi1> to vector<4x32xi32>
    %654 = arith.sitofp %653 : vector<4x32xi32> to vector<4x32xf32>
    %cst_185 = arith.constant dense<0.000000e+00> : vector<4x16xf32>
    %655 = tpu.matmul %654, %0, %cst_185 {dimension_numbers = #tpu.dot_dimension_numbers<[1], [0], [0], [1], [0, 0, 1, 1], [], []>} : vector<4x32xf32>, vector<32x16xf32>, vector<4x16xf32> -> vector<4x16xf32>
    %cst_186 = arith.constant dense<0.000000e+00> : vector<4x24xf32>
    %656 = tpu.matmul %655, %6, %cst_186 {dimension_numbers = #tpu.dot_dimension_numbers<[1], [0], [0], [1], [0, 0, 1, 1], [], []>} : vector<4x16xf32>, vector<16x24xf32>, vector<4x24xf32> -> vector<4x24xf32>
    %657 = vector.broadcast %8 : vector<1x24xf32> to vector<4x24xf32>
    %658 = arith.addf %656, %657 : vector<4x24xf32>
    %cst_187 = arith.constant dense<0.000000e+00> : vector<4x24xf32>
    %659 = tpu.matmul %589, %7, %cst_187 {dimension_numbers = #tpu.dot_dimension_numbers<[1], [0], [0], [1], [0, 0, 1, 1], [], []>} : vector<4x8xf32>, vector<8x24xf32>, vector<4x24xf32> -> vector<4x24xf32>
    %660 = vector.broadcast %9 : vector<1x24xf32> to vector<4x24xf32>
    %661 = arith.addf %659, %660 : vector<4x24xf32>
    %662 = vector.extract_strided_slice %658 {offsets = [0, 0], sizes = [4, 8], strides = [1, 1]} : vector<4x24xf32> to vector<4x8xf32>
    %663 = vector.extract_strided_slice %661 {offsets = [0, 0], sizes = [4, 8], strides = [1, 1]} : vector<4x24xf32> to vector<4x8xf32>
    %664 = arith.addf %662, %663 : vector<4x8xf32>
    %665 = arith.negf %664 : vector<4x8xf32>
    %666 = math.exp %665 : vector<4x8xf32>
    %cst_188 = arith.constant 1.000000e+00 : f32
    %667 = vector.broadcast %cst_188 : f32 to vector<4x8xf32>
    %668 = arith.addf %667, %666 : vector<4x8xf32>
    %669 = arith.divf %667, %668 : vector<4x8xf32>
    %670 = vector.extract_strided_slice %658 {offsets = [0, 8], sizes = [4, 8], strides = [1, 1]} : vector<4x24xf32> to vector<4x8xf32>
    %671 = vector.extract_strided_slice %661 {offsets = [0, 8], sizes = [4, 8], strides = [1, 1]} : vector<4x24xf32> to vector<4x8xf32>
    %672 = arith.addf %670, %671 : vector<4x8xf32>
    %673 = arith.negf %672 : vector<4x8xf32>
    %674 = math.exp %673 : vector<4x8xf32>
    %cst_189 = arith.constant 1.000000e+00 : f32
    %675 = vector.broadcast %cst_189 : f32 to vector<4x8xf32>
    %676 = arith.addf %675, %674 : vector<4x8xf32>
    %677 = arith.divf %675, %676 : vector<4x8xf32>
    %678 = vector.extract_strided_slice %658 {offsets = [0, 16], sizes = [4, 8], strides = [1, 1]} : vector<4x24xf32> to vector<4x8xf32>
    %679 = vector.extract_strided_slice %661 {offsets = [0, 16], sizes = [4, 8], strides = [1, 1]} : vector<4x24xf32> to vector<4x8xf32>
    %680 = arith.mulf %669, %679 : vector<4x8xf32>
    %681 = arith.addf %678, %680 : vector<4x8xf32>
    %682 = math.tanh %681 : vector<4x8xf32>
    %cst_190 = arith.constant 1.000000e+00 : f32
    %683 = vector.broadcast %cst_190 : f32 to vector<4x8xf32>
    %684 = arith.subf %683, %677 : vector<4x8xf32>
    %685 = arith.mulf %684, %682 : vector<4x8xf32>
    %686 = arith.mulf %677, %589 : vector<4x8xf32>
    %687 = arith.addf %685, %686 : vector<4x8xf32>
    %688 = arith.index_cast %c6_i32 : i32 to index
    %c0_191 = arith.constant 0 : index
    %c0_192 = arith.constant 0 : index
    %689 = vector.load %arg12[%688, %c0_191, %c0_192] : memref<8x4x16xf32, #tpu.memory_space<vmem>>, vector<1x4x8xf32>
    %690 = vector.shape_cast %689 : vector<1x4x8xf32> to vector<4x8xf32>
    %691 = vector.shape_cast %642 : vector<4x8xf32> to vector<1x4x8xf32>
    tpu.vector_store %arg12[%688, %c0_191, %c0_192], %691 {strides = array<i32>} : memref<8x4x16xf32, #tpu.memory_space<vmem>>, vector<1x4x8xf32>,
    %c7_i32_193 = arith.constant 7 : i32
    %692 = arith.subi %c7_i32_193, %c6_i32 : i32
    %693 = arith.index_cast %692 : i32 to index
    %c0_194 = arith.constant 0 : index
    %c8_195 = arith.constant 8 : index
    %694 = vector.load %arg12[%693, %c0_194, %c8_195] : memref<8x4x16xf32, #tpu.memory_space<vmem>>, vector<1x4x8xf32>
    %695 = vector.shape_cast %694 : vector<1x4x8xf32> to vector<4x8xf32>
    %696 = vector.shape_cast %687 : vector<4x8xf32> to vector<1x4x8xf32>
    tpu.vector_store %arg12[%693, %c0_194, %c8_195], %696 {strides = array<i32>} : memref<8x4x16xf32, #tpu.memory_space<vmem>>, vector<1x4x8xf32>,
    %c7_i32_196 = arith.constant 7 : i32
    %697 = arith.index_cast %c7_i32_196 : i32 to index
    %c0_197 = arith.constant 0 : index
    %c0_198 = arith.constant 0 : index
    %698 = vector.load %arg0[%697, %c0_197, %c0_198] : memref<8x4x1xi32, #tpu.memory_space<vmem>>, vector<1x4x1xi32>
    %699 = vector.shape_cast %698 : vector<1x4x1xi32> to vector<4x1xi32>
    %c32_i32_199 = arith.constant 32 : i32
    %700 = vector.broadcast %c32_i32_199 : i32 to vector<4x1xi32>
    %701 = arith.cmpi sge, %699, %700 : vector<4x1xi32>
    %c1_i32_200 = arith.constant 1 : i32
    %702 = vector.broadcast %c1_i32_200 : i32 to vector<4x1xi32>
    %703 = arith.select %701, %702, %699 : vector<4x1xi1>, vector<4x1xi32>
    %704 = vector.broadcast %703 : vector<4x1xi32> to vector<4x32xi32>
    %705 = arith.cmpi eq, %1, %704 : vector<4x32xi32>
    %706 = arith.extui %705 : vector<4x32xi1> to vector<4x32xi32>
    %707 = arith.sitofp %706 : vector<4x32xi32> to vector<4x32xf32>
    %cst_201 = arith.constant dense<0.000000e+00> : vector<4x16xf32>
    %708 = tpu.matmul %707, %0, %cst_201 {dimension_numbers = #tpu.dot_dimension_numbers<[1], [0], [0], [1], [0, 0, 1, 1], [], []>} : vector<4x32xf32>, vector<32x16xf32>, vector<4x16xf32> -> vector<4x16xf32>
    %cst_202 = arith.constant dense<0.000000e+00> : vector<4x24xf32>
    %709 = tpu.matmul %708, %2, %cst_202 {dimension_numbers = #tpu.dot_dimension_numbers<[1], [0], [0], [1], [0, 0, 1, 1], [], []>} : vector<4x16xf32>, vector<16x24xf32>, vector<4x24xf32> -> vector<4x24xf32>
    %710 = vector.broadcast %4 : vector<1x24xf32> to vector<4x24xf32>
    %711 = arith.addf %709, %710 : vector<4x24xf32>
    %cst_203 = arith.constant dense<0.000000e+00> : vector<4x24xf32>
    %712 = tpu.matmul %642, %3, %cst_203 {dimension_numbers = #tpu.dot_dimension_numbers<[1], [0], [0], [1], [0, 0, 1, 1], [], []>} : vector<4x8xf32>, vector<8x24xf32>, vector<4x24xf32> -> vector<4x24xf32>
    %713 = vector.broadcast %5 : vector<1x24xf32> to vector<4x24xf32>
    %714 = arith.addf %712, %713 : vector<4x24xf32>
    %715 = vector.extract_strided_slice %711 {offsets = [0, 0], sizes = [4, 8], strides = [1, 1]} : vector<4x24xf32> to vector<4x8xf32>
    %716 = vector.extract_strided_slice %714 {offsets = [0, 0], sizes = [4, 8], strides = [1, 1]} : vector<4x24xf32> to vector<4x8xf32>
    %717 = arith.addf %715, %716 : vector<4x8xf32>
    %718 = arith.negf %717 : vector<4x8xf32>
    %719 = math.exp %718 : vector<4x8xf32>
    %cst_204 = arith.constant 1.000000e+00 : f32
    %720 = vector.broadcast %cst_204 : f32 to vector<4x8xf32>
    %721 = arith.addf %720, %719 : vector<4x8xf32>
    %722 = arith.divf %720, %721 : vector<4x8xf32>
    %723 = vector.extract_strided_slice %711 {offsets = [0, 8], sizes = [4, 8], strides = [1, 1]} : vector<4x24xf32> to vector<4x8xf32>
    %724 = vector.extract_strided_slice %714 {offsets = [0, 8], sizes = [4, 8], strides = [1, 1]} : vector<4x24xf32> to vector<4x8xf32>
    %725 = arith.addf %723, %724 : vector<4x8xf32>
    %726 = arith.negf %725 : vector<4x8xf32>
    %727 = math.exp %726 : vector<4x8xf32>
    %cst_205 = arith.constant 1.000000e+00 : f32
    %728 = vector.broadcast %cst_205 : f32 to vector<4x8xf32>
    %729 = arith.addf %728, %727 : vector<4x8xf32>
    %730 = arith.divf %728, %729 : vector<4x8xf32>
    %731 = vector.extract_strided_slice %711 {offsets = [0, 16], sizes = [4, 8], strides = [1, 1]} : vector<4x24xf32> to vector<4x8xf32>
    %732 = vector.extract_strided_slice %714 {offsets = [0, 16], sizes = [4, 8], strides = [1, 1]} : vector<4x24xf32> to vector<4x8xf32>
    %733 = arith.mulf %722, %732 : vector<4x8xf32>
    %734 = arith.addf %731, %733 : vector<4x8xf32>
    %735 = math.tanh %734 : vector<4x8xf32>
    %cst_206 = arith.constant 1.000000e+00 : f32
    %736 = vector.broadcast %cst_206 : f32 to vector<4x8xf32>
    %737 = arith.subf %736, %730 : vector<4x8xf32>
    %738 = arith.mulf %737, %735 : vector<4x8xf32>
    %739 = arith.mulf %730, %642 : vector<4x8xf32>
    %740 = arith.addf %738, %739 : vector<4x8xf32>
    %c7_i32_207 = arith.constant 7 : i32
    %741 = arith.subi %c7_i32_207, %c7_i32_196 : i32
    %742 = arith.index_cast %741 : i32 to index
    %c0_208 = arith.constant 0 : index
    %c0_209 = arith.constant 0 : index
    %743 = vector.load %arg0[%742, %c0_208, %c0_209] : memref<8x4x1xi32, #tpu.memory_space<vmem>>, vector<1x4x1xi32>
    %744 = vector.shape_cast %743 : vector<1x4x1xi32> to vector<4x1xi32>
    %c32_i32_210 = arith.constant 32 : i32
    %745 = vector.broadcast %c32_i32_210 : i32 to vector<4x1xi32>
    %746 = arith.cmpi sge, %744, %745 : vector<4x1xi32>
    %c1_i32_211 = arith.constant 1 : i32
    %747 = vector.broadcast %c1_i32_211 : i32 to vector<4x1xi32>
    %748 = arith.select %746, %747, %744 : vector<4x1xi1>, vector<4x1xi32>
    %749 = vector.broadcast %748 : vector<4x1xi32> to vector<4x32xi32>
    %750 = arith.cmpi eq, %1, %749 : vector<4x32xi32>
    %751 = arith.extui %750 : vector<4x32xi1> to vector<4x32xi32>
    %752 = arith.sitofp %751 : vector<4x32xi32> to vector<4x32xf32>
    %cst_212 = arith.constant dense<0.000000e+00> : vector<4x16xf32>
    %753 = tpu.matmul %752, %0, %cst_212 {dimension_numbers = #tpu.dot_dimension_numbers<[1], [0], [0], [1], [0, 0, 1, 1], [], []>} : vector<4x32xf32>, vector<32x16xf32>, vector<4x16xf32> -> vector<4x16xf32>
    %cst_213 = arith.constant dense<0.000000e+00> : vector<4x24xf32>
    %754 = tpu.matmul %753, %6, %cst_213 {dimension_numbers = #tpu.dot_dimension_numbers<[1], [0], [0], [1], [0, 0, 1, 1], [], []>} : vector<4x16xf32>, vector<16x24xf32>, vector<4x24xf32> -> vector<4x24xf32>
    %755 = vector.broadcast %8 : vector<1x24xf32> to vector<4x24xf32>
    %756 = arith.addf %754, %755 : vector<4x24xf32>
    %cst_214 = arith.constant dense<0.000000e+00> : vector<4x24xf32>
    %757 = tpu.matmul %687, %7, %cst_214 {dimension_numbers = #tpu.dot_dimension_numbers<[1], [0], [0], [1], [0, 0, 1, 1], [], []>} : vector<4x8xf32>, vector<8x24xf32>, vector<4x24xf32> -> vector<4x24xf32>
    %758 = vector.broadcast %9 : vector<1x24xf32> to vector<4x24xf32>
    %759 = arith.addf %757, %758 : vector<4x24xf32>
    %760 = vector.extract_strided_slice %756 {offsets = [0, 0], sizes = [4, 8], strides = [1, 1]} : vector<4x24xf32> to vector<4x8xf32>
    %761 = vector.extract_strided_slice %759 {offsets = [0, 0], sizes = [4, 8], strides = [1, 1]} : vector<4x24xf32> to vector<4x8xf32>
    %762 = arith.addf %760, %761 : vector<4x8xf32>
    %763 = arith.negf %762 : vector<4x8xf32>
    %764 = math.exp %763 : vector<4x8xf32>
    %cst_215 = arith.constant 1.000000e+00 : f32
    %765 = vector.broadcast %cst_215 : f32 to vector<4x8xf32>
    %766 = arith.addf %765, %764 : vector<4x8xf32>
    %767 = arith.divf %765, %766 : vector<4x8xf32>
    %768 = vector.extract_strided_slice %756 {offsets = [0, 8], sizes = [4, 8], strides = [1, 1]} : vector<4x24xf32> to vector<4x8xf32>
    %769 = vector.extract_strided_slice %759 {offsets = [0, 8], sizes = [4, 8], strides = [1, 1]} : vector<4x24xf32> to vector<4x8xf32>
    %770 = arith.addf %768, %769 : vector<4x8xf32>
    %771 = arith.negf %770 : vector<4x8xf32>
    %772 = math.exp %771 : vector<4x8xf32>
    %cst_216 = arith.constant 1.000000e+00 : f32
    %773 = vector.broadcast %cst_216 : f32 to vector<4x8xf32>
    %774 = arith.addf %773, %772 : vector<4x8xf32>
    %775 = arith.divf %773, %774 : vector<4x8xf32>
    %776 = vector.extract_strided_slice %756 {offsets = [0, 16], sizes = [4, 8], strides = [1, 1]} : vector<4x24xf32> to vector<4x8xf32>
    %777 = vector.extract_strided_slice %759 {offsets = [0, 16], sizes = [4, 8], strides = [1, 1]} : vector<4x24xf32> to vector<4x8xf32>
    %778 = arith.mulf %767, %777 : vector<4x8xf32>
    %779 = arith.addf %776, %778 : vector<4x8xf32>
    %780 = math.tanh %779 : vector<4x8xf32>
    %cst_217 = arith.constant 1.000000e+00 : f32
    %781 = vector.broadcast %cst_217 : f32 to vector<4x8xf32>
    %782 = arith.subf %781, %775 : vector<4x8xf32>
    %783 = arith.mulf %782, %780 : vector<4x8xf32>
    %784 = arith.mulf %775, %687 : vector<4x8xf32>
    %785 = arith.addf %783, %784 : vector<4x8xf32>
    %786 = arith.index_cast %c7_i32_196 : i32 to index
    %c0_218 = arith.constant 0 : index
    %c0_219 = arith.constant 0 : index
    %787 = vector.load %arg12[%786, %c0_218, %c0_219] : memref<8x4x16xf32, #tpu.memory_space<vmem>>, vector<1x4x8xf32>
    %788 = vector.shape_cast %787 : vector<1x4x8xf32> to vector<4x8xf32>
    %789 = vector.shape_cast %740 : vector<4x8xf32> to vector<1x4x8xf32>
    tpu.vector_store %arg12[%786, %c0_218, %c0_219], %789 {strides = array<i32>} : memref<8x4x16xf32, #tpu.memory_space<vmem>>, vector<1x4x8xf32>,
    %c7_i32_220 = arith.constant 7 : i32
    %790 = arith.subi %c7_i32_220, %c7_i32_196 : i32
    %791 = arith.index_cast %790 : i32 to index
    %c0_221 = arith.constant 0 : index
    %c8_222 = arith.constant 8 : index
    %792 = vector.load %arg12[%791, %c0_221, %c8_222] : memref<8x4x16xf32, #tpu.memory_space<vmem>>, vector<1x4x8xf32>
    %793 = vector.shape_cast %792 : vector<1x4x8xf32> to vector<4x8xf32>
    %794 = vector.shape_cast %785 : vector<4x8xf32> to vector<1x4x8xf32>
    tpu.vector_store %arg12[%791, %c0_221, %c8_222], %794 {strides = array<i32>} : memref<8x4x16xf32, #tpu.memory_space<vmem>>, vector<1x4x8xf32>,
    %c8_i32 = arith.constant 8 : i32
    %c0_223 = arith.constant 0 : index
    %c0_224 = arith.constant 0 : index
    %795 = vector.load %arg10[%c0_223, %c0_224] : memref<16x8xf32, #tpu.memory_space<vmem>>, vector<8x8xf32>
    %cst_225 = arith.constant dense<0.000000e+00> : vector<4x8xf32>
    %796 = tpu.matmul %740, %795, %cst_225 {dimension_numbers = #tpu.dot_dimension_numbers<[1], [0], [0], [1], [0, 0, 1, 1], [], []>} : vector<4x8xf32>, vector<8x8xf32>, vector<4x8xf32> -> vector<4x8xf32>
    %c8_226 = arith.constant 8 : index
    %c0_227 = arith.constant 0 : index
    %797 = vector.load %arg10[%c8_226, %c0_227] : memref<16x8xf32, #tpu.memory_space<vmem>>, vector<8x8xf32>
    %cst_228 = arith.constant dense<0.000000e+00> : vector<4x8xf32>
    %798 = tpu.matmul %785, %797, %cst_228 {dimension_numbers = #tpu.dot_dimension_numbers<[1], [0], [0], [1], [0, 0, 1, 1], [], []>} : vector<4x8xf32>, vector<8x8xf32>, vector<4x8xf32> -> vector<4x8xf32>
    %799 = arith.addf %796, %798 : vector<4x8xf32>
    %c0_229 = arith.constant 0 : index
    %c0_230 = arith.constant 0 : index
    %800 = vector.load %arg11[%c0_229, %c0_230] : memref<1x8xf32, #tpu.memory_space<vmem>>, vector<1x8xf32>
    %801 = vector.broadcast %800 : vector<1x8xf32> to vector<4x8xf32>
    %802 = arith.addf %799, %801 : vector<4x8xf32>
    %803 = math.tanh %802 : vector<4x8xf32>
    %c0_231 = arith.constant 0 : index
    %c0_232 = arith.constant 0 : index
    %804 = vector.load %arg13[%c0_231, %c0_232] : memref<4x8xf32, #tpu.memory_space<vmem>>, vector<4x8xf32>
    tpu.vector_store %arg13[%c0_231, %c0_232], %803 {strides = array<i32>} : memref<4x8xf32, #tpu.memory_space<vmem>>, vector<4x8xf32>,
    return
  }
}

</mosaic_0001>

<llo_original>
// kernel: tpu_custom_call.1
$region0: #{tpu_custom_call.1}
  #allocation0 [shape = 'u32[]', space=smem, size = 0x4, offset = 0x4, fixed_abs, tag = 'smem constant byte address 0x4 - core index']
  #allocation1 [shape = 'u32[144,128]{1,0:T(1,128)}', space=vmem, size = 0x12000, scoped, tag = 'internal scratch']
  %s0 = inlined_call_operand.vmem [shape: s32[8,4,1], index: 0, kind: input, shape index: {}]
  %s1 = inlined_call_operand.vmem [shape: f32[32,16], index: 1, kind: input, shape index: {}]
  %s2 = inlined_call_operand.vmem [shape: f32[16,24], index: 2, kind: input, shape index: {}]
  %s3 = inlined_call_operand.vmem [shape: f32[8,24], index: 3, kind: input, shape index: {}]
  %s4 = inlined_call_operand.vmem [shape: f32[1,24], index: 4, kind: input, shape index: {}]
  %s5 = inlined_call_operand.vmem [shape: f32[1,24], index: 5, kind: input, shape index: {}]
  %s6 = inlined_call_operand.vmem [shape: f32[16,24], index: 6, kind: input, shape index: {}]
  %s7 = inlined_call_operand.vmem [shape: f32[8,24], index: 7, kind: input, shape index: {}]
  %s8 = inlined_call_operand.vmem [shape: f32[1,24], index: 8, kind: input, shape index: {}]
  %s9 = inlined_call_operand.vmem [shape: f32[1,24], index: 9, kind: input, shape index: {}]
  %s10 = inlined_call_operand.vmem [shape: f32[16,8], index: 10, kind: input, shape index: {}]
  %s11 = inlined_call_operand.vmem [shape: f32[1,8], index: 11, kind: input, shape index: {}]
  %s12 = inlined_call_operand.hbm [shape: f32[8,4,16], index: 12, kind: output, shape index: {0}]
  %s13 = inlined_call_operand.hbm [shape: f32[4,8], index: 13, kind: output, shape index: {1}]
  %14 = xla_tuple %s12, %s13
  %s15 = sld [smem:[#allocation0]]
  $region66: #{tpu_custom_call.1} parent=0
    _
  %s17 = ssub.s32 1, %s15
  %s18 = scalar_select 0, %s17, %s15
  $region1: #{tpu_custom_call.1} parent=0
    #allocation2 [shape = 'u8[16384]{0}', space=vmem, size = 0x4000, scoped, tag = 'output window, operand 0, single buffered']
    #allocation3 [shape = 's32[1]{0}', space=sflag, size = 0x4, scoped, tag = 'scoped memory for tpu_custom_call.1']
    #allocation4 [shape = 'u8[2048]{0}', space=vmem, size = 0x800, scoped, tag = 'output window, operand 1, single buffered']
    #allocation5 [shape = 's32[1]{0}', space=sflag, size = 0x4, scoped, tag = 'scoped memory for tpu_custom_call.1']
    %19 = vsyncpa [#allocation3], 0
    %20 = vsyncpa [#allocation5], 0
    // Predicated region
    $region2: #{tpu_custom_call.1} parent=1 // pred_check
      _
    $region3: #{tpu_custom_call.1} parent=1 // pred_check_branch
      %22 = sbr.rel (0) target = $region5
    $region4: #{tpu_custom_call.1} parent=1 // pred_region
      _
    $region5: #{tpu_custom_call.1} parent=1 // pred_fallthru
      _
    // Predicated region
    $region6: #{tpu_custom_call.1} parent=1 // pred_check
      _
    $region7: #{tpu_custom_call.1} parent=1 // pred_check_branch
      %24 = sbr.rel (0) target = $region9
    $region8: #{tpu_custom_call.1} parent=1 // pred_region
      _
    $region9: #{tpu_custom_call.1} parent=1 // pred_fallthru
      _
    // Predicated region
    $region10: #{tpu_custom_call.1} parent=1 // pred_check
      _
    $region11: #{tpu_custom_call.1} parent=1 // pred_check_branch
      %26 = sbr.rel (0) target = $region13
    $region12: #{tpu_custom_call.1} parent=1 // pred_region
      _
    $region13: #{tpu_custom_call.1} parent=1 // pred_fallthru
      _
    // Predicated region
    $region14: #{tpu_custom_call.1} parent=1 // pred_check
      _
    $region15: #{tpu_custom_call.1} parent=1 // pred_check_branch
      %28 = sbr.rel (0) target = $region17
    $region16: #{tpu_custom_call.1} parent=1 // pred_region
      _
    $region17: #{tpu_custom_call.1} parent=1 // pred_fallthru
      _
    // Predicated region
    $region18: #{tpu_custom_call.1} parent=1 // pred_check
      _
    $region19: #{tpu_custom_call.1} parent=1 // pred_check_branch
      %30 = sbr.rel (0) target = $region21
    $region20: #{tpu_custom_call.1} parent=1 // pred_region
      _
    $region21: #{tpu_custom_call.1} parent=1 // pred_fallthru
      _
    // Predicated region
    $region22: #{tpu_custom_call.1} parent=1 // pred_check
      _
    $region23: #{tpu_custom_call.1} parent=1 // pred_check_branch
      %32 = sbr.rel (0) target = $region25
    $region24: #{tpu_custom_call.1} parent=1 // pred_region
      _
    $region25: #{tpu_custom_call.1} parent=1 // pred_fallthru
      _
    // Predicated region
    $region26: #{tpu_custom_call.1} parent=1 // pred_check
      _
    $region27: #{tpu_custom_call.1} parent=1 // pred_check_branch
      %34 = sbr.rel (0) target = $region29
    $region28: #{tpu_custom_call.1} parent=1 // pred_region
      _
    $region29: #{tpu_custom_call.1} parent=1 // pred_fallthru
      _
    // Predicated region
    $region30: #{tpu_custom_call.1} parent=1 // pred_check
      _
    $region31: #{tpu_custom_call.1} parent=1 // pred_check_branch
      %36 = sbr.rel (0) target = $region33
    $region32: #{tpu_custom_call.1} parent=1 // pred_region
      _
    $region33: #{tpu_custom_call.1} parent=1 // pred_fallthru
      _
    // Predicated region
    $region34: #{tpu_custom_call.1} parent=1 // pred_check
      _
    $region35: #{tpu_custom_call.1} parent=1 // pred_check_branch
      %38 = sbr.rel (0) target = $region37
    $region36: #{tpu_custom_call.1} parent=1 // pred_region
      _
    $region37: #{tpu_custom_call.1} parent=1 // pred_fallthru
      _
    // Predicated region
    $region38: #{tpu_custom_call.1} parent=1 // pred_check
      _
    $region39: #{tpu_custom_call.1} parent=1 // pred_check_branch
      %40 = sbr.rel (0) target = $region41
    $region40: #{tpu_custom_call.1} parent=1 // pred_region
      _
    $region41: #{tpu_custom_call.1} parent=1 // pred_fallthru
      _
    // Predicated region
    $region42: #{tpu_custom_call.1} parent=1 // pred_check
      _
    $region43: #{tpu_custom_call.1} parent=1 // pred_check_branch
      %42 = sbr.rel (0) target = $region45
    $region44: #{tpu_custom_call.1} parent=1 // pred_region
      _
    $region45: #{tpu_custom_call.1} parent=1 // pred_fallthru
      _
    // Predicated region
    $region46: #{tpu_custom_call.1} parent=1 // pred_check
      _
    $region47: #{tpu_custom_call.1} parent=1 // pred_check_branch
      %44 = sbr.rel (0) target = $region49
    $region48: #{tpu_custom_call.1} parent=1 // pred_region
      _
    $region49: #{tpu_custom_call.1} parent=1 // pred_fallthru
      _
    %v45 = vld [vmem:[%s1] sm:$0xff]
    %v46 = vld [vmem:[%s1 + $0x8] sm:$0xff]
    %v47 = vld [vmem:[%s1 + $0x10] sm:$0xff]
    %v48 = vld [vmem:[%s1 + $0x18] sm:$0xff]
    %v49 = vlaneseq
    %v50 = vand.u32 %v49, 127
    %v51 = vld [vmem:[%s2] sm:$0xff]
    %v52 = vld [vmem:[%s2 + $0x8] sm:$0xff]
    %v53 = vld [vmem:[%s3] sm:$0xff]
    %v54 = vld [vmem:[%s4] sm:$0x1]
    %v55 = vld [vmem:[%s5] sm:$0x1]
    %v56 = vld [vmem:[%s6] sm:$0xff]
    %v57 = vld [vmem:[%s6 + $0x8] sm:$0xff]
    %v58 = vld [vmem:[%s7] sm:$0xff]
    %v59 = vld [vmem:[%s8] sm:$0x1]
    %v60 = vld [vmem:[%s9] sm:$0x1]
    %v61 = vld [vmem:[%s0] sm:$0xf]
    %vm62 = vcmp.ge.s32.totalorder %v61, 32
    %v63 = vsel %vm62, 1, %v61
    %64 = vset.pattern.permute.xlu0 0
    %65 = vperm.xlu0 %64, %v63
    %v66 = vpop.permute.xlu0 %65
    %vm67 = vcmp.eq.s32.totalorder %v50, %v66
    %v68 = vsel %vm67, 1, 0
    %v69 = vcvt.s32.f32 %v68
    %vm70 = vcmask 261120
    %v72 = vsel %vm70, %v69, 0
    %74 = vmatprep.subr.mxu0 0.0
    %75 = vmatpush1.msra.mxu0 %v45
    %76 = vmatprep.subr.mxu0 0.0
    %77 = vmatpush1.msra.mxu0 %v46
    %78 = vmatprep.subr.mxu0 0.0
    %79 = vmatpush1.msra.mxu0 %v47
    %80 = vmatprep.subr.mxu0 0.0
    %81 = vmatpush1.msra.mxu0 %v48
    %82 = vmatprep.subr.mxu0 0.0
    %83 = vmatpush1.msra.mxu0 0.0
    %84 = vmatprep.subr.mxu0 0.0
    %85 = vmatpush1.msra.mxu0 0.0
    %86 = vmatprep.subr.mxu0 0.0
    %87 = vmatpush1.msra.mxu0 0.0
    %88 = vmatprep.subr.mxu0 0.0
    %89 = vmatpush1.msra.mxu0 0.0
    %90 = vmatprep.subr.mxu0 0.0
    %91 = vmatpush1.msra.mxu0 0.0
    %92 = vmatprep.subr.mxu0 0.0
    %93 = vmatpush1.msra.mxu0 0.0
    %94 = vmatprep.subr.mxu0 0.0
    %95 = vmatpush1.msra.mxu0 0.0
    %96 = vmatprep.subr.mxu0 0.0
    %97 = vmatpush1.msra.mxu0 0.0
    %98 = vmatprep.subr.mxu0 0.0
    %99 = vmatpush1.msra.mxu0 0.0
    %100 = vmatprep.subr.mxu0 0.0
    %101 = vmatpush1.msra.mxu0 0.0
    %102 = vmatprep.subr.mxu0 0.0
    %103 = vmatpush1.msra.mxu0 0.0
    %104 = vmatprep.subr.mxu0 0.0
    %105 = vmatpush1.msra.mxu0 0.0
    %106 = vmatprep.subr.mxu0 0.0
    %107 = vmatpush1.msra.mxu0 0.0
    %108 = vmatprep.subr.mxu0 0.0
    %109 = vmatpush1.msra.mxu0 0.0
    %110 = vmatprep.subr.mxu0 0.0
    %111 = vmatpush1.msra.mxu0 0.0
    %112 = vmatprep.subr.mxu0 0.0
    %113 = vmatpush1.msra.mxu0 0.0
    %114 = vmatprep.subr.mxu0 0.0
    %115 = vmatpush1.msra.mxu0 0.0
    %116 = vmatprep.subr.mxu0 0.0
    %117 = vmatpush1.msra.mxu0 0.0
    %118 = vmatprep.subr.mxu0 0.0
    %119 = vmatpush1.msra.mxu0 0.0
    %120 = vmatprep.subr.mxu0 0.0
    %121 = vmatpush1.msra.mxu0 0.0
    %122 = vmatprep.subr.mxu0 0.0
    %123 = vmatpush1.msra.mxu0 0.0
    %124 = vmatprep.subr.mxu0 0.0
    %125 = vmatpush1.msra.mxu0 0.0
    %126 = vmatprep.subr.mxu0 0.0
    %127 = vmatpush1.msra.mxu0 0.0
    %128 = vmatprep.subr.mxu0 0.0
    %129 = vmatpush1.msra.mxu0 0.0
    %130 = vmatprep.subr.mxu0 0.0
    %131 = vmatpush1.msra.mxu0 0.0
    %132 = vmatprep.subr.mxu0 0.0
    %133 = vmatpush1.msra.mxu0 0.0
    %134 = vmatprep.subr.mxu0 0.0
    %135 = vmatpush1.msra.mxu0 0.0
    %136 = vmatprep.subr.mxu0 0.0
    %137 = vmatpush1.msra.mxu0 0.0
    %138 = vmatprep.mubr.f32.mxu0 0.0
    %139 = vmatmul.mubr.f32.gmra.mrb[0].mxu0 %v72
    %v140 = vpop.f32.mrb[0].mxu0
    %v141 = vadd.f32 0.0, %v140
    %v142 = vpop.f32.mrb[0].mxu0
    %143 = vdwg.mxu0
    %v145 = vlaneseq
    %v146 = vshrl.u32 %v145, 7
    %v147 = vsub.s32 0, %v146
    %v148 = vrot.slane %v54, %v147
    %vm150 = vcmask 130048
    %v152 = vsel %vm150, %v141, 0
    %154 = vmatprep.subr.mxu0 0.0
    %155 = vmatpush1.msra.mxu0 %v51
    %156 = vmatprep.subr.mxu0 0.0
    %157 = vmatpush1.msra.mxu0 %v52
    %158 = vmatprep.subr.mxu0 0.0
    %159 = vmatpush1.msra.mxu0 0.0
    %160 = vmatprep.subr.mxu0 0.0
    %161 = vmatpush1.msra.mxu0 0.0
    %162 = vmatprep.subr.mxu0 0.0
    %163 = vmatpush1.msra.mxu0 0.0
    %164 = vmatprep.subr.mxu0 0.0
    %165 = vmatpush1.msra.mxu0 0.0
    %166 = vmatprep.subr.mxu0 0.0
    %167 = vmatpush1.msra.mxu0 0.0
    %168 = vmatprep.subr.mxu0 0.0
    %169 = vmatpush1.msra.mxu0 0.0
    %170 = vmatprep.subr.mxu0 0.0
    %171 = vmatpush1.msra.mxu0 0.0
    %172 = vmatprep.subr.mxu0 0.0
    %173 = vmatpush1.msra.mxu0 0.0
    %174 = vmatprep.subr.mxu0 0.0
    %175 = vmatpush1.msra.mxu0 0.0
    %176 = vmatprep.subr.mxu0 0.0
    %177 = vmatpush1.msra.mxu0 0.0
    %178 = vmatprep.subr.mxu0 0.0
    %179 = vmatpush1.msra.mxu0 0.0
    %180 = vmatprep.subr.mxu0 0.0
    %181 = vmatpush1.msra.mxu0 0.0
    %182 = vmatprep.subr.mxu0 0.0
    %183 = vmatpush1.msra.mxu0 0.0
    %184 = vmatprep.subr.mxu0 0.0
    %185 = vmatpush1.msra.mxu0 0.0
    %186 = vmatprep.subr.mxu0 0.0
    %187 = vmatpush1.msra.mxu0 0.0
    %188 = vmatprep.subr.mxu0 0.0
    %189 = vmatpush1.msra.mxu0 0.0
    %190 = vmatprep.subr.mxu0 0.0
    %191 = vmatpush1.msra.mxu0 0.0
    %192 = vmatprep.subr.mxu0 0.0
    %193 = vmatpush1.msra.mxu0 0.0
    %194 = vmatprep.subr.mxu0 0.0
    %195 = vmatpush1.msra.mxu0 0.0
    %196 = vmatprep.subr.mxu0 0.0
    %197 = vmatpush1.msra.mxu0 0.0
    %198 = vmatprep.subr.mxu0 0.0
    %199 = vmatpush1.msra.mxu0 0.0
    %200 = vmatprep.subr.mxu0 0.0
    %201 = vmatpush1.msra.mxu0 0.0
    %202 = vmatprep.subr.mxu0 0.0
    %203 = vmatpush1.msra.mxu0 0.0
    %204 = vmatprep.subr.mxu0 0.0
    %205 = vmatpush1.msra.mxu0 0.0
    %206 = vmatprep.subr.mxu0 0.0
    %207 = vmatpush1.msra.mxu0 0.0
    %208 = vmatprep.subr.mxu0 0.0
    %209 = vmatpush1.msra.mxu0 0.0
    %210 = vmatprep.subr.mxu0 0.0
    %211 = vmatpush1.msra.mxu0 0.0
    %212 = vmatprep.subr.mxu0 0.0
    %213 = vmatpush1.msra.mxu0 0.0
    %214 = vmatprep.subr.mxu0 0.0
    %215 = vmatpush1.msra.mxu0 0.0
    %216 = vmatprep.subr.mxu0 0.0
    %217 = vmatpush1.msra.mxu0 0.0
    %218 = vmatprep.mubr.f32.mxu0 0.0
    %219 = vmatmul.mubr.f32.gmra.mrb[0].mxu0 %v152
    %v220 = vpop.f32.mrb[0].mxu0
    %v221 = vadd.f32 %v148, %v220
    %v222 = vpop.f32.mrb[0].mxu0
    %223 = vdwg.mxu0
    %v225 = vlaneseq
    %v226 = vshrl.u32 %v225, 7
    %v227 = vsub.s32 0, %v226
    %v228 = vrot.slane %v55, %v227
    %vm230 = vcmask 64512
    %v232 = vsel %vm230, 0.0, 0
    %234 = vmatprep.subr.mxu0 0.0
    %235 = vmatpush1.msra.mxu0 %v53
    %236 = vmatprep.subr.mxu0 0.0
    %237 = vmatpush1.msra.mxu0 0.0
    %238 = vmatprep.subr.mxu0 0.0
    %239 = vmatpush1.msra.mxu0 0.0
    %240 = vmatprep.subr.mxu0 0.0
    %241 = vmatpush1.msra.mxu0 0.0
    %242 = vmatprep.subr.mxu0 0.0
    %243 = vmatpush1.msra.mxu0 0.0
    %244 = vmatprep.subr.mxu0 0.0
    %245 = vmatpush1.msra.mxu0 0.0
    %246 = vmatprep.subr.mxu0 0.0
    %247 = vmatpush1.msra.mxu0 0.0
    %248 = vmatprep.subr.mxu0 0.0
    %249 = vmatpush1.msra.mxu0 0.0
    %250 = vmatprep.subr.mxu0 0.0
    %251 = vmatpush1.msra.mxu0 0.0
    %252 = vmatprep.subr.mxu0 0.0
    %253 = vmatpush1.msra.mxu0 0.0
    %254 = vmatprep.subr.mxu0 0.0
    %255 = vmatpush1.msra.mxu0 0.0
    %256 = vmatprep.subr.mxu0 0.0
    %257 = vmatpush1.msra.mxu0 0.0
    %258 = vmatprep.subr.mxu0 0.0
    %259 = vmatpush1.msra.mxu0 0.0
    %260 = vmatprep.subr.mxu0 0.0
    %261 = vmatpush1.msra.mxu0 0.0
    %262 = vmatprep.subr.mxu0 0.0
    %263 = vmatpush1.msra.mxu0 0.0
    %264 = vmatprep.subr.mxu0 0.0
    %265 = vmatpush1.msra.mxu0 0.0
    %266 = vmatprep.subr.mxu0 0.0
    %267 = vmatpush1.msra.mxu0 0.0
    %268 = vmatprep.subr.mxu0 0.0
    %269 = vmatpush1.msra.mxu0 0.0
    %270 = vmatprep.subr.mxu0 0.0
    %271 = vmatpush1.msra.mxu0 0.0
    %272 = vmatprep.subr.mxu0 0.0
    %273 = vmatpush1.msra.mxu0 0.0
    %274 = vmatprep.subr.mxu0 0.0
    %275 = vmatpush1.msra.mxu0 0.0
    %276 = vmatprep.subr.mxu0 0.0
    %277 = vmatpush1.msra.mxu0 0.0
    %278 = vmatprep.subr.mxu0 0.0
    %279 = vmatpush1.msra.mxu0 0.0
    %280 = vmatprep.subr.mxu0 0.0
    %281 = vmatpush1.msra.mxu0 0.0
    %282 = vmatprep.subr.mxu0 0.0
    %283 = vmatpush1.msra.mxu0 0.0
    %284 = vmatprep.subr.mxu0 0.0
    %285 = vmatpush1.msra.mxu0 0.0
    %286 = vmatprep.subr.mxu0 0.0
    %287 = vmatpush1.msra.mxu0 0.0
    %288 = vmatprep.subr.mxu0 0.0
    %289 = vmatpush1.msra.mxu0 0.0
    %290 = vmatprep.subr.mxu0 0.0
    %291 = vmatpush1.msra.mxu0 0.0
    %292 = vmatprep.subr.mxu0 0.0
    %293 = vmatpush1.msra.mxu0 0.0
    %294 = vmatprep.subr.mxu0 0.0
    %295 = vmatpush1.msra.mxu0 0.0
    %296 = vmatprep.subr.mxu0 0.0
    %297 = vmatpush1.msra.mxu0 0.0
    %298 = vmatprep.mubr.f32.mxu0 0.0
    %299 = vmatmul.mubr.f32.gmra.mrb[0].mxu0 %v232
    %v300 = vpop.f32.mrb[0].mxu0
    %v301 = vadd.f32 %v228, %v300
    %v302 = vpop.f32.mrb[0].mxu0
    %303 = vdwg.mxu0
    %v304 = vadd.f32 %v221, %v301
    %v305 = vxor.u32 %v304, 2147483648
    %v306 = vmul.f32 %v305, 1.442695
    %v307 = vpow.pop %v306
    %v308 = vadd.f32 %v307, 1.0
    %v309 = vrcp.pop %v308
    %v310 = vmul.f32 1.0, %v309
    %312 = vrot.lane.b32.xlu0 %v301, 112
    %v313 = vpop.permute.xlu0 %312
    %v315 = vmul.f32 %v310, %v313
    %317 = vrot.lane.b32.xlu0 %v315, 16
    %v318 = vpop.permute.xlu0 %317
    %v320 = vadd.f32 %v221, %v318
    %v321 = vtanh.pop %v320
    %v322 = vsub.f32 1.0, %v310
    %324 = vrot.lane.b32.xlu0 %v321, 120
    %v325 = vpop.permute.xlu0 %324
    %v327 = vmul.f32 %v322, %v325
    %v328 = vmul.f32 %v310, 0.0
    %v329 = vadd.f32 %v327, %v328
    %s330 = scalar_lea.vmem %s0, 28
    %v331 = vld [vmem:[%s330] sm:$0xf]
    %vm332 = vcmp.ge.s32.totalorder %v331, 32
    %v333 = vsel %vm332, 1, %v331
    %334 = vset.pattern.permute.xlu0 0
    %335 = vperm.xlu0 %334, %v333
    %v336 = vpop.permute.xlu0 %335
    %vm337 = vcmp.eq.s32.totalorder %v50, %v336
    %v338 = vsel %vm337, 1, 0
    %v339 = vcvt.s32.f32 %v338
    %v341 = vsel %vm70, %v339, 0
    %343 = vmatprep.subr.mxu0 0.0
    %344 = vmatpush1.msra.mxu0 %v45
    %345 = vmatprep.subr.mxu0 0.0
    %346 = vmatpush1.msra.mxu0 %v46
    %347 = vmatprep.subr.mxu0 0.0
    %348 = vmatpush1.msra.mxu0 %v47
    %349 = vmatprep.subr.mxu0 0.0
    %350 = vmatpush1.msra.mxu0 %v48
    %351 = vmatprep.subr.mxu0 0.0
    %352 = vmatpush1.msra.mxu0 0.0
    %353 = vmatprep.subr.mxu0 0.0
    %354 = vmatpush1.msra.mxu0 0.0
    %355 = vmatprep.subr.mxu0 0.0
    %356 = vmatpush1.msra.mxu0 0.0
    %357 = vmatprep.subr.mxu0 0.0
    %358 = vmatpush1.msra.mxu0 0.0
    %359 = vmatprep.subr.mxu0 0.0
    %360 = vmatpush1.msra.mxu0 0.0
    %361 = vmatprep.subr.mxu0 0.0
    %362 = vmatpush1.msra.mxu0 0.0
    %363 = vmatprep.subr.mxu0 0.0
    %364 = vmatpush1.msra.mxu0 0.0
    %365 = vmatprep.subr.mxu0 0.0
    %366 = vmatpush1.msra.mxu0 0.0
    %367 = vmatprep.subr.mxu0 0.0
    %368 = vmatpush1.msra.mxu0 0.0
    %369 = vmatprep.subr.mxu0 0.0
    %370 = vmatpush1.msra.mxu0 0.0
    %371 = vmatprep.subr.mxu0 0.0
    %372 = vmatpush1.msra.mxu0 0.0
    %373 = vmatprep.subr.mxu0 0.0
    %374 = vmatpush1.msra.mxu0 0.0
    %375 = vmatprep.subr.mxu0 0.0
    %376 = vmatpush1.msra.mxu0 0.0
    %377 = vmatprep.subr.mxu0 0.0
    %378 = vmatpush1.msra.mxu0 0.0
    %379 = vmatprep.subr.mxu0 0.0
    %380 = vmatpush1.msra.mxu0 0.0
    %381 = vmatprep.subr.mxu0 0.0
    %382 = vmatpush1.msra.mxu0 0.0
    %383 = vmatprep.subr.mxu0 0.0
    %384 = vmatpush1.msra.mxu0 0.0
    %385 = vmatprep.subr.mxu0 0.0
    %386 = vmatpush1.msra.mxu0 0.0
    %387 = vmatprep.subr.mxu0 0.0
    %388 = vmatpush1.msra.mxu0 0.0
    %389 = vmatprep.subr.mxu0 0.0
    %390 = vmatpush1.msra.mxu0 0.0
    %391 = vmatprep.subr.mxu0 0.0
    %392 = vmatpush1.msra.mxu0 0.0
    %393 = vmatprep.subr.mxu0 0.0
    %394 = vmatpush1.msra.mxu0 0.0
    %395 = vmatprep.subr.mxu0 0.0
    %396 = vmatpush1.msra.mxu0 0.0
    %397 = vmatprep.subr.mxu0 0.0
    %398 = vmatpush1.msra.mxu0 0.0
    %399 = vmatprep.subr.mxu0 0.0
    %400 = vmatpush1.msra.mxu0 0.0
    %401 = vmatprep.subr.mxu0 0.0
    %402 = vmatpush1.msra.mxu0 0.0
    %403 = vmatprep.subr.mxu0 0.0
    %404 = vmatpush1.msra.mxu0 0.0
    %405 = vmatprep.subr.mxu0 0.0
    %406 = vmatpush1.msra.mxu0 0.0
    %407 = vmatprep.mubr.f32.mxu0 0.0
    %408 = vmatmul.mubr.f32.gmra.mrb[0].mxu0 %v341
    %v409 = vpop.f32.mrb[0].mxu0
    %v410 = vadd.f32 0.0, %v409
    %v411 = vpop.f32.mrb[0].mxu0
    %412 = vdwg.mxu0
    %v414 = vlaneseq
    %v415 = vshrl.u32 %v414, 7
    %v416 = vsub.s32 0, %v415
    %v417 = vrot.slane %v59, %v416
    %v420 = vsel %vm150, %v410, 0
    %422 = vmatprep.subr.mxu0 0.0
    %423 = vmatpush1.msra.mxu0 %v56
    %424 = vmatprep.subr.mxu0 0.0
    %425 = vmatpush1.msra.mxu0 %v57
    %426 = vmatprep.subr.mxu0 0.0
    %427 = vmatpush1.msra.mxu0 0.0
    %428 = vmatprep.subr.mxu0 0.0
    %429 = vmatpush1.msra.mxu0 0.0
    %430 = vmatprep.subr.mxu0 0.0
    %431 = vmatpush1.msra.mxu0 0.0
    %432 = vmatprep.subr.mxu0 0.0
    %433 = vmatpush1.msra.mxu0 0.0
    %434 = vmatprep.subr.mxu0 0.0
    %435 = vmatpush1.msra.mxu0 0.0
    %436 = vmatprep.subr.mxu0 0.0
    %437 = vmatpush1.msra.mxu0 0.0
    %438 = vmatprep.subr.mxu0 0.0
    %439 = vmatpush1.msra.mxu0 0.0
    %440 = vmatprep.subr.mxu0 0.0
    %441 = vmatpush1.msra.mxu0 0.0
    %442 = vmatprep.subr.mxu0 0.0
    %443 = vmatpush1.msra.mxu0 0.0
    %444 = vmatprep.subr.mxu0 0.0
    %445 = vmatpush1.msra.mxu0 0.0
    %446 = vmatprep.subr.mxu0 0.0
    %447 = vmatpush1.msra.mxu0 0.0
    %448 = vmatprep.subr.mxu0 0.0
    %449 = vmatpush1.msra.mxu0 0.0
    %450 = vmatprep.subr.mxu0 0.0
    %451 = vmatpush1.msra.mxu0 0.0
    %452 = vmatprep.subr.mxu0 0.0
    %453 = vmatpush1.msra.mxu0 0.0
    %454 = vmatprep.subr.mxu0 0.0
    %455 = vmatpush1.msra.mxu0 0.0
    %456 = vmatprep.subr.mxu0 0.0
    %457 = vmatpush1.msra.mxu0 0.0
    %458 = vmatprep.subr.mxu0 0.0
    %459 = vmatpush1.msra.mxu0 0.0
    %460 = vmatprep.subr.mxu0 0.0
    %461 = vmatpush1.msra.mxu0 0.0
    %462 = vmatprep.subr.mxu0 0.0
    %463 = vmatpush1.msra.mxu0 0.0
    %464 = vmatprep.subr.mxu0 0.0
    %465 = vmatpush1.msra.mxu0 0.0
    %466 = vmatprep.subr.mxu0 0.0
    %467 = vmatpush1.msra.mxu0 0.0
    %468 = vmatprep.subr.mxu0 0.0
    %469 = vmatpush1.msra.mxu0 0.0
    %470 = vmatprep.subr.mxu0 0.0
    %471 = vmatpush1.msra.mxu0 0.0
    %472 = vmatprep.subr.mxu0 0.0
    %473 = vmatpush1.msra.mxu0 0.0
    %474 = vmatprep.subr.mxu0 0.0
    %475 = vmatpush1.msra.mxu0 0.0
    %476 = vmatprep.subr.mxu0 0.0
    %477 = vmatpush1.msra.mxu0 0.0
    %478 = vmatprep.subr.mxu0 0.0
    %479 = vmatpush1.msra.mxu0 0.0
    %480 = vmatprep.subr.mxu0 0.0
    %481 = vmatpush1.msra.mxu0 0.0
    %482 = vmatprep.subr.mxu0 0.0
    %483 = vmatpush1.msra.mxu0 0.0
    %484 = vmatprep.subr.mxu0 0.0
    %485 = vmatpush1.msra.mxu0 0.0
    %486 = vmatprep.mubr.f32.mxu0 0.0
    %487 = vmatmul.mubr.f32.gmra.mrb[0].mxu0 %v420
    %v488 = vpop.f32.mrb[0].mxu0
    %v489 = vadd.f32 %v417, %v488
    %v490 = vpop.f32.mrb[0].mxu0
    %491 = vdwg.mxu0
    %v493 = vlaneseq
    %v494 = vshrl.u32 %v493, 7
    %v495 = vsub.s32 0, %v494
    %v496 = vrot.slane %v60, %v495
    %498 = vmatprep.subr.mxu0 0.0
    %499 = vmatpush1.msra.mxu0 %v58
    %500 = vmatprep.subr.mxu0 0.0
    %501 = vmatpush1.msra.mxu0 0.0
    %502 = vmatprep.subr.mxu0 0.0
    %503 = vmatpush1.msra.mxu0 0.0
    %504 = vmatprep.subr.mxu0 0.0
    %505 = vmatpush1.msra.mxu0 0.0
    %506 = vmatprep.subr.mxu0 0.0
    %507 = vmatpush1.msra.mxu0 0.0
    %508 = vmatprep.subr.mxu0 0.0
    %509 = vmatpush1.msra.mxu0 0.0
    %510 = vmatprep.subr.mxu0 0.0
    %511 = vmatpush1.msra.mxu0 0.0
    %512 = vmatprep.subr.mxu0 0.0
    %513 = vmatpush1.msra.mxu0 0.0
    %514 = vmatprep.subr.mxu0 0.0
    %515 = vmatpush1.msra.mxu0 0.0
    %516 = vmatprep.subr.mxu0 0.0
    %517 = vmatpush1.msra.mxu0 0.0
    %518 = vmatprep.subr.mxu0 0.0
    %519 = vmatpush1.msra.mxu0 0.0
    %520 = vmatprep.subr.mxu0 0.0
    %521 = vmatpush1.msra.mxu0 0.0
    %522 = vmatprep.subr.mxu0 0.0
    %523 = vmatpush1.msra.mxu0 0.0
    %524 = vmatprep.subr.mxu0 0.0
    %525 = vmatpush1.msra.mxu0 0.0
    %526 = vmatprep.subr.mxu0 0.0
    %527 = vmatpush1.msra.mxu0 0.0
    %528 = vmatprep.subr.mxu0 0.0
    %529 = vmatpush1.msra.mxu0 0.0
    %530 = vmatprep.subr.mxu0 0.0
    %531 = vmatpush1.msra.mxu0 0.0
    %532 = vmatprep.subr.mxu0 0.0
    %533 = vmatpush1.msra.mxu0 0.0
    %534 = vmatprep.subr.mxu0 0.0
    %535 = vmatpush1.msra.mxu0 0.0
    %536 = vmatprep.subr.mxu0 0.0
    %537 = vmatpush1.msra.mxu0 0.0
    %538 = vmatprep.subr.mxu0 0.0
    %539 = vmatpush1.msra.mxu0 0.0
    %540 = vmatprep.subr.mxu0 0.0
    %541 = vmatpush1.msra.mxu0 0.0
    %542 = vmatprep.subr.mxu0 0.0
    %543 = vmatpush1.msra.mxu0 0.0
    %544 = vmatprep.subr.mxu0 0.0
    %545 = vmatpush1.msra.mxu0 0.0
    %546 = vmatprep.subr.mxu0 0.0
    %547 = vmatpush1.msra.mxu0 0.0
    %548 = vmatprep.subr.mxu0 0.0
    %549 = vmatpush1.msra.mxu0 0.0
    %550 = vmatprep.subr.mxu0 0.0
    %551 = vmatpush1.msra.mxu0 0.0
    %552 = vmatprep.subr.mxu0 0.0
    %553 = vmatpush1.msra.mxu0 0.0
    %554 = vmatprep.subr.mxu0 0.0
    %555 = vmatpush1.msra.mxu0 0.0
    %556 = vmatprep.subr.mxu0 0.0
    %557 = vmatpush1.msra.mxu0 0.0
    %558 = vmatprep.subr.mxu0 0.0
    %559 = vmatpush1.msra.mxu0 0.0
    %560 = vmatprep.subr.mxu0 0.0
    %561 = vmatpush1.msra.mxu0 0.0
    %562 = vmatprep.mubr.f32.mxu0 0.0
    %563 = vmatmul.mubr.f32.gmra.mrb[0].mxu0 %v232
    %v564 = vpop.f32.mrb[0].mxu0
    %v565 = vadd.f32 %v496, %v564
    %v566 = vpop.f32.mrb[0].mxu0
    %567 = vdwg.mxu0
    %v568 = vadd.f32 %v489, %v565
    %v569 = vxor.u32 %v568, 2147483648
    %v570 = vmul.f32 %v569, 1.442695
    %v571 = vpow.pop %v570
    %v572 = vadd.f32 %v571, 1.0
    %v573 = vrcp.pop %v572
    %v574 = vmul.f32 1.0, %v573
    %576 = vrot.lane.b32.xlu0 %v565, 112
    %v577 = vpop.permute.xlu0 %576
    %v579 = vmul.f32 %v574, %v577
    %581 = vrot.lane.b32.xlu0 %v579, 16
    %v582 = vpop.permute.xlu0 %581
    %v584 = vadd.f32 %v489, %v582
    %v585 = vtanh.pop %v584
    %v586 = vsub.f32 1.0, %v574
    %588 = vrot.lane.b32.xlu0 %v585, 120
    %v589 = vpop.permute.xlu0 %588
    %v591 = vmul.f32 %v586, %v589
    %v592 = vmul.f32 %v574, 0.0
    %v593 = vadd.f32 %v591, %v592
    %595 = vrot.lane.b32.xlu0 %v329, 120
    %v596 = vpop.permute.xlu0 %595
    %vm598 = vcmask 60416
    %599 = vst.msk [vmem:[#allocation2] sm:$0xf] %vm598, %v596
    %s600 = scalar_lea.vmem [#allocation2], 28
    %vm601 = vcmask 126016
    %602 = vst.msk [vmem:[%s600] sm:$0xf] %vm601, %v593
    %s603 = scalar_lea.vmem %s0, 4
    %v604 = vld [vmem:[%s603] sm:$0xf]
    %vm605 = vcmp.ge.s32.totalorder %v604, 32
    %v606 = vsel %vm605, 1, %v604
    %607 = vset.pattern.permute.xlu0 0
    %608 = vperm.xlu0 %607, %v606
    %v609 = vpop.permute.xlu0 %608
    %vm610 = vcmp.eq.s32.totalorder %v50, %v609
    %v611 = vsel %vm610, 1, 0
    %v612 = vcvt.s32.f32 %v611
    %v614 = vsel %vm70, %v612, 0
    %616 = vmatprep.subr.mxu0 0.0
    %617 = vmatpush1.msra.mxu0 %v45
    %618 = vmatprep.subr.mxu0 0.0
    %619 = vmatpush1.msra.mxu0 %v46
    %620 = vmatprep.subr.mxu0 0.0
    %621 = vmatpush1.msra.mxu0 %v47
    %622 = vmatprep.subr.mxu0 0.0
    %623 = vmatpush1.msra.mxu0 %v48
    %624 = vmatprep.subr.mxu0 0.0
    %625 = vmatpush1.msra.mxu0 0.0
    %626 = vmatprep.subr.mxu0 0.0
    %627 = vmatpush1.msra.mxu0 0.0
    %628 = vmatprep.subr.mxu0 0.0
    %629 = vmatpush1.msra.mxu0 0.0
    %630 = vmatprep.subr.mxu0 0.0
    %631 = vmatpush1.msra.mxu0 0.0
    %632 = vmatprep.subr.mxu0 0.0
    %633 = vmatpush1.msra.mxu0 0.0
    %634 = vmatprep.subr.mxu0 0.0
    %635 = vmatpush1.msra.mxu0 0.0
    %636 = vmatprep.subr.mxu0 0.0
    %637 = vmatpush1.msra.mxu0 0.0
    %638 = vmatprep.subr.mxu0 0.0
    %639 = vmatpush1.msra.mxu0 0.0
    %640 = vmatprep.subr.mxu0 0.0
    %641 = vmatpush1.msra.mxu0 0.0
    %642 = vmatprep.subr.mxu0 0.0
    %643 = vmatpush1.msra.mxu0 0.0
    %644 = vmatprep.subr.mxu0 0.0
    %645 = vmatpush1.msra.mxu0 0.0
    %646 = vmatprep.subr.mxu0 0.0
    %647 = vmatpush1.msra.mxu0 0.0
    %648 = vmatprep.subr.mxu0 0.0
    %649 = vmatpush1.msra.mxu0 0.0
    %650 = vmatprep.subr.mxu0 0.0
    %651 = vmatpush1.msra.mxu0 0.0
    %652 = vmatprep.subr.mxu0 0.0
    %653 = vmatpush1.msra.mxu0 0.0
    %654 = vmatprep.subr.mxu0 0.0
    %655 = vmatpush1.msra.mxu0 0.0
    %656 = vmatprep.subr.mxu0 0.0
    %657 = vmatpush1.msra.mxu0 0.0
    %658 = vmatprep.subr.mxu0 0.0
    %659 = vmatpush1.msra.mxu0 0.0
    %660 = vmatprep.subr.mxu0 0.0
    %661 = vmatpush1.msra.mxu0 0.0
    %662 = vmatprep.subr.mxu0 0.0
    %663 = vmatpush1.msra.mxu0 0.0
    %664 = vmatprep.subr.mxu0 0.0
    %665 = vmatpush1.msra.mxu0 0.0
    %666 = vmatprep.subr.mxu0 0.0
    %667 = vmatpush1.msra.mxu0 0.0
    %668 = vmatprep.subr.mxu0 0.0
    %669 = vmatpush1.msra.mxu0 0.0
    %670 = vmatprep.subr.mxu0 0.0
    %671 = vmatpush1.msra.mxu0 0.0
    %672 = vmatprep.subr.mxu0 0.0
    %673 = vmatpush1.msra.mxu0 0.0
    %674 = vmatprep.subr.mxu0 0.0
    %675 = vmatpush1.msra.mxu0 0.0
    %676 = vmatprep.subr.mxu0 0.0
    %677 = vmatpush1.msra.mxu0 0.0
    %678 = vmatprep.subr.mxu0 0.0
    %679 = vmatpush1.msra.mxu0 0.0
    %680 = vmatprep.mubr.f32.mxu0 0.0
    %681 = vmatmul.mubr.f32.gmra.mrb[0].mxu0 %v614
    %v682 = vpop.f32.mrb[0].mxu0
    %v683 = vadd.f32 0.0, %v682
    %v684 = vpop.f32.mrb[0].mxu0
    %685 = vdwg.mxu0
    %v687 = vsel %vm150, %v683, 0
    %689 = vmatprep.subr.mxu0 0.0
    %690 = vmatpush1.msra.mxu0 %v51
    %691 = vmatprep.subr.mxu0 0.0
    %692 = vmatpush1.msra.mxu0 %v52
    %693 = vmatprep.subr.mxu0 0.0
    %694 = vmatpush1.msra.mxu0 0.0
    %695 = vmatprep.subr.mxu0 0.0
    %696 = vmatpush1.msra.mxu0 0.0
    %697 = vmatprep.subr.mxu0 0.0
    %698 = vmatpush1.msra.mxu0 0.0
    %699 = vmatprep.subr.mxu0 0.0
    %700 = vmatpush1.msra.mxu0 0.0
    %701 = vmatprep.subr.mxu0 0.0
    %702 = vmatpush1.msra.mxu0 0.0
    %703 = vmatprep.subr.mxu0 0.0
    %704 = vmatpush1.msra.mxu0 0.0
    %705 = vmatprep.subr.mxu0 0.0
    %706 = vmatpush1.msra.mxu0 0.0
    %707 = vmatprep.subr.mxu0 0.0
    %708 = vmatpush1.msra.mxu0 0.0
    %709 = vmatprep.subr.mxu0 0.0
    %710 = vmatpush1.msra.mxu0 0.0
    %711 = vmatprep.subr.mxu0 0.0
    %712 = vmatpush1.msra.mxu0 0.0
    %713 = vmatprep.subr.mxu0 0.0
    %714 = vmatpush1.msra.mxu0 0.0
    %715 = vmatprep.subr.mxu0 0.0
    %716 = vmatpush1.msra.mxu0 0.0
    %717 = vmatprep.subr.mxu0 0.0
    %718 = vmatpush1.msra.mxu0 0.0
    %719 = vmatprep.subr.mxu0 0.0
    %720 = vmatpush1.msra.mxu0 0.0
    %721 = vmatprep.subr.mxu0 0.0
    %722 = vmatpush1.msra.mxu0 0.0
    %723 = vmatprep.subr.mxu0 0.0
    %724 = vmatpush1.msra.mxu0 0.0
    %725 = vmatprep.subr.mxu0 0.0
    %726 = vmatpush1.msra.mxu0 0.0
    %727 = vmatprep.subr.mxu0 0.0
    %728 = vmatpush1.msra.mxu0 0.0
    %729 = vmatprep.subr.mxu0 0.0
    %730 = vmatpush1.msra.mxu0 0.0
    %731 = vmatprep.subr.mxu0 0.0
    %732 = vmatpush1.msra.mxu0 0.0
    %733 = vmatprep.subr.mxu0 0.0
    %734 = vmatpush1.msra.mxu0 0.0
    %735 = vmatprep.subr.mxu0 0.0
    %736 = vmatpush1.msra.mxu0 0.0
    %737 = vmatprep.subr.mxu0 0.0
    %738 = vmatpush1.msra.mxu0 0.0
    %739 = vmatprep.subr.mxu0 0.0
    %740 = vmatpush1.msra.mxu0 0.0
    %741 = vmatprep.subr.mxu0 0.0
    %742 = vmatpush1.msra.mxu0 0.0
    %743 = vmatprep.subr.mxu0 0.0
    %744 = vmatpush1.msra.mxu0 0.0
    %745 = vmatprep.subr.mxu0 0.0
    %746 = vmatpush1.msra.mxu0 0.0
    %747 = vmatprep.subr.mxu0 0.0
    %748 = vmatpush1.msra.mxu0 0.0
    %749 = vmatprep.subr.mxu0 0.0
    %750 = vmatpush1.msra.mxu0 0.0
    %751 = vmatprep.subr.mxu0 0.0
    %752 = vmatpush1.msra.mxu0 0.0
    %753 = vmatprep.mubr.f32.mxu0 0.0
    %754 = vmatmul.mubr.f32.gmra.mrb[0].mxu0 %v687
    %v755 = vpop.f32.mrb[0].mxu0
    %v756 = vadd.f32 %v148, %v755
    %v757 = vpop.f32.mrb[0].mxu0
    %758 = vdwg.mxu0
    %v759 = vsel %vm230, %v596, 0
    %761 = vmatprep.subr.mxu0 0.0
    %762 = vmatpush1.msra.mxu0 %v53
    %763 = vmatprep.subr.mxu0 0.0
    %764 = vmatpush1.msra.mxu0 0.0
    %765 = vmatprep.subr.mxu0 0.0
    %766 = vmatpush1.msra.mxu0 0.0
    %767 = vmatprep.subr.mxu0 0.0
    %768 = vmatpush1.msra.mxu0 0.0
    %769 = vmatprep.subr.mxu0 0.0
    %770 = vmatpush1.msra.mxu0 0.0
    %771 = vmatprep.subr.mxu0 0.0
    %772 = vmatpush1.msra.mxu0 0.0
    %773 = vmatprep.subr.mxu0 0.0
    %774 = vmatpush1.msra.mxu0 0.0
    %775 = vmatprep.subr.mxu0 0.0
    %776 = vmatpush1.msra.mxu0 0.0
    %777 = vmatprep.subr.mxu0 0.0
    %778 = vmatpush1.msra.mxu0 0.0
    %779 = vmatprep.subr.mxu0 0.0
    %780 = vmatpush1.msra.mxu0 0.0
    %781 = vmatprep.subr.mxu0 0.0
    %782 = vmatpush1.msra.mxu0 0.0
    %783 = vmatprep.subr.mxu0 0.0
    %784 = vmatpush1.msra.mxu0 0.0
    %785 = vmatprep.subr.mxu0 0.0
    %786 = vmatpush1.msra.mxu0 0.0
    %787 = vmatprep.subr.mxu0 0.0
    %788 = vmatpush1.msra.mxu0 0.0
    %789 = vmatprep.subr.mxu0 0.0
    %790 = vmatpush1.msra.mxu0 0.0
    %791 = vmatprep.subr.mxu0 0.0
    %792 = vmatpush1.msra.mxu0 0.0
    %793 = vmatprep.subr.mxu0 0.0
    %794 = vmatpush1.msra.mxu0 0.0
    %795 = vmatprep.subr.mxu0 0.0
    %796 = vmatpush1.msra.mxu0 0.0
    %797 = vmatprep.subr.mxu0 0.0
    %798 = vmatpush1.msra.mxu0 0.0
    %799 = vmatprep.subr.mxu0 0.0
    %800 = vmatpush1.msra.mxu0 0.0
    %801 = vmatprep.subr.mxu0 0.0
    %802 = vmatpush1.msra.mxu0 0.0
    %803 = vmatprep.subr.mxu0 0.0
    %804 = vmatpush1.msra.mxu0 0.0
    %805 = vmatprep.subr.mxu0 0.0
    %806 = vmatpush1.msra.mxu0 0.0
    %807 = vmatprep.subr.mxu0 0.0
    %808 = vmatpush1.msra.mxu0 0.0
    %809 = vmatprep.subr.mxu0 0.0
    %810 = vmatpush1.msra.mxu0 0.0
    %811 = vmatprep.subr.mxu0 0.0
    %812 = vmatpush1.msra.mxu0 0.0
    %813 = vmatprep.subr.mxu0 0.0
    %814 = vmatpush1.msra.mxu0 0.0
    %815 = vmatprep.subr.mxu0 0.0
    %816 = vmatpush1.msra.mxu0 0.0
    %817 = vmatprep.subr.mxu0 0.0
    %818 = vmatpush1.msra.mxu0 0.0
    %819 = vmatprep.subr.mxu0 0.0
    %820 = vmatpush1.msra.mxu0 0.0
    %821 = vmatprep.subr.mxu0 0.0
    %822 = vmatpush1.msra.mxu0 0.0
    %823 = vmatprep.subr.mxu0 0.0
    %824 = vmatpush1.msra.mxu0 0.0
    %825 = vmatprep.mubr.f32.mxu0 0.0
    %826 = vmatmul.mubr.f32.gmra.mrb[0].mxu0 %v759
    %v827 = vpop.f32.mrb[0].mxu0
    %v828 = vadd.f32 %v228, %v827
    %v829 = vpop.f32.mrb[0].mxu0
    %830 = vdwg.mxu0
    %v831 = vadd.f32 %v756, %v828
    %v832 = vxor.u32 %v831, 2147483648
    %v833 = vmul.f32 %v832, 1.442695
    %v834 = vpow.pop %v833
    %v835 = vadd.f32 %v834, 1.0
    %v836 = vrcp.pop %v835
    %v837 = vmul.f32 1.0, %v836
    %839 = vrot.lane.b32.xlu0 %v828, 112
    %v840 = vpop.permute.xlu0 %839
    %v842 = vmul.f32 %v837, %v840
    %844 = vrot.lane.b32.xlu0 %v842, 16
    %v845 = vpop.permute.xlu0 %844
    %v847 = vadd.f32 %v756, %v845
    %v848 = vtanh.pop %v847
    %v849 = vsub.f32 1.0, %v837
    %851 = vrot.lane.b32.xlu0 %v848, 120
    %v852 = vpop.permute.xlu0 %851
    %v854 = vmul.f32 %v849, %v852
    %v855 = vmul.f32 %v837, %v329
    %v856 = vadd.f32 %v854, %v855
    %s857 = scalar_lea.vmem %s0, 24
    %v858 = vld [vmem:[%s857] sm:$0xf]
    %vm859 = vcmp.ge.s32.totalorder %v858, 32
    %v860 = vsel %vm859, 1, %v858
    %861 = vset.pattern.permute.xlu0 0
    %862 = vperm.xlu0 %861, %v860
    %v863 = vpop.permute.xlu0 %862
    %vm864 = vcmp.eq.s32.totalorder %v50, %v863
    %v865 = vsel %vm864, 1, 0
    %v866 = vcvt.s32.f32 %v865
    %v868 = vsel %vm70, %v866, 0
    %870 = vmatprep.subr.mxu0 0.0
    %871 = vmatpush1.msra.mxu0 %v45
    %872 = vmatprep.subr.mxu0 0.0
    %873 = vmatpush1.msra.mxu0 %v46
    %874 = vmatprep.subr.mxu0 0.0
    %875 = vmatpush1.msra.mxu0 %v47
    %876 = vmatprep.subr.mxu0 0.0
    %877 = vmatpush1.msra.mxu0 %v48
    %878 = vmatprep.subr.mxu0 0.0
    %879 = vmatpush1.msra.mxu0 0.0
    %880 = vmatprep.subr.mxu0 0.0
    %881 = vmatpush1.msra.mxu0 0.0
    %882 = vmatprep.subr.mxu0 0.0
    %883 = vmatpush1.msra.mxu0 0.0
    %884 = vmatprep.subr.mxu0 0.0
    %885 = vmatpush1.msra.mxu0 0.0
    %886 = vmatprep.subr.mxu0 0.0
    %887 = vmatpush1.msra.mxu0 0.0
    %888 = vmatprep.subr.mxu0 0.0
    %889 = vmatpush1.msra.mxu0 0.0
    %890 = vmatprep.subr.mxu0 0.0
    %891 = vmatpush1.msra.mxu0 0.0
    %892 = vmatprep.subr.mxu0 0.0
    %893 = vmatpush1.msra.mxu0 0.0
    %894 = vmatprep.subr.mxu0 0.0
    %895 = vmatpush1.msra.mxu0 0.0
    %896 = vmatprep.subr.mxu0 0.0
    %897 = vmatpush1.msra.mxu0 0.0
    %898 = vmatprep.subr.mxu0 0.0
    %899 = vmatpush1.msra.mxu0 0.0
    %900 = vmatprep.subr.mxu0 0.0
    %901 = vmatpush1.msra.mxu0 0.0
    %902 = vmatprep.subr.mxu0 0.0
    %903 = vmatpush1.msra.mxu0 0.0
    %904 = vmatprep.subr.mxu0 0.0
    %905 = vmatpush1.msra.mxu0 0.0
    %906 = vmatprep.subr.mxu0 0.0
    %907 = vmatpush1.msra.mxu0 0.0
    %908 = vmatprep.subr.mxu0 0.0
    %909 = vmatpush1.msra.mxu0 0.0
    %910 = vmatprep.subr.mxu0 0.0
    %911 = vmatpush1.msra.mxu0 0.0
    %912 = vmatprep.subr.mxu0 0.0
    %913 = vmatpush1.msra.mxu0 0.0
    %914 = vmatprep.subr.mxu0 0.0
    %915 = vmatpush1.msra.mxu0 0.0
    %916 = vmatprep.subr.mxu0 0.0
    %917 = vmatpush1.msra.mxu0 0.0
    %918 = vmatprep.subr.mxu0 0.0
    %919 = vmatpush1.msra.mxu0 0.0
    %920 = vmatprep.subr.mxu0 0.0
    %921 = vmatpush1.msra.mxu0 0.0
    %922 = vmatprep.subr.mxu0 0.0
    %923 = vmatpush1.msra.mxu0 0.0
    %924 = vmatprep.subr.mxu0 0.0
    %925 = vmatpush1.msra.mxu0 0.0
    %926 = vmatprep.subr.mxu0 0.0
    %927 = vmatpush1.msra.mxu0 0.0
    %928 = vmatprep.subr.mxu0 0.0
    %929 = vmatpush1.msra.mxu0 0.0
    %930 = vmatprep.subr.mxu0 0.0
    %931 = vmatpush1.msra.mxu0 0.0
    %932 = vmatprep.subr.mxu0 0.0
    %933 = vmatpush1.msra.mxu0 0.0
    %934 = vmatprep.mubr.f32.mxu0 0.0
    %935 = vmatmul.mubr.f32.gmra.mrb[0].mxu0 %v868
    %v936 = vpop.f32.mrb[0].mxu0
    %v937 = vadd.f32 0.0, %v936
    %v938 = vpop.f32.mrb[0].mxu0
    %939 = vdwg.mxu0
    %v941 = vsel %vm150, %v937, 0
    %943 = vmatprep.subr.mxu0 0.0
    %944 = vmatpush1.msra.mxu0 %v56
    %945 = vmatprep.subr.mxu0 0.0
    %946 = vmatpush1.msra.mxu0 %v57
    %947 = vmatprep.subr.mxu0 0.0
    %948 = vmatpush1.msra.mxu0 0.0
    %949 = vmatprep.subr.mxu0 0.0
    %950 = vmatpush1.msra.mxu0 0.0
    %951 = vmatprep.subr.mxu0 0.0
    %952 = vmatpush1.msra.mxu0 0.0
    %953 = vmatprep.subr.mxu0 0.0
    %954 = vmatpush1.msra.mxu0 0.0
    %955 = vmatprep.subr.mxu0 0.0
    %956 = vmatpush1.msra.mxu0 0.0
    %957 = vmatprep.subr.mxu0 0.0
    %958 = vmatpush1.msra.mxu0 0.0
    %959 = vmatprep.subr.mxu0 0.0
    %960 = vmatpush1.msra.mxu0 0.0
    %961 = vmatprep.subr.mxu0 0.0
    %962 = vmatpush1.msra.mxu0 0.0
    %963 = vmatprep.subr.mxu0 0.0
    %964 = vmatpush1.msra.mxu0 0.0
    %965 = vmatprep.subr.mxu0 0.0
    %966 = vmatpush1.msra.mxu0 0.0
    %967 = vmatprep.subr.mxu0 0.0
    %968 = vmatpush1.msra.mxu0 0.0
    %969 = vmatprep.subr.mxu0 0.0
    %970 = vmatpush1.msra.mxu0 0.0
    %971 = vmatprep.subr.mxu0 0.0
    %972 = vmatpush1.msra.mxu0 0.0
    %973 = vmatprep.subr.mxu0 0.0
    %974 = vmatpush1.msra.mxu0 0.0
    %975 = vmatprep.subr.mxu0 0.0
    %976 = vmatpush1.msra.mxu0 0.0
    %977 = vmatprep.subr.mxu0 0.0
    %978 = vmatpush1.msra.mxu0 0.0
    %979 = vmatprep.subr.mxu0 0.0
    %980 = vmatpush1.msra.mxu0 0.0
    %981 = vmatprep.subr.mxu0 0.0
    %982 = vmatpush1.msra.mxu0 0.0
    %983 = vmatprep.subr.mxu0 0.0
    %984 = vmatpush1.msra.mxu0 0.0
    %985 = vmatprep.subr.mxu0 0.0
    %986 = vmatpush1.msra.mxu0 0.0
    %987 = vmatprep.subr.mxu0 0.0
    %988 = vmatpush1.msra.mxu0 0.0
    %989 = vmatprep.subr.mxu0 0.0
    %990 = vmatpush1.msra.mxu0 0.0
    %991 = vmatprep.subr.mxu0 0.0
    %992 = vmatpush1.msra.mxu0 0.0
    %993 = vmatprep.subr.mxu0 0.0
    %994 = vmatpush1.msra.mxu0 0.0
    %995 = vmatprep.subr.mxu0 0.0
    %996 = vmatpush1.msra.mxu0 0.0
    %997 = vmatprep.subr.mxu0 0.0
    %998 = vmatpush1.msra.mxu0 0.0
    %999 = vmatprep.subr.mxu0 0.0
    %1000 = vmatpush1.msra.mxu0 0.0
    %1001 = vmatprep.subr.mxu0 0.0
    %1002 = vmatpush1.msra.mxu0 0.0
    %1003 = vmatprep.subr.mxu0 0.0
    %1004 = vmatpush1.msra.mxu0 0.0
    %1005 = vmatprep.subr.mxu0 0.0
    %1006 = vmatpush1.msra.mxu0 0.0
    %1007 = vmatprep.mubr.f32.mxu0 0.0
    %1008 = vmatmul.mubr.f32.gmra.mrb[0].mxu0 %v941
    %v1009 = vpop.f32.mrb[0].mxu0
    %v1010 = vadd.f32 %v417, %v1009
    %v1011 = vpop.f32.mrb[0].mxu0
    %1012 = vdwg.mxu0
    %1014 = vrot.lane.b32.xlu0 %v593, 120
    %v1015 = vpop.permute.xlu0 %1014
    %v1016 = vsel %vm230, %v1015, 0
    %1018 = vmatprep.subr.mxu0 0.0
    %1019 = vmatpush1.msra.mxu0 %v58
    %1020 = vmatprep.subr.mxu0 0.0
    %1021 = vmatpush1.msra.mxu0 0.0
    %1022 = vmatprep.subr.mxu0 0.0
    %1023 = vmatpush1.msra.mxu0 0.0
    %1024 = vmatprep.subr.mxu0 0.0
    %1025 = vmatpush1.msra.mxu0 0.0
    %1026 = vmatprep.subr.mxu0 0.0
    %1027 = vmatpush1.msra.mxu0 0.0
    %1028 = vmatprep.subr.mxu0 0.0
    %1029 = vmatpush1.msra.mxu0 0.0
    %1030 = vmatprep.subr.mxu0 0.0
    %1031 = vmatpush1.msra.mxu0 0.0
    %1032 = vmatprep.subr.mxu0 0.0
    %1033 = vmatpush1.msra.mxu0 0.0
    %1034 = vmatprep.subr.mxu0 0.0
    %1035 = vmatpush1.msra.mxu0 0.0
    %1036 = vmatprep.subr.mxu0 0.0
    %1037 = vmatpush1.msra.mxu0 0.0
    %1038 = vmatprep.subr.mxu0 0.0
    %1039 = vmatpush1.msra.mxu0 0.0
    %1040 = vmatprep.subr.mxu0 0.0
    %1041 = vmatpush1.msra.mxu0 0.0
    %1042 = vmatprep.subr.mxu0 0.0
    %1043 = vmatpush1.msra.mxu0 0.0
    %1044 = vmatprep.subr.mxu0 0.0
    %1045 = vmatpush1.msra.mxu0 0.0
    %1046 = vmatprep.subr.mxu0 0.0
    %1047 = vmatpush1.msra.mxu0 0.0
    %1048 = vmatprep.subr.mxu0 0.0
    %1049 = vmatpush1.msra.mxu0 0.0
    %1050 = vmatprep.subr.mxu0 0.0
    %1051 = vmatpush1.msra.mxu0 0.0
    %1052 = vmatprep.subr.mxu0 0.0
    %1053 = vmatpush1.msra.mxu0 0.0
    %1054 = vmatprep.subr.mxu0 0.0
    %1055 = vmatpush1.msra.mxu0 0.0
    %1056 = vmatprep.subr.mxu0 0.0
    %1057 = vmatpush1.msra.mxu0 0.0
    %1058 = vmatprep.subr.mxu0 0.0
    %1059 = vmatpush1.msra.mxu0 0.0
    %1060 = vmatprep.subr.mxu0 0.0
    %1061 = vmatpush1.msra.mxu0 0.0
    %1062 = vmatprep.subr.mxu0 0.0
    %1063 = vmatpush1.msra.mxu0 0.0
    %1064 = vmatprep.subr.mxu0 0.0
    %1065 = vmatpush1.msra.mxu0 0.0
    %1066 = vmatprep.subr.mxu0 0.0
    %1067 = vmatpush1.msra.mxu0 0.0
    %1068 = vmatprep.subr.mxu0 0.0
    %1069 = vmatpush1.msra.mxu0 0.0
    %1070 = vmatprep.subr.mxu0 0.0
    %1071 = vmatpush1.msra.mxu0 0.0
    %1072 = vmatprep.subr.mxu0 0.0
    %1073 = vmatpush1.msra.mxu0 0.0
    %1074 = vmatprep.subr.mxu0 0.0
    %1075 = vmatpush1.msra.mxu0 0.0
    %1076 = vmatprep.subr.mxu0 0.0
    %1077 = vmatpush1.msra.mxu0 0.0
    %1078 = vmatprep.subr.mxu0 0.0
    %1079 = vmatpush1.msra.mxu0 0.0
    %1080 = vmatprep.subr.mxu0 0.0
    %1081 = vmatpush1.msra.mxu0 0.0
    %1082 = vmatprep.mubr.f32.mxu0 0.0
    %1083 = vmatmul.mubr.f32.gmra.mrb[0].mxu0 %v1016
    %v1084 = vpop.f32.mrb[0].mxu0
    %v1085 = vadd.f32 %v496, %v1084
    %v1086 = vpop.f32.mrb[0].mxu0
    %1087 = vdwg.mxu0
    %v1088 = vadd.f32 %v1010, %v1085
    %v1089 = vxor.u32 %v1088, 2147483648
    %v1090 = vmul.f32 %v1089, 1.442695
    %v1091 = vpow.pop %v1090
    %v1092 = vadd.f32 %v1091, 1.0
    %v1093 = vrcp.pop %v1092
    %v1094 = vmul.f32 1.0, %v1093
    %1096 = vrot.lane.b32.xlu0 %v1085, 112
    %v1097 = vpop.permute.xlu0 %1096
    %v1099 = vmul.f32 %v1094, %v1097
    %1101 = vrot.lane.b32.xlu0 %v1099, 16
    %v1102 = vpop.permute.xlu0 %1101
    %v1104 = vadd.f32 %v1010, %v1102
    %v1105 = vtanh.pop %v1104
    %v1106 = vsub.f32 1.0, %v1094
    %1108 = vrot.lane.b32.xlu0 %v1105, 120
    %v1109 = vpop.permute.xlu0 %1108
    %v1111 = vmul.f32 %v1106, %v1109
    %v1112 = vmul.f32 %v1094, %v593
    %v1113 = vadd.f32 %v1111, %v1112
    %1115 = vrot.lane.b32.xlu0 %v856, 120
    %v1116 = vpop.permute.xlu0 %1115
    %s1118 = scalar_lea.vmem [#allocation2], 4
    %1119 = vst.msk [vmem:[%s1118] sm:$0xf] %vm598, %v1116
    %s1120 = scalar_lea.vmem [#allocation2], 24
    %1121 = vst.msk [vmem:[%s1120] sm:$0xf] %vm601, %v1113
    %s1122 = scalar_lea.vmem %s0, 8
    %v1123 = vld [vmem:[%s1122] sm:$0xf]
    %vm1124 = vcmp.ge.s32.totalorder %v1123, 32
    %v1125 = vsel %vm1124, 1, %v1123
    %1126 = vset.pattern.permute.xlu0 0
    %1127 = vperm.xlu0 %1126, %v1125
    %v1128 = vpop.permute.xlu0 %1127
    %vm1129 = vcmp.eq.s32.totalorder %v50, %v1128
    %v1130 = vsel %vm1129, 1, 0
    %v1131 = vcvt.s32.f32 %v1130
    %v1133 = vsel %vm70, %v1131, 0
    %1135 = vmatprep.subr.mxu0 0.0
    %1136 = vmatpush1.msra.mxu0 %v45
    %1137 = vmatprep.subr.mxu0 0.0
    %1138 = vmatpush1.msra.mxu0 %v46
    %1139 = vmatprep.subr.mxu0 0.0
    %1140 = vmatpush1.msra.mxu0 %v47
    %1141 = vmatprep.subr.mxu0 0.0
    %1142 = vmatpush1.msra.mxu0 %v48
    %1143 = vmatprep.subr.mxu0 0.0
    %1144 = vmatpush1.msra.mxu0 0.0
    %1145 = vmatprep.subr.mxu0 0.0
    %1146 = vmatpush1.msra.mxu0 0.0
    %1147 = vmatprep.subr.mxu0 0.0
    %1148 = vmatpush1.msra.mxu0 0.0
    %1149 = vmatprep.subr.mxu0 0.0
    %1150 = vmatpush1.msra.mxu0 0.0
    %1151 = vmatprep.subr.mxu0 0.0
    %1152 = vmatpush1.msra.mxu0 0.0
    %1153 = vmatprep.subr.mxu0 0.0
    %1154 = vmatpush1.msra.mxu0 0.0
    %1155 = vmatprep.subr.mxu0 0.0
    %1156 = vmatpush1.msra.mxu0 0.0
    %1157 = vmatprep.subr.mxu0 0.0
    %1158 = vmatpush1.msra.mxu0 0.0
    %1159 = vmatprep.subr.mxu0 0.0
    %1160 = vmatpush1.msra.mxu0 0.0
    %1161 = vmatprep.subr.mxu0 0.0
    %1162 = vmatpush1.msra.mxu0 0.0
    %1163 = vmatprep.subr.mxu0 0.0
    %1164 = vmatpush1.msra.mxu0 0.0
    %1165 = vmatprep.subr.mxu0 0.0
    %1166 = vmatpush1.msra.mxu0 0.0
    %1167 = vmatprep.subr.mxu0 0.0
    %1168 = vmatpush1.msra.mxu0 0.0
    %1169 = vmatprep.subr.mxu0 0.0
    %1170 = vmatpush1.msra.mxu0 0.0
    %1171 = vmatprep.subr.mxu0 0.0
    %1172 = vmatpush1.msra.mxu0 0.0
    %1173 = vmatprep.subr.mxu0 0.0
    %1174 = vmatpush1.msra.mxu0 0.0
    %1175 = vmatprep.subr.mxu0 0.0
    %1176 = vmatpush1.msra.mxu0 0.0
    %1177 = vmatprep.subr.mxu0 0.0
    %1178 = vmatpush1.msra.mxu0 0.0
    %1179 = vmatprep.subr.mxu0 0.0
    %1180 = vmatpush1.msra.mxu0 0.0
    %1181 = vmatprep.subr.mxu0 0.0
    %1182 = vmatpush1.msra.mxu0 0.0
    %1183 = vmatprep.subr.mxu0 0.0
    %1184 = vmatpush1.msra.mxu0 0.0
    %1185 = vmatprep.subr.mxu0 0.0
    %1186 = vmatpush1.msra.mxu0 0.0
    %1187 = vmatprep.subr.mxu0 0.0
    %1188 = vmatpush1.msra.mxu0 0.0
    %1189 = vmatprep.subr.mxu0 0.0
    %1190 = vmatpush1.msra.mxu0 0.0
    %1191 = vmatprep.subr.mxu0 0.0
    %1192 = vmatpush1.msra.mxu0 0.0
    %1193 = vmatprep.subr.mxu0 0.0
    %1194 = vmatpush1.msra.mxu0 0.0
    %1195 = vmatprep.subr.mxu0 0.0
    %1196 = vmatpush1.msra.mxu0 0.0
    %1197 = vmatprep.subr.mxu0 0.0
    %1198 = vmatpush1.msra.mxu0 0.0
    %1199 = vmatprep.mubr.f32.mxu0 0.0
    %1200 = vmatmul.mubr.f32.gmra.mrb[0].mxu0 %v1133
    %v1201 = vpop.f32.mrb[0].mxu0
    %v1202 = vadd.f32 0.0, %v1201
    %v1203 = vpop.f32.mrb[0].mxu0
    %1204 = vdwg.mxu0
    %v1206 = vsel %vm150, %v1202, 0
    %1208 = vmatprep.subr.mxu0 0.0
    %1209 = vmatpush1.msra.mxu0 %v51
    %1210 = vmatprep.subr.mxu0 0.0
    %1211 = vmatpush1.msra.mxu0 %v52
    %1212 = vmatprep.subr.mxu0 0.0
    %1213 = vmatpush1.msra.mxu0 0.0
    %1214 = vmatprep.subr.mxu0 0.0
    %1215 = vmatpush1.msra.mxu0 0.0
    %1216 = vmatprep.subr.mxu0 0.0
    %1217 = vmatpush1.msra.mxu0 0.0
    %1218 = vmatprep.subr.mxu0 0.0
    %1219 = vmatpush1.msra.mxu0 0.0
    %1220 = vmatprep.subr.mxu0 0.0
    %1221 = vmatpush1.msra.mxu0 0.0
    %1222 = vmatprep.subr.mxu0 0.0
    %1223 = vmatpush1.msra.mxu0 0.0
    %1224 = vmatprep.subr.mxu0 0.0
    %1225 = vmatpush1.msra.mxu0 0.0
    %1226 = vmatprep.subr.mxu0 0.0
    %1227 = vmatpush1.msra.mxu0 0.0
    %1228 = vmatprep.subr.mxu0 0.0
    %1229 = vmatpush1.msra.mxu0 0.0
    %1230 = vmatprep.subr.mxu0 0.0
    %1231 = vmatpush1.msra.mxu0 0.0
    %1232 = vmatprep.subr.mxu0 0.0
    %1233 = vmatpush1.msra.mxu0 0.0
    %1234 = vmatprep.subr.mxu0 0.0
    %1235 = vmatpush1.msra.mxu0 0.0
    %1236 = vmatprep.subr.mxu0 0.0
    %1237 = vmatpush1.msra.mxu0 0.0
    %1238 = vmatprep.subr.mxu0 0.0
    %1239 = vmatpush1.msra.mxu0 0.0
    %1240 = vmatprep.subr.mxu0 0.0
    %1241 = vmatpush1.msra.mxu0 0.0
    %1242 = vmatprep.subr.mxu0 0.0
    %1243 = vmatpush1.msra.mxu0 0.0
    %1244 = vmatprep.subr.mxu0 0.0
    %1245 = vmatpush1.msra.mxu0 0.0
    %1246 = vmatprep.subr.mxu0 0.0
    %1247 = vmatpush1.msra.mxu0 0.0
    %1248 = vmatprep.subr.mxu0 0.0
    %1249 = vmatpush1.msra.mxu0 0.0
    %1250 = vmatprep.subr.mxu0 0.0
    %1251 = vmatpush1.msra.mxu0 0.0
    %1252 = vmatprep.subr.mxu0 0.0
    %1253 = vmatpush1.msra.mxu0 0.0
    %1254 = vmatprep.subr.mxu0 0.0
    %1255 = vmatpush1.msra.mxu0 0.0
    %1256 = vmatprep.subr.mxu0 0.0
    %1257 = vmatpush1.msra.mxu0 0.0
    %1258 = vmatprep.subr.mxu0 0.0
    %1259 = vmatpush1.msra.mxu0 0.0
    %1260 = vmatprep.subr.mxu0 0.0
    %1261 = vmatpush1.msra.mxu0 0.0
    %1262 = vmatprep.subr.mxu0 0.0
    %1263 = vmatpush1.msra.mxu0 0.0
    %1264 = vmatprep.subr.mxu0 0.0
    %1265 = vmatpush1.msra.mxu0 0.0
    %1266 = vmatprep.subr.mxu0 0.0
    %1267 = vmatpush1.msra.mxu0 0.0
    %1268 = vmatprep.subr.mxu0 0.0
    %1269 = vmatpush1.msra.mxu0 0.0
    %1270 = vmatprep.subr.mxu0 0.0
    %1271 = vmatpush1.msra.mxu0 0.0
    %1272 = vmatprep.mubr.f32.mxu0 0.0
    %1273 = vmatmul.mubr.f32.gmra.mrb[0].mxu0 %v1206
    %v1274 = vpop.f32.mrb[0].mxu0
    %v1275 = vadd.f32 %v148, %v1274
    %v1276 = vpop.f32.mrb[0].mxu0
    %1277 = vdwg.mxu0
    %v1278 = vsel %vm230, %v1116, 0
    %1280 = vmatprep.subr.mxu0 0.0
    %1281 = vmatpush1.msra.mxu0 %v53
    %1282 = vmatprep.subr.mxu0 0.0
    %1283 = vmatpush1.msra.mxu0 0.0
    %1284 = vmatprep.subr.mxu0 0.0
    %1285 = vmatpush1.msra.mxu0 0.0
    %1286 = vmatprep.subr.mxu0 0.0
    %1287 = vmatpush1.msra.mxu0 0.0
    %1288 = vmatprep.subr.mxu0 0.0
    %1289 = vmatpush1.msra.mxu0 0.0
    %1290 = vmatprep.subr.mxu0 0.0
    %1291 = vmatpush1.msra.mxu0 0.0
    %1292 = vmatprep.subr.mxu0 0.0
    %1293 = vmatpush1.msra.mxu0 0.0
    %1294 = vmatprep.subr.mxu0 0.0
    %1295 = vmatpush1.msra.mxu0 0.0
    %1296 = vmatprep.subr.mxu0 0.0
    %1297 = vmatpush1.msra.mxu0 0.0
    %1298 = vmatprep.subr.mxu0 0.0
    %1299 = vmatpush1.msra.mxu0 0.0
    %1300 = vmatprep.subr.mxu0 0.0
    %1301 = vmatpush1.msra.mxu0 0.0
    %1302 = vmatprep.subr.mxu0 0.0
    %1303 = vmatpush1.msra.mxu0 0.0
    %1304 = vmatprep.subr.mxu0 0.0
    %1305 = vmatpush1.msra.mxu0 0.0
    %1306 = vmatprep.subr.mxu0 0.0
    %1307 = vmatpush1.msra.mxu0 0.0
    %1308 = vmatprep.subr.mxu0 0.0
    %1309 = vmatpush1.msra.mxu0 0.0
    %1310 = vmatprep.subr.mxu0 0.0
    %1311 = vmatpush1.msra.mxu0 0.0
    %1312 = vmatprep.subr.mxu0 0.0
    %1313 = vmatpush1.msra.mxu0 0.0
    %1314 = vmatprep.subr.mxu0 0.0
    %1315 = vmatpush1.msra.mxu0 0.0
    %1316 = vmatprep.subr.mxu0 0.0
    %1317 = vmatpush1.msra.mxu0 0.0
    %1318 = vmatprep.subr.mxu0 0.0
    %1319 = vmatpush1.msra.mxu0 0.0
    %1320 = vmatprep.subr.mxu0 0.0
    %1321 = vmatpush1.msra.mxu0 0.0
    %1322 = vmatprep.subr.mxu0 0.0
    %1323 = vmatpush1.msra.mxu0 0.0
    %1324 = vmatprep.subr.mxu0 0.0
    %1325 = vmatpush1.msra.mxu0 0.0
    %1326 = vmatprep.subr.mxu0 0.0
    %1327 = vmatpush1.msra.mxu0 0.0
    %1328 = vmatprep.subr.mxu0 0.0
    %1329 = vmatpush1.msra.mxu0 0.0
    %1330 = vmatprep.subr.mxu0 0.0
    %1331 = vmatpush1.msra.mxu0 0.0
    %1332 = vmatprep.subr.mxu0 0.0
    %1333 = vmatpush1.msra.mxu0 0.0
    %1334 = vmatprep.subr.mxu0 0.0
    %1335 = vmatpush1.msra.mxu0 0.0
    %1336 = vmatprep.subr.mxu0 0.0
    %1337 = vmatpush1.msra.mxu0 0.0
    %1338 = vmatprep.subr.mxu0 0.0
    %1339 = vmatpush1.msra.mxu0 0.0
    %1340 = vmatprep.subr.mxu0 0.0
    %1341 = vmatpush1.msra.mxu0 0.0
    %1342 = vmatprep.subr.mxu0 0.0
    %1343 = vmatpush1.msra.mxu0 0.0
    %1344 = vmatprep.mubr.f32.mxu0 0.0
    %1345 = vmatmul.mubr.f32.gmra.mrb[0].mxu0 %v1278
    %v1346 = vpop.f32.mrb[0].mxu0
    %v1347 = vadd.f32 %v228, %v1346
    %v1348 = vpop.f32.mrb[0].mxu0
    %1349 = vdwg.mxu0
    %v1350 = vadd.f32 %v1275, %v1347
    %v1351 = vxor.u32 %v1350, 2147483648
    %v1352 = vmul.f32 %v1351, 1.442695
    %v1353 = vpow.pop %v1352
    %v1354 = vadd.f32 %v1353, 1.0
    %v1355 = vrcp.pop %v1354
    %v1356 = vmul.f32 1.0, %v1355
    %1358 = vrot.lane.b32.xlu0 %v1347, 112
    %v1359 = vpop.permute.xlu0 %1358
    %v1361 = vmul.f32 %v1356, %v1359
    %1363 = vrot.lane.b32.xlu0 %v1361, 16
    %v1364 = vpop.permute.xlu0 %1363
    %v1366 = vadd.f32 %v1275, %v1364
    %v1367 = vtanh.pop %v1366
    %v1368 = vsub.f32 1.0, %v1356
    %1370 = vrot.lane.b32.xlu0 %v1367, 120
    %v1371 = vpop.permute.xlu0 %1370
    %v1373 = vmul.f32 %v1368, %v1371
    %v1374 = vmul.f32 %v1356, %v856
    %v1375 = vadd.f32 %v1373, %v1374
    %s1376 = scalar_lea.vmem %s0, 20
    %v1377 = vld [vmem:[%s1376] sm:$0xf]
    %vm1378 = vcmp.ge.s32.totalorder %v1377, 32
    %v1379 = vsel %vm1378, 1, %v1377
    %1380 = vset.pattern.permute.xlu0 0
    %1381 = vperm.xlu0 %1380, %v1379
    %v1382 = vpop.permute.xlu0 %1381
    %vm1383 = vcmp.eq.s32.totalorder %v50, %v1382
    %v1384 = vsel %vm1383, 1, 0
    %v1385 = vcvt.s32.f32 %v1384
    %v1387 = vsel %vm70, %v1385, 0
    %1389 = vmatprep.subr.mxu0 0.0
    %1390 = vmatpush1.msra.mxu0 %v45
    %1391 = vmatprep.subr.mxu0 0.0
    %1392 = vmatpush1.msra.mxu0 %v46
    %1393 = vmatprep.subr.mxu0 0.0
    %1394 = vmatpush1.msra.mxu0 %v47
    %1395 = vmatprep.subr.mxu0 0.0
    %1396 = vmatpush1.msra.mxu0 %v48
    %1397 = vmatprep.subr.mxu0 0.0
    %1398 = vmatpush1.msra.mxu0 0.0
    %1399 = vmatprep.subr.mxu0 0.0
    %1400 = vmatpush1.msra.mxu0 0.0
    %1401 = vmatprep.subr.mxu0 0.0
    %1402 = vmatpush1.msra.mxu0 0.0
    %1403 = vmatprep.subr.mxu0 0.0
    %1404 = vmatpush1.msra.mxu0 0.0
    %1405 = vmatprep.subr.mxu0 0.0
    %1406 = vmatpush1.msra.mxu0 0.0
    %1407 = vmatprep.subr.mxu0 0.0
    %1408 = vmatpush1.msra.mxu0 0.0
    %1409 = vmatprep.subr.mxu0 0.0
    %1410 = vmatpush1.msra.mxu0 0.0
    %1411 = vmatprep.subr.mxu0 0.0
    %1412 = vmatpush1.msra.mxu0 0.0
    %1413 = vmatprep.subr.mxu0 0.0
    %1414 = vmatpush1.msra.mxu0 0.0
    %1415 = vmatprep.subr.mxu0 0.0
    %1416 = vmatpush1.msra.mxu0 0.0
    %1417 = vmatprep.subr.mxu0 0.0
    %1418 = vmatpush1.msra.mxu0 0.0
    %1419 = vmatprep.subr.mxu0 0.0
    %1420 = vmatpush1.msra.mxu0 0.0
    %1421 = vmatprep.subr.mxu0 0.0
    %1422 = vmatpush1.msra.mxu0 0.0
    %1423 = vmatprep.subr.mxu0 0.0
    %1424 = vmatpush1.msra.mxu0 0.0
    %1425 = vmatprep.subr.mxu0 0.0
    %1426 = vmatpush1.msra.mxu0 0.0
    %1427 = vmatprep.subr.mxu0 0.0
    %1428 = vmatpush1.msra.mxu0 0.0
    %1429 = vmatprep.subr.mxu0 0.0
    %1430 = vmatpush1.msra.mxu0 0.0
    %1431 = vmatprep.subr.mxu0 0.0
    %1432 = vmatpush1.msra.mxu0 0.0
    %1433 = vmatprep.subr.mxu0 0.0
    %1434 = vmatpush1.msra.mxu0 0.0
    %1435 = vmatprep.subr.mxu0 0.0
    %1436 = vmatpush1.msra.mxu0 0.0
    %1437 = vmatprep.subr.mxu0 0.0
    %1438 = vmatpush1.msra.mxu0 0.0
    %1439 = vmatprep.subr.mxu0 0.0
    %1440 = vmatpush1.msra.mxu0 0.0
    %1441 = vmatprep.subr.mxu0 0.0
    %1442 = vmatpush1.msra.mxu0 0.0
    %1443 = vmatprep.subr.mxu0 0.0
    %1444 = vmatpush1.msra.mxu0 0.0
    %1445 = vmatprep.subr.mxu0 0.0
    %1446 = vmatpush1.msra.mxu0 0.0
    %1447 = vmatprep.subr.mxu0 0.0
    %1448 = vmatpush1.msra.mxu0 0.0
    %1449 = vmatprep.subr.mxu0 0.0
    %1450 = vmatpush1.msra.mxu0 0.0
    %1451 = vmatprep.subr.mxu0 0.0
    %1452 = vmatpush1.msra.mxu0 0.0
    %1453 = vmatprep.mubr.f32.mxu0 0.0
    %1454 = vmatmul.mubr.f32.gmra.mrb[0].mxu0 %v1387
    %v1455 = vpop.f32.mrb[0].mxu0
    %v1456 = vadd.f32 0.0, %v1455
    %v1457 = vpop.f32.mrb[0].mxu0
    %1458 = vdwg.mxu0
    %v1460 = vsel %vm150, %v1456, 0
    %1462 = vmatprep.subr.mxu0 0.0
    %1463 = vmatpush1.msra.mxu0 %v56
    %1464 = vmatprep.subr.mxu0 0.0
    %1465 = vmatpush1.msra.mxu0 %v57
    %1466 = vmatprep.subr.mxu0 0.0
    %1467 = vmatpush1.msra.mxu0 0.0
    %1468 = vmatprep.subr.mxu0 0.0
    %1469 = vmatpush1.msra.mxu0 0.0
    %1470 = vmatprep.subr.mxu0 0.0
    %1471 = vmatpush1.msra.mxu0 0.0
    %1472 = vmatprep.subr.mxu0 0.0
    %1473 = vmatpush1.msra.mxu0 0.0
    %1474 = vmatprep.subr.mxu0 0.0
    %1475 = vmatpush1.msra.mxu0 0.0
    %1476 = vmatprep.subr.mxu0 0.0
    %1477 = vmatpush1.msra.mxu0 0.0
    %1478 = vmatprep.subr.mxu0 0.0
    %1479 = vmatpush1.msra.mxu0 0.0
    %1480 = vmatprep.subr.mxu0 0.0
    %1481 = vmatpush1.msra.mxu0 0.0
    %1482 = vmatprep.subr.mxu0 0.0
    %1483 = vmatpush1.msra.mxu0 0.0
    %1484 = vmatprep.subr.mxu0 0.0
    %1485 = vmatpush1.msra.mxu0 0.0
    %1486 = vmatprep.subr.mxu0 0.0
    %1487 = vmatpush1.msra.mxu0 0.0
    %1488 = vmatprep.subr.mxu0 0.0
    %1489 = vmatpush1.msra.mxu0 0.0
    %1490 = vmatprep.subr.mxu0 0.0
    %1491 = vmatpush1.msra.mxu0 0.0
    %1492 = vmatprep.subr.mxu0 0.0
    %1493 = vmatpush1.msra.mxu0 0.0
    %1494 = vmatprep.subr.mxu0 0.0
    %1495 = vmatpush1.msra.mxu0 0.0
    %1496 = vmatprep.subr.mxu0 0.0
    %1497 = vmatpush1.msra.mxu0 0.0
    %1498 = vmatprep.subr.mxu0 0.0
    %1499 = vmatpush1.msra.mxu0 0.0
    %1500 = vmatprep.subr.mxu0 0.0
    %1501 = vmatpush1.msra.mxu0 0.0
    %1502 = vmatprep.subr.mxu0 0.0
    %1503 = vmatpush1.msra.mxu0 0.0
    %1504 = vmatprep.subr.mxu0 0.0
    %1505 = vmatpush1.msra.mxu0 0.0
    %1506 = vmatprep.subr.mxu0 0.0
    %1507 = vmatpush1.msra.mxu0 0.0
    %1508 = vmatprep.subr.mxu0 0.0
    %1509 = vmatpush1.msra.mxu0 0.0
    %1510 = vmatprep.subr.mxu0 0.0
    %1511 = vmatpush1.msra.mxu0 0.0
    %1512 = vmatprep.subr.mxu0 0.0
    %1513 = vmatpush1.msra.mxu0 0.0
    %1514 = vmatprep.subr.mxu0 0.0
    %1515 = vmatpush1.msra.mxu0 0.0
    %1516 = vmatprep.subr.mxu0 0.0
    %1517 = vmatpush1.msra.mxu0 0.0
    %1518 = vmatprep.subr.mxu0 0.0
    %1519 = vmatpush1.msra.mxu0 0.0
    %1520 = vmatprep.subr.mxu0 0.0
    %1521 = vmatpush1.msra.mxu0 0.0
    %1522 = vmatprep.subr.mxu0 0.0
    %1523 = vmatpush1.msra.mxu0 0.0
    %1524 = vmatprep.subr.mxu0 0.0
    %1525 = vmatpush1.msra.mxu0 0.0
    %1526 = vmatprep.mubr.f32.mxu0 0.0
    %1527 = vmatmul.mubr.f32.gmra.mrb[0].mxu0 %v1460
    %v1528 = vpop.f32.mrb[0].mxu0
    %v1529 = vadd.f32 %v417, %v1528
    %v1530 = vpop.f32.mrb[0].mxu0
    %1531 = vdwg.mxu0
    %1533 = vrot.lane.b32.xlu0 %v1113, 120
    %v1534 = vpop.permute.xlu0 %1533
    %v1535 = vsel %vm230, %v1534, 0
    %1537 = vmatprep.subr.mxu0 0.0
    %1538 = vmatpush1.msra.mxu0 %v58
    %1539 = vmatprep.subr.mxu0 0.0
    %1540 = vmatpush1.msra.mxu0 0.0
    %1541 = vmatprep.subr.mxu0 0.0
    %1542 = vmatpush1.msra.mxu0 0.0
    %1543 = vmatprep.subr.mxu0 0.0
    %1544 = vmatpush1.msra.mxu0 0.0
    %1545 = vmatprep.subr.mxu0 0.0
    %1546 = vmatpush1.msra.mxu0 0.0
    %1547 = vmatprep.subr.mxu0 0.0
    %1548 = vmatpush1.msra.mxu0 0.0
    %1549 = vmatprep.subr.mxu0 0.0
    %1550 = vmatpush1.msra.mxu0 0.0
    %1551 = vmatprep.subr.mxu0 0.0
    %1552 = vmatpush1.msra.mxu0 0.0
    %1553 = vmatprep.subr.mxu0 0.0
    %1554 = vmatpush1.msra.mxu0 0.0
    %1555 = vmatprep.subr.mxu0 0.0
    %1556 = vmatpush1.msra.mxu0 0.0
    %1557 = vmatprep.subr.mxu0 0.0
    %1558 = vmatpush1.msra.mxu0 0.0
    %1559 = vmatprep.subr.mxu0 0.0
    %1560 = vmatpush1.msra.mxu0 0.0
    %1561 = vmatprep.subr.mxu0 0.0
    %1562 = vmatpush1.msra.mxu0 0.0
    %1563 = vmatprep.subr.mxu0 0.0
    %1564 = vmatpush1.msra.mxu0 0.0
    %1565 = vmatprep.subr.mxu0 0.0
    %1566 = vmatpush1.msra.mxu0 0.0
    %1567 = vmatprep.subr.mxu0 0.0
    %1568 = vmatpush1.msra.mxu0 0.0
    %1569 = vmatprep.subr.mxu0 0.0
    %1570 = vmatpush1.msra.mxu0 0.0
    %1571 = vmatprep.subr.mxu0 0.0
    %1572 = vmatpush1.msra.mxu0 0.0
    %1573 = vmatprep.subr.mxu0 0.0
    %1574 = vmatpush1.msra.mxu0 0.0
    %1575 = vmatprep.subr.mxu0 0.0
    %1576 = vmatpush1.msra.mxu0 0.0
    %1577 = vmatprep.subr.mxu0 0.0
    %1578 = vmatpush1.msra.mxu0 0.0
    %1579 = vmatprep.subr.mxu0 0.0
    %1580 = vmatpush1.msra.mxu0 0.0
    %1581 = vmatprep.subr.mxu0 0.0
    %1582 = vmatpush1.msra.mxu0 0.0
    %1583 = vmatprep.subr.mxu0 0.0
    %1584 = vmatpush1.msra.mxu0 0.0
    %1585 = vmatprep.subr.mxu0 0.0
    %1586 = vmatpush1.msra.mxu0 0.0
    %1587 = vmatprep.subr.mxu0 0.0
    %1588 = vmatpush1.msra.mxu0 0.0
    %1589 = vmatprep.subr.mxu0 0.0
    %1590 = vmatpush1.msra.mxu0 0.0
    %1591 = vmatprep.subr.mxu0 0.0
    %1592 = vmatpush1.msra.mxu0 0.0
    %1593 = vmatprep.subr.mxu0 0.0
    %1594 = vmatpush1.msra.mxu0 0.0
    %1595 = vmatprep.subr.mxu0 0.0
    %1596 = vmatpush1.msra.mxu0 0.0
    %1597 = vmatprep.subr.mxu0 0.0
    %1598 = vmatpush1.msra.mxu0 0.0
    %1599 = vmatprep.subr.mxu0 0.0
    %1600 = vmatpush1.msra.mxu0 0.0
    %1601 = vmatprep.mubr.f32.mxu0 0.0
    %1602 = vmatmul.mubr.f32.gmra.mrb[0].mxu0 %v1535
    %v1603 = vpop.f32.mrb[0].mxu0
    %v1604 = vadd.f32 %v496, %v1603
    %v1605 = vpop.f32.mrb[0].mxu0
    %1606 = vdwg.mxu0
    %v1607 = vadd.f32 %v1529, %v1604
    %v1608 = vxor.u32 %v1607, 2147483648
    %v1609 = vmul.f32 %v1608, 1.442695
    %v1610 = vpow.pop %v1609
    %v1611 = vadd.f32 %v1610, 1.0
    %v1612 = vrcp.pop %v1611
    %v1613 = vmul.f32 1.0, %v1612
    %1615 = vrot.lane.b32.xlu0 %v1604, 112
    %v1616 = vpop.permute.xlu0 %1615
    %v1618 = vmul.f32 %v1613, %v1616
    %1620 = vrot.lane.b32.xlu0 %v1618, 16
    %v1621 = vpop.permute.xlu0 %1620
    %v1623 = vadd.f32 %v1529, %v1621
    %v1624 = vtanh.pop %v1623
    %v1625 = vsub.f32 1.0, %v1613
    %1627 = vrot.lane.b32.xlu0 %v1624, 120
    %v1628 = vpop.permute.xlu0 %1627
    %v1630 = vmul.f32 %v1625, %v1628
    %v1631 = vmul.f32 %v1613, %v1113
    %v1632 = vadd.f32 %v1630, %v1631
    %1634 = vrot.lane.b32.xlu0 %v1375, 120
    %v1635 = vpop.permute.xlu0 %1634
    %s1637 = scalar_lea.vmem [#allocation2], 8
    %1638 = vst.msk [vmem:[%s1637] sm:$0xf] %vm598, %v1635
    %s1639 = scalar_lea.vmem [#allocation2], 20
    %1640 = vst.msk [vmem:[%s1639] sm:$0xf] %vm601, %v1632
    %s1641 = scalar_lea.vmem %s0, 12
    %v1642 = vld [vmem:[%s1641] sm:$0xf]
    %vm1643 = vcmp.ge.s32.totalorder %v1642, 32
    %v1644 = vsel %vm1643, 1, %v1642
    %1645 = vset.pattern.permute.xlu0 0
    %1646 = vperm.xlu0 %1645, %v1644
    %v1647 = vpop.permute.xlu0 %1646
    %vm1648 = vcmp.eq.s32.totalorder %v50, %v1647
    %v1649 = vsel %vm1648, 1, 0
    %v1650 = vcvt.s32.f32 %v1649
    %v1652 = vsel %vm70, %v1650, 0
    %1654 = vmatprep.subr.mxu0 0.0
    %1655 = vmatpush1.msra.mxu0 %v45
    %1656 = vmatprep.subr.mxu0 0.0
    %1657 = vmatpush1.msra.mxu0 %v46
    %1658 = vmatprep.subr.mxu0 0.0
    %1659 = vmatpush1.msra.mxu0 %v47
    %1660 = vmatprep.subr.mxu0 0.0
    %1661 = vmatpush1.msra.mxu0 %v48
    %1662 = vmatprep.subr.mxu0 0.0
    %1663 = vmatpush1.msra.mxu0 0.0
    %1664 = vmatprep.subr.mxu0 0.0
    %1665 = vmatpush1.msra.mxu0 0.0
    %1666 = vmatprep.subr.mxu0 0.0
    %1667 = vmatpush1.msra.mxu0 0.0
    %1668 = vmatprep.subr.mxu0 0.0
    %1669 = vmatpush1.msra.mxu0 0.0
    %1670 = vmatprep.subr.mxu0 0.0
    %1671 = vmatpush1.msra.mxu0 0.0
    %1672 = vmatprep.subr.mxu0 0.0
    %1673 = vmatpush1.msra.mxu0 0.0
    %1674 = vmatprep.subr.mxu0 0.0
    %1675 = vmatpush1.msra.mxu0 0.0
    %1676 = vmatprep.subr.mxu0 0.0
    %1677 = vmatpush1.msra.mxu0 0.0
    %1678 = vmatprep.subr.mxu0 0.0
    %1679 = vmatpush1.msra.mxu0 0.0
    %1680 = vmatprep.subr.mxu0 0.0
    %1681 = vmatpush1.msra.mxu0 0.0
    %1682 = vmatprep.subr.mxu0 0.0
    %1683 = vmatpush1.msra.mxu0 0.0
    %1684 = vmatprep.subr.mxu0 0.0
    %1685 = vmatpush1.msra.mxu0 0.0
    %1686 = vmatprep.subr.mxu0 0.0
    %1687 = vmatpush1.msra.mxu0 0.0
    %1688 = vmatprep.subr.mxu0 0.0
    %1689 = vmatpush1.msra.mxu0 0.0
    %1690 = vmatprep.subr.mxu0 0.0
    %1691 = vmatpush1.msra.mxu0 0.0
    %1692 = vmatprep.subr.mxu0 0.0
    %1693 = vmatpush1.msra.mxu0 0.0
    %1694 = vmatprep.subr.mxu0 0.0
    %1695 = vmatpush1.msra.mxu0 0.0
    %1696 = vmatprep.subr.mxu0 0.0
    %1697 = vmatpush1.msra.mxu0 0.0
    %1698 = vmatprep.subr.mxu0 0.0
    %1699 = vmatpush1.msra.mxu0 0.0
    %1700 = vmatprep.subr.mxu0 0.0
    %1701 = vmatpush1.msra.mxu0 0.0
    %1702 = vmatprep.subr.mxu0 0.0
    %1703 = vmatpush1.msra.mxu0 0.0
    %1704 = vmatprep.subr.mxu0 0.0
    %1705 = vmatpush1.msra.mxu0 0.0
    %1706 = vmatprep.subr.mxu0 0.0
    %1707 = vmatpush1.msra.mxu0 0.0
    %1708 = vmatprep.subr.mxu0 0.0
    %1709 = vmatpush1.msra.mxu0 0.0
    %1710 = vmatprep.subr.mxu0 0.0
    %1711 = vmatpush1.msra.mxu0 0.0
    %1712 = vmatprep.subr.mxu0 0.0
    %1713 = vmatpush1.msra.mxu0 0.0
    %1714 = vmatprep.subr.mxu0 0.0
    %1715 = vmatpush1.msra.mxu0 0.0
    %1716 = vmatprep.subr.mxu0 0.0
    %1717 = vmatpush1.msra.mxu0 0.0
    %1718 = vmatprep.mubr.f32.mxu0 0.0
    %1719 = vmatmul.mubr.f32.gmra.mrb[0].mxu0 %v1652
    %v1720 = vpop.f32.mrb[0].mxu0
    %v1721 = vadd.f32 0.0, %v1720
    %v1722 = vpop.f32.mrb[0].mxu0
    %1723 = vdwg.mxu0
    %v1725 = vsel %vm150, %v1721, 0
    %1727 = vmatprep.subr.mxu0 0.0
    %1728 = vmatpush1.msra.mxu0 %v51
    %1729 = vmatprep.subr.mxu0 0.0
    %1730 = vmatpush1.msra.mxu0 %v52
    %1731 = vmatprep.subr.mxu0 0.0
    %1732 = vmatpush1.msra.mxu0 0.0
    %1733 = vmatprep.subr.mxu0 0.0
    %1734 = vmatpush1.msra.mxu0 0.0
    %1735 = vmatprep.subr.mxu0 0.0
    %1736 = vmatpush1.msra.mxu0 0.0
    %1737 = vmatprep.subr.mxu0 0.0
    %1738 = vmatpush1.msra.mxu0 0.0
    %1739 = vmatprep.subr.mxu0 0.0
    %1740 = vmatpush1.msra.mxu0 0.0
    %1741 = vmatprep.subr.mxu0 0.0
    %1742 = vmatpush1.msra.mxu0 0.0
    %1743 = vmatprep.subr.mxu0 0.0
    %1744 = vmatpush1.msra.mxu0 0.0
    %1745 = vmatprep.subr.mxu0 0.0
    %1746 = vmatpush1.msra.mxu0 0.0
    %1747 = vmatprep.subr.mxu0 0.0
    %1748 = vmatpush1.msra.mxu0 0.0
    %1749 = vmatprep.subr.mxu0 0.0
    %1750 = vmatpush1.msra.mxu0 0.0
    %1751 = vmatprep.subr.mxu0 0.0
    %1752 = vmatpush1.msra.mxu0 0.0
    %1753 = vmatprep.subr.mxu0 0.0
    %1754 = vmatpush1.msra.mxu0 0.0
    %1755 = vmatprep.subr.mxu0 0.0
    %1756 = vmatpush1.msra.mxu0 0.0
    %1757 = vmatprep.subr.mxu0 0.0
    %1758 = vmatpush1.msra.mxu0 0.0
    %1759 = vmatprep.subr.mxu0 0.0
    %1760 = vmatpush1.msra.mxu0 0.0
    %1761 = vmatprep.subr.mxu0 0.0
    %1762 = vmatpush1.msra.mxu0 0.0
    %1763 = vmatprep.subr.mxu0 0.0
    %1764 = vmatpush1.msra.mxu0 0.0
    %1765 = vmatprep.subr.mxu0 0.0
    %1766 = vmatpush1.msra.mxu0 0.0
    %1767 = vmatprep.subr.mxu0 0.0
    %1768 = vmatpush1.msra.mxu0 0.0
    %1769 = vmatprep.subr.mxu0 0.0
    %1770 = vmatpush1.msra.mxu0 0.0
    %1771 = vmatprep.subr.mxu0 0.0
    %1772 = vmatpush1.msra.mxu0 0.0
    %1773 = vmatprep.subr.mxu0 0.0
    %1774 = vmatpush1.msra.mxu0 0.0
    %1775 = vmatprep.subr.mxu0 0.0
    %1776 = vmatpush1.msra.mxu0 0.0
    %1777 = vmatprep.subr.mxu0 0.0
    %1778 = vmatpush1.msra.mxu0 0.0
    %1779 = vmatprep.subr.mxu0 0.0
    %1780 = vmatpush1.msra.mxu0 0.0
    %1781 = vmatprep.subr.mxu0 0.0
    %1782 = vmatpush1.msra.mxu0 0.0
    %1783 = vmatprep.subr.mxu0 0.0
    %1784 = vmatpush1.msra.mxu0 0.0
    %1785 = vmatprep.subr.mxu0 0.0
    %1786 = vmatpush1.msra.mxu0 0.0
    %1787 = vmatprep.subr.mxu0 0.0
    %1788 = vmatpush1.msra.mxu0 0.0
    %1789 = vmatprep.subr.mxu0 0.0
    %1790 = vmatpush1.msra.mxu0 0.0
    %1791 = vmatprep.mubr.f32.mxu0 0.0
    %1792 = vmatmul.mubr.f32.gmra.mrb[0].mxu0 %v1725
    %v1793 = vpop.f32.mrb[0].mxu0
    %v1794 = vadd.f32 %v148, %v1793
    %v1795 = vpop.f32.mrb[0].mxu0
    %1796 = vdwg.mxu0
    %v1797 = vsel %vm230, %v1635, 0
    %1799 = vmatprep.subr.mxu0 0.0
    %1800 = vmatpush1.msra.mxu0 %v53
    %1801 = vmatprep.subr.mxu0 0.0
    %1802 = vmatpush1.msra.mxu0 0.0
    %1803 = vmatprep.subr.mxu0 0.0
    %1804 = vmatpush1.msra.mxu0 0.0
    %1805 = vmatprep.subr.mxu0 0.0
    %1806 = vmatpush1.msra.mxu0 0.0
    %1807 = vmatprep.subr.mxu0 0.0
    %1808 = vmatpush1.msra.mxu0 0.0
    %1809 = vmatprep.subr.mxu0 0.0
    %1810 = vmatpush1.msra.mxu0 0.0
    %1811 = vmatprep.subr.mxu0 0.0
    %1812 = vmatpush1.msra.mxu0 0.0
    %1813 = vmatprep.subr.mxu0 0.0
    %1814 = vmatpush1.msra.mxu0 0.0
    %1815 = vmatprep.subr.mxu0 0.0
    %1816 = vmatpush1.msra.mxu0 0.0
    %1817 = vmatprep.subr.mxu0 0.0
    %1818 = vmatpush1.msra.mxu0 0.0
    %1819 = vmatprep.subr.mxu0 0.0
    %1820 = vmatpush1.msra.mxu0 0.0
    %1821 = vmatprep.subr.mxu0 0.0
    %1822 = vmatpush1.msra.mxu0 0.0
    %1823 = vmatprep.subr.mxu0 0.0
    %1824 = vmatpush1.msra.mxu0 0.0
    %1825 = vmatprep.subr.mxu0 0.0
    %1826 = vmatpush1.msra.mxu0 0.0
    %1827 = vmatprep.subr.mxu0 0.0
    %1828 = vmatpush1.msra.mxu0 0.0
    %1829 = vmatprep.subr.mxu0 0.0
    %1830 = vmatpush1.msra.mxu0 0.0
    %1831 = vmatprep.subr.mxu0 0.0
    %1832 = vmatpush1.msra.mxu0 0.0
    %1833 = vmatprep.subr.mxu0 0.0
    %1834 = vmatpush1.msra.mxu0 0.0
    %1835 = vmatprep.subr.mxu0 0.0
    %1836 = vmatpush1.msra.mxu0 0.0
    %1837 = vmatprep.subr.mxu0 0.0
    %1838 = vmatpush1.msra.mxu0 0.0
    %1839 = vmatprep.subr.mxu0 0.0
    %1840 = vmatpush1.msra.mxu0 0.0
    %1841 = vmatprep.subr.mxu0 0.0
    %1842 = vmatpush1.msra.mxu0 0.0
    %1843 = vmatprep.subr.mxu0 0.0
    %1844 = vmatpush1.msra.mxu0 0.0
    %1845 = vmatprep.subr.mxu0 0.0
    %1846 = vmatpush1.msra.mxu0 0.0
    %1847 = vmatprep.subr.mxu0 0.0
    %1848 = vmatpush1.msra.mxu0 0.0
    %1849 = vmatprep.subr.mxu0 0.0
    %1850 = vmatpush1.msra.mxu0 0.0
    %1851 = vmatprep.subr.mxu0 0.0
    %1852 = vmatpush1.msra.mxu0 0.0
    %1853 = vmatprep.subr.mxu0 0.0
    %1854 = vmatpush1.msra.mxu0 0.0
    %1855 = vmatprep.subr.mxu0 0.0
    %1856 = vmatpush1.msra.mxu0 0.0
    %1857 = vmatprep.subr.mxu0 0.0
    %1858 = vmatpush1.msra.mxu0 0.0
    %1859 = vmatprep.subr.mxu0 0.0
    %1860 = vmatpush1.msra.mxu0 0.0
    %1861 = vmatprep.subr.mxu0 0.0
    %1862 = vmatpush1.msra.mxu0 0.0
    %1863 = vmatprep.mubr.f32.mxu0 0.0
    %1864 = vmatmul.mubr.f32.gmra.mrb[0].mxu0 %v1797
    %v1865 = vpop.f32.mrb[0].mxu0
    %v1866 = vadd.f32 %v228, %v1865
    %v1867 = vpop.f32.mrb[0].mxu0
    %1868 = vdwg.mxu0
    %v1869 = vadd.f32 %v1794, %v1866
    %v1870 = vxor.u32 %v1869, 2147483648
    %v1871 = vmul.f32 %v1870, 1.442695
    %v1872 = vpow.pop %v1871
    %v1873 = vadd.f32 %v1872, 1.0
    %v1874 = vrcp.pop %v1873
    %v1875 = vmul.f32 1.0, %v1874
    %1877 = vrot.lane.b32.xlu0 %v1866, 112
    %v1878 = vpop.permute.xlu0 %1877
    %v1880 = vmul.f32 %v1875, %v1878
    %1882 = vrot.lane.b32.xlu0 %v1880, 16
    %v1883 = vpop.permute.xlu0 %1882
    %v1885 = vadd.f32 %v1794, %v1883
    %v1886 = vtanh.pop %v1885
    %v1887 = vsub.f32 1.0, %v1875
    %1889 = vrot.lane.b32.xlu0 %v1886, 120
    %v1890 = vpop.permute.xlu0 %1889
    %v1892 = vmul.f32 %v1887, %v1890
    %v1893 = vmul.f32 %v1875, %v1375
    %v1894 = vadd.f32 %v1892, %v1893
    %s1895 = scalar_lea.vmem %s0, 16
    %v1896 = vld [vmem:[%s1895] sm:$0xf]
    %vm1897 = vcmp.ge.s32.totalorder %v1896, 32
    %v1898 = vsel %vm1897, 1, %v1896
    %1899 = vset.pattern.permute.xlu0 0
    %1900 = vperm.xlu0 %1899, %v1898
    %v1901 = vpop.permute.xlu0 %1900
    %vm1902 = vcmp.eq.s32.totalorder %v50, %v1901
    %v1903 = vsel %vm1902, 1, 0
    %v1904 = vcvt.s32.f32 %v1903
    %v1906 = vsel %vm70, %v1904, 0
    %1908 = vmatprep.subr.mxu0 0.0
    %1909 = vmatpush1.msra.mxu0 %v45
    %1910 = vmatprep.subr.mxu0 0.0
    %1911 = vmatpush1.msra.mxu0 %v46
    %1912 = vmatprep.subr.mxu0 0.0
    %1913 = vmatpush1.msra.mxu0 %v47
    %1914 = vmatprep.subr.mxu0 0.0
    %1915 = vmatpush1.msra.mxu0 %v48
    %1916 = vmatprep.subr.mxu0 0.0
    %1917 = vmatpush1.msra.mxu0 0.0
    %1918 = vmatprep.subr.mxu0 0.0
    %1919 = vmatpush1.msra.mxu0 0.0
    %1920 = vmatprep.subr.mxu0 0.0
    %1921 = vmatpush1.msra.mxu0 0.0
    %1922 = vmatprep.subr.mxu0 0.0
    %1923 = vmatpush1.msra.mxu0 0.0
    %1924 = vmatprep.subr.mxu0 0.0
    %1925 = vmatpush1.msra.mxu0 0.0
    %1926 = vmatprep.subr.mxu0 0.0
    %1927 = vmatpush1.msra.mxu0 0.0
    %1928 = vmatprep.subr.mxu0 0.0
    %1929 = vmatpush1.msra.mxu0 0.0
    %1930 = vmatprep.subr.mxu0 0.0
    %1931 = vmatpush1.msra.mxu0 0.0
    %1932 = vmatprep.subr.mxu0 0.0
    %1933 = vmatpush1.msra.mxu0 0.0
    %1934 = vmatprep.subr.mxu0 0.0
    %1935 = vmatpush1.msra.mxu0 0.0
    %1936 = vmatprep.subr.mxu0 0.0
    %1937 = vmatpush1.msra.mxu0 0.0
    %1938 = vmatprep.subr.mxu0 0.0
    %1939 = vmatpush1.msra.mxu0 0.0
    %1940 = vmatprep.subr.mxu0 0.0
    %1941 = vmatpush1.msra.mxu0 0.0
    %1942 = vmatprep.subr.mxu0 0.0
    %1943 = vmatpush1.msra.mxu0 0.0
    %1944 = vmatprep.subr.mxu0 0.0
    %1945 = vmatpush1.msra.mxu0 0.0
    %1946 = vmatprep.subr.mxu0 0.0
    %1947 = vmatpush1.msra.mxu0 0.0
    %1948 = vmatprep.subr.mxu0 0.0
    %1949 = vmatpush1.msra.mxu0 0.0
    %1950 = vmatprep.subr.mxu0 0.0
    %1951 = vmatpush1.msra.mxu0 0.0
    %1952 = vmatprep.subr.mxu0 0.0
    %1953 = vmatpush1.msra.mxu0 0.0
    %1954 = vmatprep.subr.mxu0 0.0
    %1955 = vmatpush1.msra.mxu0 0.0
    %1956 = vmatprep.subr.mxu0 0.0
    %1957 = vmatpush1.msra.mxu0 0.0
    %1958 = vmatprep.subr.mxu0 0.0
    %1959 = vmatpush1.msra.mxu0 0.0
    %1960 = vmatprep.subr.mxu0 0.0
    %1961 = vmatpush1.msra.mxu0 0.0
    %1962 = vmatprep.subr.mxu0 0.0
    %1963 = vmatpush1.msra.mxu0 0.0
    %1964 = vmatprep.subr.mxu0 0.0
    %1965 = vmatpush1.msra.mxu0 0.0
    %1966 = vmatprep.subr.mxu0 0.0
    %1967 = vmatpush1.msra.mxu0 0.0
    %1968 = vmatprep.subr.mxu0 0.0
    %1969 = vmatpush1.msra.mxu0 0.0
    %1970 = vmatprep.subr.mxu0 0.0
    %1971 = vmatpush1.msra.mxu0 0.0
    %1972 = vmatprep.mubr.f32.mxu0 0.0
    %1973 = vmatmul.mubr.f32.gmra.mrb[0].mxu0 %v1906
    %v1974 = vpop.f32.mrb[0].mxu0
    %v1975 = vadd.f32 0.0, %v1974
    %v1976 = vpop.f32.mrb[0].mxu0
    %1977 = vdwg.mxu0
    %v1979 = vsel %vm150, %v1975, 0
    %1981 = vmatprep.subr.mxu0 0.0
    %1982 = vmatpush1.msra.mxu0 %v56
    %1983 = vmatprep.subr.mxu0 0.0
    %1984 = vmatpush1.msra.mxu0 %v57
    %1985 = vmatprep.subr.mxu0 0.0
    %1986 = vmatpush1.msra.mxu0 0.0
    %1987 = vmatprep.subr.mxu0 0.0
    %1988 = vmatpush1.msra.mxu0 0.0
    %1989 = vmatprep.subr.mxu0 0.0
    %1990 = vmatpush1.msra.mxu0 0.0
    %1991 = vmatprep.subr.mxu0 0.0
    %1992 = vmatpush1.msra.mxu0 0.0
    %1993 = vmatprep.subr.mxu0 0.0
    %1994 = vmatpush1.msra.mxu0 0.0
    %1995 = vmatprep.subr.mxu0 0.0
    %1996 = vmatpush1.msra.mxu0 0.0
    %1997 = vmatprep.subr.mxu0 0.0
    %1998 = vmatpush1.msra.mxu0 0.0
    %1999 = vmatprep.subr.mxu0 0.0
    %2000 = vmatpush1.msra.mxu0 0.0
    %2001 = vmatprep.subr.mxu0 0.0
    %2002 = vmatpush1.msra.mxu0 0.0
    %2003 = vmatprep.subr.mxu0 0.0
    %2004 = vmatpush1.msra.mxu0 0.0
    %2005 = vmatprep.subr.mxu0 0.0
    %2006 = vmatpush1.msra.mxu0 0.0
    %2007 = vmatprep.subr.mxu0 0.0
    %2008 = vmatpush1.msra.mxu0 0.0
    %2009 = vmatprep.subr.mxu0 0.0
    %2010 = vmatpush1.msra.mxu0 0.0
    %2011 = vmatprep.subr.mxu0 0.0
    %2012 = vmatpush1.msra.mxu0 0.0
    %2013 = vmatprep.subr.mxu0 0.0
    %2014 = vmatpush1.msra.mxu0 0.0
    %2015 = vmatprep.subr.mxu0 0.0
    %2016 = vmatpush1.msra.mxu0 0.0
    %2017 = vmatprep.subr.mxu0 0.0
    %2018 = vmatpush1.msra.mxu0 0.0
    %2019 = vmatprep.subr.mxu0 0.0
    %2020 = vmatpush1.msra.mxu0 0.0
    %2021 = vmatprep.subr.mxu0 0.0
    %2022 = vmatpush1.msra.mxu0 0.0
    %2023 = vmatprep.subr.mxu0 0.0
    %2024 = vmatpush1.msra.mxu0 0.0
    %2025 = vmatprep.subr.mxu0 0.0
    %2026 = vmatpush1.msra.mxu0 0.0
    %2027 = vmatprep.subr.mxu0 0.0
    %2028 = vmatpush1.msra.mxu0 0.0
    %2029 = vmatprep.subr.mxu0 0.0
    %2030 = vmatpush1.msra.mxu0 0.0
    %2031 = vmatprep.subr.mxu0 0.0
    %2032 = vmatpush1.msra.mxu0 0.0
    %2033 = vmatprep.subr.mxu0 0.0
    %2034 = vmatpush1.msra.mxu0 0.0
    %2035 = vmatprep.subr.mxu0 0.0
    %2036 = vmatpush1.msra.mxu0 0.0
    %2037 = vmatprep.subr.mxu0 0.0
    %2038 = vmatpush1.msra.mxu0 0.0
    %2039 = vmatprep.subr.mxu0 0.0
    %2040 = vmatpush1.msra.mxu0 0.0
    %2041 = vmatprep.subr.mxu0 0.0
    %2042 = vmatpush1.msra.mxu0 0.0
    %2043 = vmatprep.subr.mxu0 0.0
    %2044 = vmatpush1.msra.mxu0 0.0
    %2045 = vmatprep.mubr.f32.mxu0 0.0
    %2046 = vmatmul.mubr.f32.gmra.mrb[0].mxu0 %v1979
    %v2047 = vpop.f32.mrb[0].mxu0
    %v2048 = vadd.f32 %v417, %v2047
    %v2049 = vpop.f32.mrb[0].mxu0
    %2050 = vdwg.mxu0
    %2052 = vrot.lane.b32.xlu0 %v1632, 120
    %v2053 = vpop.permute.xlu0 %2052
    %v2054 = vsel %vm230, %v2053, 0
    %2056 = vmatprep.subr.mxu0 0.0
    %2057 = vmatpush1.msra.mxu0 %v58
    %2058 = vmatprep.subr.mxu0 0.0
    %2059 = vmatpush1.msra.mxu0 0.0
    %2060 = vmatprep.subr.mxu0 0.0
    %2061 = vmatpush1.msra.mxu0 0.0
    %2062 = vmatprep.subr.mxu0 0.0
    %2063 = vmatpush1.msra.mxu0 0.0
    %2064 = vmatprep.subr.mxu0 0.0
    %2065 = vmatpush1.msra.mxu0 0.0
    %2066 = vmatprep.subr.mxu0 0.0
    %2067 = vmatpush1.msra.mxu0 0.0
    %2068 = vmatprep.subr.mxu0 0.0
    %2069 = vmatpush1.msra.mxu0 0.0
    %2070 = vmatprep.subr.mxu0 0.0
    %2071 = vmatpush1.msra.mxu0 0.0
    %2072 = vmatprep.subr.mxu0 0.0
    %2073 = vmatpush1.msra.mxu0 0.0
    %2074 = vmatprep.subr.mxu0 0.0
    %2075 = vmatpush1.msra.mxu0 0.0
    %2076 = vmatprep.subr.mxu0 0.0
    %2077 = vmatpush1.msra.mxu0 0.0
    %2078 = vmatprep.subr.mxu0 0.0
    %2079 = vmatpush1.msra.mxu0 0.0
    %2080 = vmatprep.subr.mxu0 0.0
    %2081 = vmatpush1.msra.mxu0 0.0
    %2082 = vmatprep.subr.mxu0 0.0
    %2083 = vmatpush1.msra.mxu0 0.0
    %2084 = vmatprep.subr.mxu0 0.0
    %2085 = vmatpush1.msra.mxu0 0.0
    %2086 = vmatprep.subr.mxu0 0.0
    %2087 = vmatpush1.msra.mxu0 0.0
    %2088 = vmatprep.subr.mxu0 0.0
    %2089 = vmatpush1.msra.mxu0 0.0
    %2090 = vmatprep.subr.mxu0 0.0
    %2091 = vmatpush1.msra.mxu0 0.0
    %2092 = vmatprep.subr.mxu0 0.0
    %2093 = vmatpush1.msra.mxu0 0.0
    %2094 = vmatprep.subr.mxu0 0.0
    %2095 = vmatpush1.msra.mxu0 0.0
    %2096 = vmatprep.subr.mxu0 0.0
    %2097 = vmatpush1.msra.mxu0 0.0
    %2098 = vmatprep.subr.mxu0 0.0
    %2099 = vmatpush1.msra.mxu0 0.0
    %2100 = vmatprep.subr.mxu0 0.0
    %2101 = vmatpush1.msra.mxu0 0.0
    %2102 = vmatprep.subr.mxu0 0.0
    %2103 = vmatpush1.msra.mxu0 0.0
    %2104 = vmatprep.subr.mxu0 0.0
    %2105 = vmatpush1.msra.mxu0 0.0
    %2106 = vmatprep.subr.mxu0 0.0
    %2107 = vmatpush1.msra.mxu0 0.0
    %2108 = vmatprep.subr.mxu0 0.0
    %2109 = vmatpush1.msra.mxu0 0.0
    %2110 = vmatprep.subr.mxu0 0.0
    %2111 = vmatpush1.msra.mxu0 0.0
    %2112 = vmatprep.subr.mxu0 0.0
    %2113 = vmatpush1.msra.mxu0 0.0
    %2114 = vmatprep.subr.mxu0 0.0
    %2115 = vmatpush1.msra.mxu0 0.0
    %2116 = vmatprep.subr.mxu0 0.0
    %2117 = vmatpush1.msra.mxu0 0.0
    %2118 = vmatprep.subr.mxu0 0.0
    %2119 = vmatpush1.msra.mxu0 0.0
    %2120 = vmatprep.mubr.f32.mxu0 0.0
    %2121 = vmatmul.mubr.f32.gmra.mrb[0].mxu0 %v2054
    %v2122 = vpop.f32.mrb[0].mxu0
    %v2123 = vadd.f32 %v496, %v2122
    %v2124 = vpop.f32.mrb[0].mxu0
    %2125 = vdwg.mxu0
    %v2126 = vadd.f32 %v2048, %v2123
    %v2127 = vxor.u32 %v2126, 2147483648
    %v2128 = vmul.f32 %v2127, 1.442695
    %v2129 = vpow.pop %v2128
    %v2130 = vadd.f32 %v2129, 1.0
    %v2131 = vrcp.pop %v2130
    %v2132 = vmul.f32 1.0, %v2131
    %2134 = vrot.lane.b32.xlu0 %v2123, 112
    %v2135 = vpop.permute.xlu0 %2134
    %v2137 = vmul.f32 %v2132, %v2135
    %2139 = vrot.lane.b32.xlu0 %v2137, 16
    %v2140 = vpop.permute.xlu0 %2139
    %v2142 = vadd.f32 %v2048, %v2140
    %v2143 = vtanh.pop %v2142
    %v2144 = vsub.f32 1.0, %v2132
    %2146 = vrot.lane.b32.xlu0 %v2143, 120
    %v2147 = vpop.permute.xlu0 %2146
    %v2149 = vmul.f32 %v2144, %v2147
    %v2150 = vmul.f32 %v2132, %v1632
    %v2151 = vadd.f32 %v2149, %v2150
    %2153 = vrot.lane.b32.xlu0 %v1894, 120
    %v2154 = vpop.permute.xlu0 %2153
    %s2156 = scalar_lea.vmem [#allocation2], 12
    %2157 = vst.msk [vmem:[%s2156] sm:$0xf] %vm598, %v2154
    %s2158 = scalar_lea.vmem [#allocation2], 16
    %2159 = vst.msk [vmem:[%s2158] sm:$0xf] %vm601, %v2151
    %v2160 = vld [vmem:[%s1895] sm:$0xf]
    %vm2161 = vcmp.ge.s32.totalorder %v2160, 32
    %v2162 = vsel %vm2161, 1, %v2160
    %2163 = vset.pattern.permute.xlu0 0
    %2164 = vperm.xlu0 %2163, %v2162
    %v2165 = vpop.permute.xlu0 %2164
    %vm2166 = vcmp.eq.s32.totalorder %v50, %v2165
    %v2167 = vsel %vm2166, 1, 0
    %v2168 = vcvt.s32.f32 %v2167
    %v2170 = vsel %vm70, %v2168, 0
    %2172 = vmatprep.subr.mxu0 0.0
    %2173 = vmatpush1.msra.mxu0 %v45
    %2174 = vmatprep.subr.mxu0 0.0
    %2175 = vmatpush1.msra.mxu0 %v46
    %2176 = vmatprep.subr.mxu0 0.0
    %2177 = vmatpush1.msra.mxu0 %v47
    %2178 = vmatprep.subr.mxu0 0.0
    %2179 = vmatpush1.msra.mxu0 %v48
    %2180 = vmatprep.subr.mxu0 0.0
    %2181 = vmatpush1.msra.mxu0 0.0
    %2182 = vmatprep.subr.mxu0 0.0
    %2183 = vmatpush1.msra.mxu0 0.0
    %2184 = vmatprep.subr.mxu0 0.0
    %2185 = vmatpush1.msra.mxu0 0.0
    %2186 = vmatprep.subr.mxu0 0.0
    %2187 = vmatpush1.msra.mxu0 0.0
    %2188 = vmatprep.subr.mxu0 0.0
    %2189 = vmatpush1.msra.mxu0 0.0
    %2190 = vmatprep.subr.mxu0 0.0
    %2191 = vmatpush1.msra.mxu0 0.0
    %2192 = vmatprep.subr.mxu0 0.0
    %2193 = vmatpush1.msra.mxu0 0.0
    %2194 = vmatprep.subr.mxu0 0.0
    %2195 = vmatpush1.msra.mxu0 0.0
    %2196 = vmatprep.subr.mxu0 0.0
    %2197 = vmatpush1.msra.mxu0 0.0
    %2198 = vmatprep.subr.mxu0 0.0
    %2199 = vmatpush1.msra.mxu0 0.0
    %2200 = vmatprep.subr.mxu0 0.0
    %2201 = vmatpush1.msra.mxu0 0.0
    %2202 = vmatprep.subr.mxu0 0.0
    %2203 = vmatpush1.msra.mxu0 0.0
    %2204 = vmatprep.subr.mxu0 0.0
    %2205 = vmatpush1.msra.mxu0 0.0
    %2206 = vmatprep.subr.mxu0 0.0
    %2207 = vmatpush1.msra.mxu0 0.0
    %2208 = vmatprep.subr.mxu0 0.0
    %2209 = vmatpush1.msra.mxu0 0.0
    %2210 = vmatprep.subr.mxu0 0.0
    %2211 = vmatpush1.msra.mxu0 0.0
    %2212 = vmatprep.subr.mxu0 0.0
    %2213 = vmatpush1.msra.mxu0 0.0
    %2214 = vmatprep.subr.mxu0 0.0
    %2215 = vmatpush1.msra.mxu0 0.0
    %2216 = vmatprep.subr.mxu0 0.0
    %2217 = vmatpush1.msra.mxu0 0.0
    %2218 = vmatprep.subr.mxu0 0.0
    %2219 = vmatpush1.msra.mxu0 0.0
    %2220 = vmatprep.subr.mxu0 0.0
    %2221 = vmatpush1.msra.mxu0 0.0
    %2222 = vmatprep.subr.mxu0 0.0
    %2223 = vmatpush1.msra.mxu0 0.0
    %2224 = vmatprep.subr.mxu0 0.0
    %2225 = vmatpush1.msra.mxu0 0.0
    %2226 = vmatprep.subr.mxu0 0.0
    %2227 = vmatpush1.msra.mxu0 0.0
    %2228 = vmatprep.subr.mxu0 0.0
    %2229 = vmatpush1.msra.mxu0 0.0
    %2230 = vmatprep.subr.mxu0 0.0
    %2231 = vmatpush1.msra.mxu0 0.0
    %2232 = vmatprep.subr.mxu0 0.0
    %2233 = vmatpush1.msra.mxu0 0.0
    %2234 = vmatprep.subr.mxu0 0.0
    %2235 = vmatpush1.msra.mxu0 0.0
    %2236 = vmatprep.mubr.f32.mxu0 0.0
    %2237 = vmatmul.mubr.f32.gmra.mrb[0].mxu0 %v2170
    %v2238 = vpop.f32.mrb[0].mxu0
    %v2239 = vadd.f32 0.0, %v2238
    %v2240 = vpop.f32.mrb[0].mxu0
    %2241 = vdwg.mxu0
    %v2243 = vsel %vm150, %v2239, 0
    %2245 = vmatprep.subr.mxu0 0.0
    %2246 = vmatpush1.msra.mxu0 %v51
    %2247 = vmatprep.subr.mxu0 0.0
    %2248 = vmatpush1.msra.mxu0 %v52
    %2249 = vmatprep.subr.mxu0 0.0
    %2250 = vmatpush1.msra.mxu0 0.0
    %2251 = vmatprep.subr.mxu0 0.0
    %2252 = vmatpush1.msra.mxu0 0.0
    %2253 = vmatprep.subr.mxu0 0.0
    %2254 = vmatpush1.msra.mxu0 0.0
    %2255 = vmatprep.subr.mxu0 0.0
    %2256 = vmatpush1.msra.mxu0 0.0
    %2257 = vmatprep.subr.mxu0 0.0
    %2258 = vmatpush1.msra.mxu0 0.0
    %2259 = vmatprep.subr.mxu0 0.0
    %2260 = vmatpush1.msra.mxu0 0.0
    %2261 = vmatprep.subr.mxu0 0.0
    %2262 = vmatpush1.msra.mxu0 0.0
    %2263 = vmatprep.subr.mxu0 0.0
    %2264 = vmatpush1.msra.mxu0 0.0
    %2265 = vmatprep.subr.mxu0 0.0
    %2266 = vmatpush1.msra.mxu0 0.0
    %2267 = vmatprep.subr.mxu0 0.0
    %2268 = vmatpush1.msra.mxu0 0.0
    %2269 = vmatprep.subr.mxu0 0.0
    %2270 = vmatpush1.msra.mxu0 0.0
    %2271 = vmatprep.subr.mxu0 0.0
    %2272 = vmatpush1.msra.mxu0 0.0
    %2273 = vmatprep.subr.mxu0 0.0
    %2274 = vmatpush1.msra.mxu0 0.0
    %2275 = vmatprep.subr.mxu0 0.0
    %2276 = vmatpush1.msra.mxu0 0.0
    %2277 = vmatprep.subr.mxu0 0.0
    %2278 = vmatpush1.msra.mxu0 0.0
    %2279 = vmatprep.subr.mxu0 0.0
    %2280 = vmatpush1.msra.mxu0 0.0
    %2281 = vmatprep.subr.mxu0 0.0
    %2282 = vmatpush1.msra.mxu0 0.0
    %2283 = vmatprep.subr.mxu0 0.0
    %2284 = vmatpush1.msra.mxu0 0.0
    %2285 = vmatprep.subr.mxu0 0.0
    %2286 = vmatpush1.msra.mxu0 0.0
    %2287 = vmatprep.subr.mxu0 0.0
    %2288 = vmatpush1.msra.mxu0 0.0
    %2289 = vmatprep.subr.mxu0 0.0
    %2290 = vmatpush1.msra.mxu0 0.0
    %2291 = vmatprep.subr.mxu0 0.0
    %2292 = vmatpush1.msra.mxu0 0.0
    %2293 = vmatprep.subr.mxu0 0.0
    %2294 = vmatpush1.msra.mxu0 0.0
    %2295 = vmatprep.subr.mxu0 0.0
    %2296 = vmatpush1.msra.mxu0 0.0
    %2297 = vmatprep.subr.mxu0 0.0
    %2298 = vmatpush1.msra.mxu0 0.0
    %2299 = vmatprep.subr.mxu0 0.0
    %2300 = vmatpush1.msra.mxu0 0.0
    %2301 = vmatprep.subr.mxu0 0.0
    %2302 = vmatpush1.msra.mxu0 0.0
    %2303 = vmatprep.subr.mxu0 0.0
    %2304 = vmatpush1.msra.mxu0 0.0
    %2305 = vmatprep.subr.mxu0 0.0
    %2306 = vmatpush1.msra.mxu0 0.0
    %2307 = vmatprep.subr.mxu0 0.0
    %2308 = vmatpush1.msra.mxu0 0.0
    %2309 = vmatprep.mubr.f32.mxu0 0.0
    %2310 = vmatmul.mubr.f32.gmra.mrb[0].mxu0 %v2243
    %v2311 = vpop.f32.mrb[0].mxu0
    %v2312 = vadd.f32 %v148, %v2311
    %v2313 = vpop.f32.mrb[0].mxu0
    %2314 = vdwg.mxu0
    %v2315 = vsel %vm230, %v2154, 0
    %2317 = vmatprep.subr.mxu0 0.0
    %2318 = vmatpush1.msra.mxu0 %v53
    %2319 = vmatprep.subr.mxu0 0.0
    %2320 = vmatpush1.msra.mxu0 0.0
    %2321 = vmatprep.subr.mxu0 0.0
    %2322 = vmatpush1.msra.mxu0 0.0
    %2323 = vmatprep.subr.mxu0 0.0
    %2324 = vmatpush1.msra.mxu0 0.0
    %2325 = vmatprep.subr.mxu0 0.0
    %2326 = vmatpush1.msra.mxu0 0.0
    %2327 = vmatprep.subr.mxu0 0.0
    %2328 = vmatpush1.msra.mxu0 0.0
    %2329 = vmatprep.subr.mxu0 0.0
    %2330 = vmatpush1.msra.mxu0 0.0
    %2331 = vmatprep.subr.mxu0 0.0
    %2332 = vmatpush1.msra.mxu0 0.0
    %2333 = vmatprep.subr.mxu0 0.0
    %2334 = vmatpush1.msra.mxu0 0.0
    %2335 = vmatprep.subr.mxu0 0.0
    %2336 = vmatpush1.msra.mxu0 0.0
    %2337 = vmatprep.subr.mxu0 0.0
    %2338 = vmatpush1.msra.mxu0 0.0
    %2339 = vmatprep.subr.mxu0 0.0
    %2340 = vmatpush1.msra.mxu0 0.0
    %2341 = vmatprep.subr.mxu0 0.0
    %2342 = vmatpush1.msra.mxu0 0.0
    %2343 = vmatprep.subr.mxu0 0.0
    %2344 = vmatpush1.msra.mxu0 0.0
    %2345 = vmatprep.subr.mxu0 0.0
    %2346 = vmatpush1.msra.mxu0 0.0
    %2347 = vmatprep.subr.mxu0 0.0
    %2348 = vmatpush1.msra.mxu0 0.0
    %2349 = vmatprep.subr.mxu0 0.0
    %2350 = vmatpush1.msra.mxu0 0.0
    %2351 = vmatprep.subr.mxu0 0.0
    %2352 = vmatpush1.msra.mxu0 0.0
    %2353 = vmatprep.subr.mxu0 0.0
    %2354 = vmatpush1.msra.mxu0 0.0
    %2355 = vmatprep.subr.mxu0 0.0
    %2356 = vmatpush1.msra.mxu0 0.0
    %2357 = vmatprep.subr.mxu0 0.0
    %2358 = vmatpush1.msra.mxu0 0.0
    %2359 = vmatprep.subr.mxu0 0.0
    %2360 = vmatpush1.msra.mxu0 0.0
    %2361 = vmatprep.subr.mxu0 0.0
    %2362 = vmatpush1.msra.mxu0 0.0
    %2363 = vmatprep.subr.mxu0 0.0
    %2364 = vmatpush1.msra.mxu0 0.0
    %2365 = vmatprep.subr.mxu0 0.0
    %2366 = vmatpush1.msra.mxu0 0.0
    %2367 = vmatprep.subr.mxu0 0.0
    %2368 = vmatpush1.msra.mxu0 0.0
    %2369 = vmatprep.subr.mxu0 0.0
    %2370 = vmatpush1.msra.mxu0 0.0
    %2371 = vmatprep.subr.mxu0 0.0
    %2372 = vmatpush1.msra.mxu0 0.0
    %2373 = vmatprep.subr.mxu0 0.0
    %2374 = vmatpush1.msra.mxu0 0.0
    %2375 = vmatprep.subr.mxu0 0.0
    %2376 = vmatpush1.msra.mxu0 0.0
    %2377 = vmatprep.subr.mxu0 0.0
    %2378 = vmatpush1.msra.mxu0 0.0
    %2379 = vmatprep.subr.mxu0 0.0
    %2380 = vmatpush1.msra.mxu0 0.0
    %2381 = vmatprep.mubr.f32.mxu0 0.0
    %2382 = vmatmul.mubr.f32.gmra.mrb[0].mxu0 %v2315
    %v2383 = vpop.f32.mrb[0].mxu0
    %v2384 = vadd.f32 %v228, %v2383
    %v2385 = vpop.f32.mrb[0].mxu0
    %2386 = vdwg.mxu0
    %v2387 = vadd.f32 %v2312, %v2384
    %v2388 = vxor.u32 %v2387, 2147483648
    %v2389 = vmul.f32 %v2388, 1.442695
    %v2390 = vpow.pop %v2389
    %v2391 = vadd.f32 %v2390, 1.0
    %v2392 = vrcp.pop %v2391
    %v2393 = vmul.f32 1.0, %v2392
    %2395 = vrot.lane.b32.xlu0 %v2384, 112
    %v2396 = vpop.permute.xlu0 %2395
    %v2398 = vmul.f32 %v2393, %v2396
    %2400 = vrot.lane.b32.xlu0 %v2398, 16
    %v2401 = vpop.permute.xlu0 %2400
    %v2403 = vadd.f32 %v2312, %v2401
    %v2404 = vtanh.pop %v2403
    %v2405 = vsub.f32 1.0, %v2393
    %2407 = vrot.lane.b32.xlu0 %v2404, 120
    %v2408 = vpop.permute.xlu0 %2407
    %v2410 = vmul.f32 %v2405, %v2408
    %v2411 = vmul.f32 %v2393, %v1894
    %v2412 = vadd.f32 %v2410, %v2411
    %v2413 = vld [vmem:[%s1641] sm:$0xf]
    %vm2414 = vcmp.ge.s32.totalorder %v2413, 32
    %v2415 = vsel %vm2414, 1, %v2413
    %2416 = vset.pattern.permute.xlu0 0
    %2417 = vperm.xlu0 %2416, %v2415
    %v2418 = vpop.permute.xlu0 %2417
    %vm2419 = vcmp.eq.s32.totalorder %v50, %v2418
    %v2420 = vsel %vm2419, 1, 0
    %v2421 = vcvt.s32.f32 %v2420
    %v2423 = vsel %vm70, %v2421, 0
    %2425 = vmatprep.subr.mxu0 0.0
    %2426 = vmatpush1.msra.mxu0 %v45
    %2427 = vmatprep.subr.mxu0 0.0
    %2428 = vmatpush1.msra.mxu0 %v46
    %2429 = vmatprep.subr.mxu0 0.0
    %2430 = vmatpush1.msra.mxu0 %v47
    %2431 = vmatprep.subr.mxu0 0.0
    %2432 = vmatpush1.msra.mxu0 %v48
    %2433 = vmatprep.subr.mxu0 0.0
    %2434 = vmatpush1.msra.mxu0 0.0
    %2435 = vmatprep.subr.mxu0 0.0
    %2436 = vmatpush1.msra.mxu0 0.0
    %2437 = vmatprep.subr.mxu0 0.0
    %2438 = vmatpush1.msra.mxu0 0.0
    %2439 = vmatprep.subr.mxu0 0.0
    %2440 = vmatpush1.msra.mxu0 0.0
    %2441 = vmatprep.subr.mxu0 0.0
    %2442 = vmatpush1.msra.mxu0 0.0
    %2443 = vmatprep.subr.mxu0 0.0
    %2444 = vmatpush1.msra.mxu0 0.0
    %2445 = vmatprep.subr.mxu0 0.0
    %2446 = vmatpush1.msra.mxu0 0.0
    %2447 = vmatprep.subr.mxu0 0.0
    %2448 = vmatpush1.msra.mxu0 0.0
    %2449 = vmatprep.subr.mxu0 0.0
    %2450 = vmatpush1.msra.mxu0 0.0
    %2451 = vmatprep.subr.mxu0 0.0
    %2452 = vmatpush1.msra.mxu0 0.0
    %2453 = vmatprep.subr.mxu0 0.0
    %2454 = vmatpush1.msra.mxu0 0.0
    %2455 = vmatprep.subr.mxu0 0.0
    %2456 = vmatpush1.msra.mxu0 0.0
    %2457 = vmatprep.subr.mxu0 0.0
    %2458 = vmatpush1.msra.mxu0 0.0
    %2459 = vmatprep.subr.mxu0 0.0
    %2460 = vmatpush1.msra.mxu0 0.0
    %2461 = vmatprep.subr.mxu0 0.0
    %2462 = vmatpush1.msra.mxu0 0.0
    %2463 = vmatprep.subr.mxu0 0.0
    %2464 = vmatpush1.msra.mxu0 0.0
    %2465 = vmatprep.subr.mxu0 0.0
    %2466 = vmatpush1.msra.mxu0 0.0
    %2467 = vmatprep.subr.mxu0 0.0
    %2468 = vmatpush1.msra.mxu0 0.0
    %2469 = vmatprep.subr.mxu0 0.0
    %2470 = vmatpush1.msra.mxu0 0.0
    %2471 = vmatprep.subr.mxu0 0.0
    %2472 = vmatpush1.msra.mxu0 0.0
    %2473 = vmatprep.subr.mxu0 0.0
    %2474 = vmatpush1.msra.mxu0 0.0
    %2475 = vmatprep.subr.mxu0 0.0
    %2476 = vmatpush1.msra.mxu0 0.0
    %2477 = vmatprep.subr.mxu0 0.0
    %2478 = vmatpush1.msra.mxu0 0.0
    %2479 = vmatprep.subr.mxu0 0.0
    %2480 = vmatpush1.msra.mxu0 0.0
    %2481 = vmatprep.subr.mxu0 0.0
    %2482 = vmatpush1.msra.mxu0 0.0
    %2483 = vmatprep.subr.mxu0 0.0
    %2484 = vmatpush1.msra.mxu0 0.0
    %2485 = vmatprep.subr.mxu0 0.0
    %2486 = vmatpush1.msra.mxu0 0.0
    %2487 = vmatprep.subr.mxu0 0.0
    %2488 = vmatpush1.msra.mxu0 0.0
    %2489 = vmatprep.mubr.f32.mxu0 0.0
    %2490 = vmatmul.mubr.f32.gmra.mrb[0].mxu0 %v2423
    %v2491 = vpop.f32.mrb[0].mxu0
    %v2492 = vadd.f32 0.0, %v2491
    %v2493 = vpop.f32.mrb[0].mxu0
    %2494 = vdwg.mxu0
    %v2496 = vsel %vm150, %v2492, 0
    %2498 = vmatprep.subr.mxu0 0.0
    %2499 = vmatpush1.msra.mxu0 %v56
    %2500 = vmatprep.subr.mxu0 0.0
    %2501 = vmatpush1.msra.mxu0 %v57
    %2502 = vmatprep.subr.mxu0 0.0
    %2503 = vmatpush1.msra.mxu0 0.0
    %2504 = vmatprep.subr.mxu0 0.0
    %2505 = vmatpush1.msra.mxu0 0.0
    %2506 = vmatprep.subr.mxu0 0.0
    %2507 = vmatpush1.msra.mxu0 0.0
    %2508 = vmatprep.subr.mxu0 0.0
    %2509 = vmatpush1.msra.mxu0 0.0
    %2510 = vmatprep.subr.mxu0 0.0
    %2511 = vmatpush1.msra.mxu0 0.0
    %2512 = vmatprep.subr.mxu0 0.0
    %2513 = vmatpush1.msra.mxu0 0.0
    %2514 = vmatprep.subr.mxu0 0.0
    %2515 = vmatpush1.msra.mxu0 0.0
    %2516 = vmatprep.subr.mxu0 0.0
    %2517 = vmatpush1.msra.mxu0 0.0
    %2518 = vmatprep.subr.mxu0 0.0
    %2519 = vmatpush1.msra.mxu0 0.0
    %2520 = vmatprep.subr.mxu0 0.0
    %2521 = vmatpush1.msra.mxu0 0.0
    %2522 = vmatprep.subr.mxu0 0.0
    %2523 = vmatpush1.msra.mxu0 0.0
    %2524 = vmatprep.subr.mxu0 0.0
    %2525 = vmatpush1.msra.mxu0 0.0
    %2526 = vmatprep.subr.mxu0 0.0
    %2527 = vmatpush1.msra.mxu0 0.0
    %2528 = vmatprep.subr.mxu0 0.0
    %2529 = vmatpush1.msra.mxu0 0.0
    %2530 = vmatprep.subr.mxu0 0.0
    %2531 = vmatpush1.msra.mxu0 0.0
    %2532 = vmatprep.subr.mxu0 0.0
    %2533 = vmatpush1.msra.mxu0 0.0
    %2534 = vmatprep.subr.mxu0 0.0
    %2535 = vmatpush1.msra.mxu0 0.0
    %2536 = vmatprep.subr.mxu0 0.0
    %2537 = vmatpush1.msra.mxu0 0.0
    %2538 = vmatprep.subr.mxu0 0.0
    %2539 = vmatpush1.msra.mxu0 0.0
    %2540 = vmatprep.subr.mxu0 0.0
    %2541 = vmatpush1.msra.mxu0 0.0
    %2542 = vmatprep.subr.mxu0 0.0
    %2543 = vmatpush1.msra.mxu0 0.0
    %2544 = vmatprep.subr.mxu0 0.0
    %2545 = vmatpush1.msra.mxu0 0.0
    %2546 = vmatprep.subr.mxu0 0.0
    %2547 = vmatpush1.msra.mxu0 0.0
    %2548 = vmatprep.subr.mxu0 0.0
    %2549 = vmatpush1.msra.mxu0 0.0
    %2550 = vmatprep.subr.mxu0 0.0
    %2551 = vmatpush1.msra.mxu0 0.0
    %2552 = vmatprep.subr.mxu0 0.0
    %2553 = vmatpush1.msra.mxu0 0.0
    %2554 = vmatprep.subr.mxu0 0.0
    %2555 = vmatpush1.msra.mxu0 0.0
    %2556 = vmatprep.subr.mxu0 0.0
    %2557 = vmatpush1.msra.mxu0 0.0
    %2558 = vmatprep.subr.mxu0 0.0
    %2559 = vmatpush1.msra.mxu0 0.0
    %2560 = vmatprep.subr.mxu0 0.0
    %2561 = vmatpush1.msra.mxu0 0.0
    %2562 = vmatprep.mubr.f32.mxu0 0.0
    %2563 = vmatmul.mubr.f32.gmra.mrb[0].mxu0 %v2496
    %v2564 = vpop.f32.mrb[0].mxu0
    %v2565 = vadd.f32 %v417, %v2564
    %v2566 = vpop.f32.mrb[0].mxu0
    %2567 = vdwg.mxu0
    %2569 = vrot.lane.b32.xlu0 %v2151, 120
    %v2570 = vpop.permute.xlu0 %2569
    %v2571 = vsel %vm230, %v2570, 0
    %2573 = vmatprep.subr.mxu0 0.0
    %2574 = vmatpush1.msra.mxu0 %v58
    %2575 = vmatprep.subr.mxu0 0.0
    %2576 = vmatpush1.msra.mxu0 0.0
    %2577 = vmatprep.subr.mxu0 0.0
    %2578 = vmatpush1.msra.mxu0 0.0
    %2579 = vmatprep.subr.mxu0 0.0
    %2580 = vmatpush1.msra.mxu0 0.0
    %2581 = vmatprep.subr.mxu0 0.0
    %2582 = vmatpush1.msra.mxu0 0.0
    %2583 = vmatprep.subr.mxu0 0.0
    %2584 = vmatpush1.msra.mxu0 0.0
    %2585 = vmatprep.subr.mxu0 0.0
    %2586 = vmatpush1.msra.mxu0 0.0
    %2587 = vmatprep.subr.mxu0 0.0
    %2588 = vmatpush1.msra.mxu0 0.0
    %2589 = vmatprep.subr.mxu0 0.0
    %2590 = vmatpush1.msra.mxu0 0.0
    %2591 = vmatprep.subr.mxu0 0.0
    %2592 = vmatpush1.msra.mxu0 0.0
    %2593 = vmatprep.subr.mxu0 0.0
    %2594 = vmatpush1.msra.mxu0 0.0
    %2595 = vmatprep.subr.mxu0 0.0
    %2596 = vmatpush1.msra.mxu0 0.0
    %2597 = vmatprep.subr.mxu0 0.0
    %2598 = vmatpush1.msra.mxu0 0.0
    %2599 = vmatprep.subr.mxu0 0.0
    %2600 = vmatpush1.msra.mxu0 0.0
    %2601 = vmatprep.subr.mxu0 0.0
    %2602 = vmatpush1.msra.mxu0 0.0
    %2603 = vmatprep.subr.mxu0 0.0
    %2604 = vmatpush1.msra.mxu0 0.0
    %2605 = vmatprep.subr.mxu0 0.0
    %2606 = vmatpush1.msra.mxu0 0.0
    %2607 = vmatprep.subr.mxu0 0.0
    %2608 = vmatpush1.msra.mxu0 0.0
    %2609 = vmatprep.subr.mxu0 0.0
    %2610 = vmatpush1.msra.mxu0 0.0
    %2611 = vmatprep.subr.mxu0 0.0
    %2612 = vmatpush1.msra.mxu0 0.0
    %2613 = vmatprep.subr.mxu0 0.0
    %2614 = vmatpush1.msra.mxu0 0.0
    %2615 = vmatprep.subr.mxu0 0.0
    %2616 = vmatpush1.msra.mxu0 0.0
    %2617 = vmatprep.subr.mxu0 0.0
    %2618 = vmatpush1.msra.mxu0 0.0
    %2619 = vmatprep.subr.mxu0 0.0
    %2620 = vmatpush1.msra.mxu0 0.0
    %2621 = vmatprep.subr.mxu0 0.0
    %2622 = vmatpush1.msra.mxu0 0.0
    %2623 = vmatprep.subr.mxu0 0.0
    %2624 = vmatpush1.msra.mxu0 0.0
    %2625 = vmatprep.subr.mxu0 0.0
    %2626 = vmatpush1.msra.mxu0 0.0
    %2627 = vmatprep.subr.mxu0 0.0
    %2628 = vmatpush1.msra.mxu0 0.0
    %2629 = vmatprep.subr.mxu0 0.0
    %2630 = vmatpush1.msra.mxu0 0.0
    %2631 = vmatprep.subr.mxu0 0.0
    %2632 = vmatpush1.msra.mxu0 0.0
    %2633 = vmatprep.subr.mxu0 0.0
    %2634 = vmatpush1.msra.mxu0 0.0
    %2635 = vmatprep.subr.mxu0 0.0
    %2636 = vmatpush1.msra.mxu0 0.0
    %2637 = vmatprep.mubr.f32.mxu0 0.0
    %2638 = vmatmul.mubr.f32.gmra.mrb[0].mxu0 %v2571
    %v2639 = vpop.f32.mrb[0].mxu0
    %v2640 = vadd.f32 %v496, %v2639
    %v2641 = vpop.f32.mrb[0].mxu0
    %2642 = vdwg.mxu0
    %v2643 = vadd.f32 %v2565, %v2640
    %v2644 = vxor.u32 %v2643, 2147483648
    %v2645 = vmul.f32 %v2644, 1.442695
    %v2646 = vpow.pop %v2645
    %v2647 = vadd.f32 %v2646, 1.0
    %v2648 = vrcp.pop %v2647
    %v2649 = vmul.f32 1.0, %v2648
    %2651 = vrot.lane.b32.xlu0 %v2640, 112
    %v2652 = vpop.permute.xlu0 %2651
    %v2654 = vmul.f32 %v2649, %v2652
    %2656 = vrot.lane.b32.xlu0 %v2654, 16
    %v2657 = vpop.permute.xlu0 %2656
    %v2659 = vadd.f32 %v2565, %v2657
    %v2660 = vtanh.pop %v2659
    %v2661 = vsub.f32 1.0, %v2649
    %2663 = vrot.lane.b32.xlu0 %v2660, 120
    %v2664 = vpop.permute.xlu0 %2663
    %v2666 = vmul.f32 %v2661, %v2664
    %v2667 = vmul.f32 %v2649, %v2151
    %v2668 = vadd.f32 %v2666, %v2667
    %2670 = vrot.lane.b32.xlu0 %v2412, 120
    %v2671 = vpop.permute.xlu0 %2670
    %2673 = vst.msk [vmem:[%s2158] sm:$0xf] %vm598, %v2671
    %2674 = vst.msk [vmem:[%s2156] sm:$0xf] %vm601, %v2668
    %v2675 = vld [vmem:[%s1376] sm:$0xf]
    %vm2676 = vcmp.ge.s32.totalorder %v2675, 32
    %v2677 = vsel %vm2676, 1, %v2675
    %2678 = vset.pattern.permute.xlu0 0
    %2679 = vperm.xlu0 %2678, %v2677
    %v2680 = vpop.permute.xlu0 %2679
    %vm2681 = vcmp.eq.s32.totalorder %v50, %v2680
    %v2682 = vsel %vm2681, 1, 0
    %v2683 = vcvt.s32.f32 %v2682
    %v2685 = vsel %vm70, %v2683, 0
    %2687 = vmatprep.subr.mxu0 0.0
    %2688 = vmatpush1.msra.mxu0 %v45
    %2689 = vmatprep.subr.mxu0 0.0
    %2690 = vmatpush1.msra.mxu0 %v46
    %2691 = vmatprep.subr.mxu0 0.0
    %2692 = vmatpush1.msra.mxu0 %v47
    %2693 = vmatprep.subr.mxu0 0.0
    %2694 = vmatpush1.msra.mxu0 %v48
    %2695 = vmatprep.subr.mxu0 0.0
    %2696 = vmatpush1.msra.mxu0 0.0
    %2697 = vmatprep.subr.mxu0 0.0
    %2698 = vmatpush1.msra.mxu0 0.0
    %2699 = vmatprep.subr.mxu0 0.0
    %2700 = vmatpush1.msra.mxu0 0.0
    %2701 = vmatprep.subr.mxu0 0.0
    %2702 = vmatpush1.msra.mxu0 0.0
    %2703 = vmatprep.subr.mxu0 0.0
    %2704 = vmatpush1.msra.mxu0 0.0
    %2705 = vmatprep.subr.mxu0 0.0
    %2706 = vmatpush1.msra.mxu0 0.0
    %2707 = vmatprep.subr.mxu0 0.0
    %2708 = vmatpush1.msra.mxu0 0.0
    %2709 = vmatprep.subr.mxu0 0.0
    %2710 = vmatpush1.msra.mxu0 0.0
    %2711 = vmatprep.subr.mxu0 0.0
    %2712 = vmatpush1.msra.mxu0 0.0
    %2713 = vmatprep.subr.mxu0 0.0
    %2714 = vmatpush1.msra.mxu0 0.0
    %2715 = vmatprep.subr.mxu0 0.0
    %2716 = vmatpush1.msra.mxu0 0.0
    %2717 = vmatprep.subr.mxu0 0.0
    %2718 = vmatpush1.msra.mxu0 0.0
    %2719 = vmatprep.subr.mxu0 0.0
    %2720 = vmatpush1.msra.mxu0 0.0
    %2721 = vmatprep.subr.mxu0 0.0
    %2722 = vmatpush1.msra.mxu0 0.0
    %2723 = vmatprep.subr.mxu0 0.0
    %2724 = vmatpush1.msra.mxu0 0.0
    %2725 = vmatprep.subr.mxu0 0.0
    %2726 = vmatpush1.msra.mxu0 0.0
    %2727 = vmatprep.subr.mxu0 0.0
    %2728 = vmatpush1.msra.mxu0 0.0
    %2729 = vmatprep.subr.mxu0 0.0
    %2730 = vmatpush1.msra.mxu0 0.0
    %2731 = vmatprep.subr.mxu0 0.0
    %2732 = vmatpush1.msra.mxu0 0.0
    %2733 = vmatprep.subr.mxu0 0.0
    %2734 = vmatpush1.msra.mxu0 0.0
    %2735 = vmatprep.subr.mxu0 0.0
    %2736 = vmatpush1.msra.mxu0 0.0
    %2737 = vmatprep.subr.mxu0 0.0
    %2738 = vmatpush1.msra.mxu0 0.0
    %2739 = vmatprep.subr.mxu0 0.0
    %2740 = vmatpush1.msra.mxu0 0.0
    %2741 = vmatprep.subr.mxu0 0.0
    %2742 = vmatpush1.msra.mxu0 0.0
    %2743 = vmatprep.subr.mxu0 0.0
    %2744 = vmatpush1.msra.mxu0 0.0
    %2745 = vmatprep.subr.mxu0 0.0
    %2746 = vmatpush1.msra.mxu0 0.0
    %2747 = vmatprep.subr.mxu0 0.0
    %2748 = vmatpush1.msra.mxu0 0.0
    %2749 = vmatprep.subr.mxu0 0.0
    %2750 = vmatpush1.msra.mxu0 0.0
    %2751 = vmatprep.mubr.f32.mxu0 0.0
    %2752 = vmatmul.mubr.f32.gmra.mrb[0].mxu0 %v2685
    %v2753 = vpop.f32.mrb[0].mxu0
    %v2754 = vadd.f32 0.0, %v2753
    %v2755 = vpop.f32.mrb[0].mxu0
    %2756 = vdwg.mxu0
    %v2758 = vsel %vm150, %v2754, 0
    %2760 = vmatprep.subr.mxu0 0.0
    %2761 = vmatpush1.msra.mxu0 %v51
    %2762 = vmatprep.subr.mxu0 0.0
    %2763 = vmatpush1.msra.mxu0 %v52
    %2764 = vmatprep.subr.mxu0 0.0
    %2765 = vmatpush1.msra.mxu0 0.0
    %2766 = vmatprep.subr.mxu0 0.0
    %2767 = vmatpush1.msra.mxu0 0.0
    %2768 = vmatprep.subr.mxu0 0.0
    %2769 = vmatpush1.msra.mxu0 0.0
    %2770 = vmatprep.subr.mxu0 0.0
    %2771 = vmatpush1.msra.mxu0 0.0
    %2772 = vmatprep.subr.mxu0 0.0
    %2773 = vmatpush1.msra.mxu0 0.0
    %2774 = vmatprep.subr.mxu0 0.0
    %2775 = vmatpush1.msra.mxu0 0.0
    %2776 = vmatprep.subr.mxu0 0.0
    %2777 = vmatpush1.msra.mxu0 0.0
    %2778 = vmatprep.subr.mxu0 0.0
    %2779 = vmatpush1.msra.mxu0 0.0
    %2780 = vmatprep.subr.mxu0 0.0
    %2781 = vmatpush1.msra.mxu0 0.0
    %2782 = vmatprep.subr.mxu0 0.0
    %2783 = vmatpush1.msra.mxu0 0.0
    %2784 = vmatprep.subr.mxu0 0.0
    %2785 = vmatpush1.msra.mxu0 0.0
    %2786 = vmatprep.subr.mxu0 0.0
    %2787 = vmatpush1.msra.mxu0 0.0
    %2788 = vmatprep.subr.mxu0 0.0
    %2789 = vmatpush1.msra.mxu0 0.0
    %2790 = vmatprep.subr.mxu0 0.0
    %2791 = vmatpush1.msra.mxu0 0.0
    %2792 = vmatprep.subr.mxu0 0.0
    %2793 = vmatpush1.msra.mxu0 0.0
    %2794 = vmatprep.subr.mxu0 0.0
    %2795 = vmatpush1.msra.mxu0 0.0
    %2796 = vmatprep.subr.mxu0 0.0
    %2797 = vmatpush1.msra.mxu0 0.0
    %2798 = vmatprep.subr.mxu0 0.0
    %2799 = vmatpush1.msra.mxu0 0.0
    %2800 = vmatprep.subr.mxu0 0.0
    %2801 = vmatpush1.msra.mxu0 0.0
    %2802 = vmatprep.subr.mxu0 0.0
    %2803 = vmatpush1.msra.mxu0 0.0
    %2804 = vmatprep.subr.mxu0 0.0
    %2805 = vmatpush1.msra.mxu0 0.0
    %2806 = vmatprep.subr.mxu0 0.0
    %2807 = vmatpush1.msra.mxu0 0.0
    %2808 = vmatprep.subr.mxu0 0.0
    %2809 = vmatpush1.msra.mxu0 0.0
    %2810 = vmatprep.subr.mxu0 0.0
    %2811 = vmatpush1.msra.mxu0 0.0
    %2812 = vmatprep.subr.mxu0 0.0
    %2813 = vmatpush1.msra.mxu0 0.0
    %2814 = vmatprep.subr.mxu0 0.0
    %2815 = vmatpush1.msra.mxu0 0.0
    %2816 = vmatprep.subr.mxu0 0.0
    %2817 = vmatpush1.msra.mxu0 0.0
    %2818 = vmatprep.subr.mxu0 0.0
    %2819 = vmatpush1.msra.mxu0 0.0
    %2820 = vmatprep.subr.mxu0 0.0
    %2821 = vmatpush1.msra.mxu0 0.0
    %2822 = vmatprep.subr.mxu0 0.0
    %2823 = vmatpush1.msra.mxu0 0.0
    %2824 = vmatprep.mubr.f32.mxu0 0.0
    %2825 = vmatmul.mubr.f32.gmra.mrb[0].mxu0 %v2758
    %v2826 = vpop.f32.mrb[0].mxu0
    %v2827 = vadd.f32 %v148, %v2826
    %v2828 = vpop.f32.mrb[0].mxu0
    %2829 = vdwg.mxu0
    %v2830 = vsel %vm230, %v2671, 0
    %2832 = vmatprep.subr.mxu0 0.0
    %2833 = vmatpush1.msra.mxu0 %v53
    %2834 = vmatprep.subr.mxu0 0.0
    %2835 = vmatpush1.msra.mxu0 0.0
    %2836 = vmatprep.subr.mxu0 0.0
    %2837 = vmatpush1.msra.mxu0 0.0
    %2838 = vmatprep.subr.mxu0 0.0
    %2839 = vmatpush1.msra.mxu0 0.0
    %2840 = vmatprep.subr.mxu0 0.0
    %2841 = vmatpush1.msra.mxu0 0.0
    %2842 = vmatprep.subr.mxu0 0.0
    %2843 = vmatpush1.msra.mxu0 0.0
    %2844 = vmatprep.subr.mxu0 0.0
    %2845 = vmatpush1.msra.mxu0 0.0
    %2846 = vmatprep.subr.mxu0 0.0
    %2847 = vmatpush1.msra.mxu0 0.0
    %2848 = vmatprep.subr.mxu0 0.0
    %2849 = vmatpush1.msra.mxu0 0.0
    %2850 = vmatprep.subr.mxu0 0.0
    %2851 = vmatpush1.msra.mxu0 0.0
    %2852 = vmatprep.subr.mxu0 0.0
    %2853 = vmatpush1.msra.mxu0 0.0
    %2854 = vmatprep.subr.mxu0 0.0
    %2855 = vmatpush1.msra.mxu0 0.0
    %2856 = vmatprep.subr.mxu0 0.0
    %2857 = vmatpush1.msra.mxu0 0.0
    %2858 = vmatprep.subr.mxu0 0.0
    %2859 = vmatpush1.msra.mxu0 0.0
    %2860 = vmatprep.subr.mxu0 0.0
    %2861 = vmatpush1.msra.mxu0 0.0
    %2862 = vmatprep.subr.mxu0 0.0
    %2863 = vmatpush1.msra.mxu0 0.0
    %2864 = vmatprep.subr.mxu0 0.0
    %2865 = vmatpush1.msra.mxu0 0.0
    %2866 = vmatprep.subr.mxu0 0.0
    %2867 = vmatpush1.msra.mxu0 0.0
    %2868 = vmatprep.subr.mxu0 0.0
    %2869 = vmatpush1.msra.mxu0 0.0
    %2870 = vmatprep.subr.mxu0 0.0
    %2871 = vmatpush1.msra.mxu0 0.0
    %2872 = vmatprep.subr.mxu0 0.0
    %2873 = vmatpush1.msra.mxu0 0.0
    %2874 = vmatprep.subr.mxu0 0.0
    %2875 = vmatpush1.msra.mxu0 0.0
    %2876 = vmatprep.subr.mxu0 0.0
    %2877 = vmatpush1.msra.mxu0 0.0
    %2878 = vmatprep.subr.mxu0 0.0
    %2879 = vmatpush1.msra.mxu0 0.0
    %2880 = vmatprep.subr.mxu0 0.0
    %2881 = vmatpush1.msra.mxu0 0.0
    %2882 = vmatprep.subr.mxu0 0.0
    %2883 = vmatpush1.msra.mxu0 0.0
    %2884 = vmatprep.subr.mxu0 0.0
    %2885 = vmatpush1.msra.mxu0 0.0
    %2886 = vmatprep.subr.mxu0 0.0
    %2887 = vmatpush1.msra.mxu0 0.0
    %2888 = vmatprep.subr.mxu0 0.0
    %2889 = vmatpush1.msra.mxu0 0.0
    %2890 = vmatprep.subr.mxu0 0.0
    %2891 = vmatpush1.msra.mxu0 0.0
    %2892 = vmatprep.subr.mxu0 0.0
    %2893 = vmatpush1.msra.mxu0 0.0
    %2894 = vmatprep.subr.mxu0 0.0
    %2895 = vmatpush1.msra.mxu0 0.0
    %2896 = vmatprep.mubr.f32.mxu0 0.0
    %2897 = vmatmul.mubr.f32.gmra.mrb[0].mxu0 %v2830
    %v2898 = vpop.f32.mrb[0].mxu0
    %v2899 = vadd.f32 %v228, %v2898
    %v2900 = vpop.f32.mrb[0].mxu0
    %2901 = vdwg.mxu0
    %v2902 = vadd.f32 %v2827, %v2899
    %v2903 = vxor.u32 %v2902, 2147483648
    %v2904 = vmul.f32 %v2903, 1.442695
    %v2905 = vpow.pop %v2904
    %v2906 = vadd.f32 %v2905, 1.0
    %v2907 = vrcp.pop %v2906
    %v2908 = vmul.f32 1.0, %v2907
    %2910 = vrot.lane.b32.xlu0 %v2899, 112
    %v2911 = vpop.permute.xlu0 %2910
    %v2913 = vmul.f32 %v2908, %v2911
    %2915 = vrot.lane.b32.xlu0 %v2913, 16
    %v2916 = vpop.permute.xlu0 %2915
    %v2918 = vadd.f32 %v2827, %v2916
    %v2919 = vtanh.pop %v2918
    %v2920 = vsub.f32 1.0, %v2908
    %2922 = vrot.lane.b32.xlu0 %v2919, 120
    %v2923 = vpop.permute.xlu0 %2922
    %v2925 = vmul.f32 %v2920, %v2923
    %v2926 = vmul.f32 %v2908, %v2412
    %v2927 = vadd.f32 %v2925, %v2926
    %v2928 = vld [vmem:[%s1122] sm:$0xf]
    %vm2929 = vcmp.ge.s32.totalorder %v2928, 32
    %v2930 = vsel %vm2929, 1, %v2928
    %2931 = vset.pattern.permute.xlu0 0
    %2932 = vperm.xlu0 %2931, %v2930
    %v2933 = vpop.permute.xlu0 %2932
    %vm2934 = vcmp.eq.s32.totalorder %v50, %v2933
    %v2935 = vsel %vm2934, 1, 0
    %v2936 = vcvt.s32.f32 %v2935
    %v2938 = vsel %vm70, %v2936, 0
    %2940 = vmatprep.subr.mxu0 0.0
    %2941 = vmatpush1.msra.mxu0 %v45
    %2942 = vmatprep.subr.mxu0 0.0
    %2943 = vmatpush1.msra.mxu0 %v46
    %2944 = vmatprep.subr.mxu0 0.0
    %2945 = vmatpush1.msra.mxu0 %v47
    %2946 = vmatprep.subr.mxu0 0.0
    %2947 = vmatpush1.msra.mxu0 %v48
    %2948 = vmatprep.subr.mxu0 0.0
    %2949 = vmatpush1.msra.mxu0 0.0
    %2950 = vmatprep.subr.mxu0 0.0
    %2951 = vmatpush1.msra.mxu0 0.0
    %2952 = vmatprep.subr.mxu0 0.0
    %2953 = vmatpush1.msra.mxu0 0.0
    %2954 = vmatprep.subr.mxu0 0.0
    %2955 = vmatpush1.msra.mxu0 0.0
    %2956 = vmatprep.subr.mxu0 0.0
    %2957 = vmatpush1.msra.mxu0 0.0
    %2958 = vmatprep.subr.mxu0 0.0
    %2959 = vmatpush1.msra.mxu0 0.0
    %2960 = vmatprep.subr.mxu0 0.0
    %2961 = vmatpush1.msra.mxu0 0.0
    %2962 = vmatprep.subr.mxu0 0.0
    %2963 = vmatpush1.msra.mxu0 0.0
    %2964 = vmatprep.subr.mxu0 0.0
    %2965 = vmatpush1.msra.mxu0 0.0
    %2966 = vmatprep.subr.mxu0 0.0
    %2967 = vmatpush1.msra.mxu0 0.0
    %2968 = vmatprep.subr.mxu0 0.0
    %2969 = vmatpush1.msra.mxu0 0.0
    %2970 = vmatprep.subr.mxu0 0.0
    %2971 = vmatpush1.msra.mxu0 0.0
    %2972 = vmatprep.subr.mxu0 0.0
    %2973 = vmatpush1.msra.mxu0 0.0
    %2974 = vmatprep.subr.mxu0 0.0
    %2975 = vmatpush1.msra.mxu0 0.0
    %2976 = vmatprep.subr.mxu0 0.0
    %2977 = vmatpush1.msra.mxu0 0.0
    %2978 = vmatprep.subr.mxu0 0.0
    %2979 = vmatpush1.msra.mxu0 0.0
    %2980 = vmatprep.subr.mxu0 0.0
    %2981 = vmatpush1.msra.mxu0 0.0
    %2982 = vmatprep.subr.mxu0 0.0
    %2983 = vmatpush1.msra.mxu0 0.0
    %2984 = vmatprep.subr.mxu0 0.0
    %2985 = vmatpush1.msra.mxu0 0.0
    %2986 = vmatprep.subr.mxu0 0.0
    %2987 = vmatpush1.msra.mxu0 0.0
    %2988 = vmatprep.subr.mxu0 0.0
    %2989 = vmatpush1.msra.mxu0 0.0
    %2990 = vmatprep.subr.mxu0 0.0
    %2991 = vmatpush1.msra.mxu0 0.0
    %2992 = vmatprep.subr.mxu0 0.0
    %2993 = vmatpush1.msra.mxu0 0.0
    %2994 = vmatprep.subr.mxu0 0.0
    %2995 = vmatpush1.msra.mxu0 0.0
    %2996 = vmatprep.subr.mxu0 0.0
    %2997 = vmatpush1.msra.mxu0 0.0
    %2998 = vmatprep.subr.mxu0 0.0
    %2999 = vmatpush1.msra.mxu0 0.0
    %3000 = vmatprep.subr.mxu0 0.0
    %3001 = vmatpush1.msra.mxu0 0.0
    %3002 = vmatprep.subr.mxu0 0.0
    %3003 = vmatpush1.msra.mxu0 0.0
    %3004 = vmatprep.mubr.f32.mxu0 0.0
    %3005 = vmatmul.mubr.f32.gmra.mrb[0].mxu0 %v2938
    %v3006 = vpop.f32.mrb[0].mxu0
    %v3007 = vadd.f32 0.0, %v3006
    %v3008 = vpop.f32.mrb[0].mxu0
    %3009 = vdwg.mxu0
    %v3011 = vsel %vm150, %v3007, 0
    %3013 = vmatprep.subr.mxu0 0.0
    %3014 = vmatpush1.msra.mxu0 %v56
    %3015 = vmatprep.subr.mxu0 0.0
    %3016 = vmatpush1.msra.mxu0 %v57
    %3017 = vmatprep.subr.mxu0 0.0
    %3018 = vmatpush1.msra.mxu0 0.0
    %3019 = vmatprep.subr.mxu0 0.0
    %3020 = vmatpush1.msra.mxu0 0.0
    %3021 = vmatprep.subr.mxu0 0.0
    %3022 = vmatpush1.msra.mxu0 0.0
    %3023 = vmatprep.subr.mxu0 0.0
    %3024 = vmatpush1.msra.mxu0 0.0
    %3025 = vmatprep.subr.mxu0 0.0
    %3026 = vmatpush1.msra.mxu0 0.0
    %3027 = vmatprep.subr.mxu0 0.0
    %3028 = vmatpush1.msra.mxu0 0.0
    %3029 = vmatprep.subr.mxu0 0.0
    %3030 = vmatpush1.msra.mxu0 0.0
    %3031 = vmatprep.subr.mxu0 0.0
    %3032 = vmatpush1.msra.mxu0 0.0
    %3033 = vmatprep.subr.mxu0 0.0
    %3034 = vmatpush1.msra.mxu0 0.0
    %3035 = vmatprep.subr.mxu0 0.0
    %3036 = vmatpush1.msra.mxu0 0.0
    %3037 = vmatprep.subr.mxu0 0.0
    %3038 = vmatpush1.msra.mxu0 0.0
    %3039 = vmatprep.subr.mxu0 0.0
    %3040 = vmatpush1.msra.mxu0 0.0
    %3041 = vmatprep.subr.mxu0 0.0
    %3042 = vmatpush1.msra.mxu0 0.0
    %3043 = vmatprep.subr.mxu0 0.0
    %3044 = vmatpush1.msra.mxu0 0.0
    %3045 = vmatprep.subr.mxu0 0.0
    %3046 = vmatpush1.msra.mxu0 0.0
    %3047 = vmatprep.subr.mxu0 0.0
    %3048 = vmatpush1.msra.mxu0 0.0
    %3049 = vmatprep.subr.mxu0 0.0
    %3050 = vmatpush1.msra.mxu0 0.0
    %3051 = vmatprep.subr.mxu0 0.0
    %3052 = vmatpush1.msra.mxu0 0.0
    %3053 = vmatprep.subr.mxu0 0.0
    %3054 = vmatpush1.msra.mxu0 0.0
    %3055 = vmatprep.subr.mxu0 0.0
    %3056 = vmatpush1.msra.mxu0 0.0
    %3057 = vmatprep.subr.mxu0 0.0
    %3058 = vmatpush1.msra.mxu0 0.0
    %3059 = vmatprep.subr.mxu0 0.0
    %3060 = vmatpush1.msra.mxu0 0.0
    %3061 = vmatprep.subr.mxu0 0.0
    %3062 = vmatpush1.msra.mxu0 0.0
    %3063 = vmatprep.subr.mxu0 0.0
    %3064 = vmatpush1.msra.mxu0 0.0
    %3065 = vmatprep.subr.mxu0 0.0
    %3066 = vmatpush1.msra.mxu0 0.0
    %3067 = vmatprep.subr.mxu0 0.0
    %3068 = vmatpush1.msra.mxu0 0.0
    %3069 = vmatprep.subr.mxu0 0.0
    %3070 = vmatpush1.msra.mxu0 0.0
    %3071 = vmatprep.subr.mxu0 0.0
    %3072 = vmatpush1.msra.mxu0 0.0
    %3073 = vmatprep.subr.mxu0 0.0
    %3074 = vmatpush1.msra.mxu0 0.0
    %3075 = vmatprep.subr.mxu0 0.0
    %3076 = vmatpush1.msra.mxu0 0.0
    %3077 = vmatprep.mubr.f32.mxu0 0.0
    %3078 = vmatmul.mubr.f32.gmra.mrb[0].mxu0 %v3011
    %v3079 = vpop.f32.mrb[0].mxu0
    %v3080 = vadd.f32 %v417, %v3079
    %v3081 = vpop.f32.mrb[0].mxu0
    %3082 = vdwg.mxu0
    %3084 = vrot.lane.b32.xlu0 %v2668, 120
    %v3085 = vpop.permute.xlu0 %3084
    %v3086 = vsel %vm230, %v3085, 0
    %3088 = vmatprep.subr.mxu0 0.0
    %3089 = vmatpush1.msra.mxu0 %v58
    %3090 = vmatprep.subr.mxu0 0.0
    %3091 = vmatpush1.msra.mxu0 0.0
    %3092 = vmatprep.subr.mxu0 0.0
    %3093 = vmatpush1.msra.mxu0 0.0
    %3094 = vmatprep.subr.mxu0 0.0
    %3095 = vmatpush1.msra.mxu0 0.0
    %3096 = vmatprep.subr.mxu0 0.0
    %3097 = vmatpush1.msra.mxu0 0.0
    %3098 = vmatprep.subr.mxu0 0.0
    %3099 = vmatpush1.msra.mxu0 0.0
    %3100 = vmatprep.subr.mxu0 0.0
    %3101 = vmatpush1.msra.mxu0 0.0
    %3102 = vmatprep.subr.mxu0 0.0
    %3103 = vmatpush1.msra.mxu0 0.0
    %3104 = vmatprep.subr.mxu0 0.0
    %3105 = vmatpush1.msra.mxu0 0.0
    %3106 = vmatprep.subr.mxu0 0.0
    %3107 = vmatpush1.msra.mxu0 0.0
    %3108 = vmatprep.subr.mxu0 0.0
    %3109 = vmatpush1.msra.mxu0 0.0
    %3110 = vmatprep.subr.mxu0 0.0
    %3111 = vmatpush1.msra.mxu0 0.0
    %3112 = vmatprep.subr.mxu0 0.0
    %3113 = vmatpush1.msra.mxu0 0.0
    %3114 = vmatprep.subr.mxu0 0.0
    %3115 = vmatpush1.msra.mxu0 0.0
    %3116 = vmatprep.subr.mxu0 0.0
    %3117 = vmatpush1.msra.mxu0 0.0
    %3118 = vmatprep.subr.mxu0 0.0
    %3119 = vmatpush1.msra.mxu0 0.0
    %3120 = vmatprep.subr.mxu0 0.0
    %3121 = vmatpush1.msra.mxu0 0.0
    %3122 = vmatprep.subr.mxu0 0.0
    %3123 = vmatpush1.msra.mxu0 0.0
    %3124 = vmatprep.subr.mxu0 0.0
    %3125 = vmatpush1.msra.mxu0 0.0
    %3126 = vmatprep.subr.mxu0 0.0
    %3127 = vmatpush1.msra.mxu0 0.0
    %3128 = vmatprep.subr.mxu0 0.0
    %3129 = vmatpush1.msra.mxu0 0.0
    %3130 = vmatprep.subr.mxu0 0.0
    %3131 = vmatpush1.msra.mxu0 0.0
    %3132 = vmatprep.subr.mxu0 0.0
    %3133 = vmatpush1.msra.mxu0 0.0
    %3134 = vmatprep.subr.mxu0 0.0
    %3135 = vmatpush1.msra.mxu0 0.0
    %3136 = vmatprep.subr.mxu0 0.0
    %3137 = vmatpush1.msra.mxu0 0.0
    %3138 = vmatprep.subr.mxu0 0.0
    %3139 = vmatpush1.msra.mxu0 0.0
    %3140 = vmatprep.subr.mxu0 0.0
    %3141 = vmatpush1.msra.mxu0 0.0
    %3142 = vmatprep.subr.mxu0 0.0
    %3143 = vmatpush1.msra.mxu0 0.0
    %3144 = vmatprep.subr.mxu0 0.0
    %3145 = vmatpush1.msra.mxu0 0.0
    %3146 = vmatprep.subr.mxu0 0.0
    %3147 = vmatpush1.msra.mxu0 0.0
    %3148 = vmatprep.subr.mxu0 0.0
    %3149 = vmatpush1.msra.mxu0 0.0
    %3150 = vmatprep.subr.mxu0 0.0
    %3151 = vmatpush1.msra.mxu0 0.0
    %3152 = vmatprep.mubr.f32.mxu0 0.0
    %3153 = vmatmul.mubr.f32.gmra.mrb[0].mxu0 %v3086
    %v3154 = vpop.f32.mrb[0].mxu0
    %v3155 = vadd.f32 %v496, %v3154
    %v3156 = vpop.f32.mrb[0].mxu0
    %3157 = vdwg.mxu0
    %v3158 = vadd.f32 %v3080, %v3155
    %v3159 = vxor.u32 %v3158, 2147483648
    %v3160 = vmul.f32 %v3159, 1.442695
    %v3161 = vpow.pop %v3160
    %v3162 = vadd.f32 %v3161, 1.0
    %v3163 = vrcp.pop %v3162
    %v3164 = vmul.f32 1.0, %v3163
    %3166 = vrot.lane.b32.xlu0 %v3155, 112
    %v3167 = vpop.permute.xlu0 %3166
    %v3169 = vmul.f32 %v3164, %v3167
    %3171 = vrot.lane.b32.xlu0 %v3169, 16
    %v3172 = vpop.permute.xlu0 %3171
    %v3174 = vadd.f32 %v3080, %v3172
    %v3175 = vtanh.pop %v3174
    %v3176 = vsub.f32 1.0, %v3164
    %3178 = vrot.lane.b32.xlu0 %v3175, 120
    %v3179 = vpop.permute.xlu0 %3178
    %v3181 = vmul.f32 %v3176, %v3179
    %v3182 = vmul.f32 %v3164, %v2668
    %v3183 = vadd.f32 %v3181, %v3182
    %3185 = vrot.lane.b32.xlu0 %v2927, 120
    %v3186 = vpop.permute.xlu0 %3185
    %3188 = vst.msk [vmem:[%s1639] sm:$0xf] %vm598, %v3186
    %3189 = vst.msk [vmem:[%s1637] sm:$0xf] %vm601, %v3183
    %v3190 = vld [vmem:[%s857] sm:$0xf]
    %vm3191 = vcmp.ge.s32.totalorder %v3190, 32
    %v3192 = vsel %vm3191, 1, %v3190
    %3193 = vset.pattern.permute.xlu0 0
    %3194 = vperm.xlu0 %3193, %v3192
    %v3195 = vpop.permute.xlu0 %3194
    %vm3196 = vcmp.eq.s32.totalorder %v50, %v3195
    %v3197 = vsel %vm3196, 1, 0
    %v3198 = vcvt.s32.f32 %v3197
    %v3200 = vsel %vm70, %v3198, 0
    %3202 = vmatprep.subr.mxu0 0.0
    %3203 = vmatpush1.msra.mxu0 %v45
    %3204 = vmatprep.subr.mxu0 0.0
    %3205 = vmatpush1.msra.mxu0 %v46
    %3206 = vmatprep.subr.mxu0 0.0
    %3207 = vmatpush1.msra.mxu0 %v47
    %3208 = vmatprep.subr.mxu0 0.0
    %3209 = vmatpush1.msra.mxu0 %v48
    %3210 = vmatprep.subr.mxu0 0.0
    %3211 = vmatpush1.msra.mxu0 0.0
    %3212 = vmatprep.subr.mxu0 0.0
    %3213 = vmatpush1.msra.mxu0 0.0
    %3214 = vmatprep.subr.mxu0 0.0
    %3215 = vmatpush1.msra.mxu0 0.0
    %3216 = vmatprep.subr.mxu0 0.0
    %3217 = vmatpush1.msra.mxu0 0.0
    %3218 = vmatprep.subr.mxu0 0.0
    %3219 = vmatpush1.msra.mxu0 0.0
    %3220 = vmatprep.subr.mxu0 0.0
    %3221 = vmatpush1.msra.mxu0 0.0
    %3222 = vmatprep.subr.mxu0 0.0
    %3223 = vmatpush1.msra.mxu0 0.0
    %3224 = vmatprep.subr.mxu0 0.0
    %3225 = vmatpush1.msra.mxu0 0.0
    %3226 = vmatprep.subr.mxu0 0.0
    %3227 = vmatpush1.msra.mxu0 0.0
    %3228 = vmatprep.subr.mxu0 0.0
    %3229 = vmatpush1.msra.mxu0 0.0
    %3230 = vmatprep.subr.mxu0 0.0
    %3231 = vmatpush1.msra.mxu0 0.0
    %3232 = vmatprep.subr.mxu0 0.0
    %3233 = vmatpush1.msra.mxu0 0.0
    %3234 = vmatprep.subr.mxu0 0.0
    %3235 = vmatpush1.msra.mxu0 0.0
    %3236 = vmatprep.subr.mxu0 0.0
    %3237 = vmatpush1.msra.mxu0 0.0
    %3238 = vmatprep.subr.mxu0 0.0
    %3239 = vmatpush1.msra.mxu0 0.0
    %3240 = vmatprep.subr.mxu0 0.0
    %3241 = vmatpush1.msra.mxu0 0.0
    %3242 = vmatprep.subr.mxu0 0.0
    %3243 = vmatpush1.msra.mxu0 0.0
    %3244 = vmatprep.subr.mxu0 0.0
    %3245 = vmatpush1.msra.mxu0 0.0
    %3246 = vmatprep.subr.mxu0 0.0
    %3247 = vmatpush1.msra.mxu0 0.0
    %3248 = vmatprep.subr.mxu0 0.0
    %3249 = vmatpush1.msra.mxu0 0.0
    %3250 = vmatprep.subr.mxu0 0.0
    %3251 = vmatpush1.msra.mxu0 0.0
    %3252 = vmatprep.subr.mxu0 0.0
    %3253 = vmatpush1.msra.mxu0 0.0
    %3254 = vmatprep.subr.mxu0 0.0
    %3255 = vmatpush1.msra.mxu0 0.0
    %3256 = vmatprep.subr.mxu0 0.0
    %3257 = vmatpush1.msra.mxu0 0.0
    %3258 = vmatprep.subr.mxu0 0.0
    %3259 = vmatpush1.msra.mxu0 0.0
    %3260 = vmatprep.subr.mxu0 0.0
    %3261 = vmatpush1.msra.mxu0 0.0
    %3262 = vmatprep.subr.mxu0 0.0
    %3263 = vmatpush1.msra.mxu0 0.0
    %3264 = vmatprep.subr.mxu0 0.0
    %3265 = vmatpush1.msra.mxu0 0.0
    %3266 = vmatprep.mubr.f32.mxu0 0.0
    %3267 = vmatmul.mubr.f32.gmra.mrb[0].mxu0 %v3200
    %v3268 = vpop.f32.mrb[0].mxu0
    %v3269 = vadd.f32 0.0, %v3268
    %v3270 = vpop.f32.mrb[0].mxu0
    %3271 = vdwg.mxu0
    %v3273 = vsel %vm150, %v3269, 0
    %3275 = vmatprep.subr.mxu0 0.0
    %3276 = vmatpush1.msra.mxu0 %v51
    %3277 = vmatprep.subr.mxu0 0.0
    %3278 = vmatpush1.msra.mxu0 %v52
    %3279 = vmatprep.subr.mxu0 0.0
    %3280 = vmatpush1.msra.mxu0 0.0
    %3281 = vmatprep.subr.mxu0 0.0
    %3282 = vmatpush1.msra.mxu0 0.0
    %3283 = vmatprep.subr.mxu0 0.0
    %3284 = vmatpush1.msra.mxu0 0.0
    %3285 = vmatprep.subr.mxu0 0.0
    %3286 = vmatpush1.msra.mxu0 0.0
    %3287 = vmatprep.subr.mxu0 0.0
    %3288 = vmatpush1.msra.mxu0 0.0
    %3289 = vmatprep.subr.mxu0 0.0
    %3290 = vmatpush1.msra.mxu0 0.0
    %3291 = vmatprep.subr.mxu0 0.0
    %3292 = vmatpush1.msra.mxu0 0.0
    %3293 = vmatprep.subr.mxu0 0.0
    %3294 = vmatpush1.msra.mxu0 0.0
    %3295 = vmatprep.subr.mxu0 0.0
    %3296 = vmatpush1.msra.mxu0 0.0
    %3297 = vmatprep.subr.mxu0 0.0
    %3298 = vmatpush1.msra.mxu0 0.0
    %3299 = vmatprep.subr.mxu0 0.0
    %3300 = vmatpush1.msra.mxu0 0.0
    %3301 = vmatprep.subr.mxu0 0.0
    %3302 = vmatpush1.msra.mxu0 0.0
    %3303 = vmatprep.subr.mxu0 0.0
    %3304 = vmatpush1.msra.mxu0 0.0
    %3305 = vmatprep.subr.mxu0 0.0
    %3306 = vmatpush1.msra.mxu0 0.0
    %3307 = vmatprep.subr.mxu0 0.0
    %3308 = vmatpush1.msra.mxu0 0.0
    %3309 = vmatprep.subr.mxu0 0.0
    %3310 = vmatpush1.msra.mxu0 0.0
    %3311 = vmatprep.subr.mxu0 0.0
    %3312 = vmatpush1.msra.mxu0 0.0
    %3313 = vmatprep.subr.mxu0 0.0
    %3314 = vmatpush1.msra.mxu0 0.0
    %3315 = vmatprep.subr.mxu0 0.0
    %3316 = vmatpush1.msra.mxu0 0.0
    %3317 = vmatprep.subr.mxu0 0.0
    %3318 = vmatpush1.msra.mxu0 0.0
    %3319 = vmatprep.subr.mxu0 0.0
    %3320 = vmatpush1.msra.mxu0 0.0
    %3321 = vmatprep.subr.mxu0 0.0
    %3322 = vmatpush1.msra.mxu0 0.0
    %3323 = vmatprep.subr.mxu0 0.0
    %3324 = vmatpush1.msra.mxu0 0.0
    %3325 = vmatprep.subr.mxu0 0.0
    %3326 = vmatpush1.msra.mxu0 0.0
    %3327 = vmatprep.subr.mxu0 0.0
    %3328 = vmatpush1.msra.mxu0 0.0
    %3329 = vmatprep.subr.mxu0 0.0
    %3330 = vmatpush1.msra.mxu0 0.0
    %3331 = vmatprep.subr.mxu0 0.0
    %3332 = vmatpush1.msra.mxu0 0.0
    %3333 = vmatprep.subr.mxu0 0.0
    %3334 = vmatpush1.msra.mxu0 0.0
    %3335 = vmatprep.subr.mxu0 0.0
    %3336 = vmatpush1.msra.mxu0 0.0
    %3337 = vmatprep.subr.mxu0 0.0
    %3338 = vmatpush1.msra.mxu0 0.0
    %3339 = vmatprep.mubr.f32.mxu0 0.0
    %3340 = vmatmul.mubr.f32.gmra.mrb[0].mxu0 %v3273
    %v3341 = vpop.f32.mrb[0].mxu0
    %v3342 = vadd.f32 %v148, %v3341
    %v3343 = vpop.f32.mrb[0].mxu0
    %3344 = vdwg.mxu0
    %v3345 = vsel %vm230, %v3186, 0
    %3347 = vmatprep.subr.mxu0 0.0
    %3348 = vmatpush1.msra.mxu0 %v53
    %3349 = vmatprep.subr.mxu0 0.0
    %3350 = vmatpush1.msra.mxu0 0.0
    %3351 = vmatprep.subr.mxu0 0.0
    %3352 = vmatpush1.msra.mxu0 0.0
    %3353 = vmatprep.subr.mxu0 0.0
    %3354 = vmatpush1.msra.mxu0 0.0
    %3355 = vmatprep.subr.mxu0 0.0
    %3356 = vmatpush1.msra.mxu0 0.0
    %3357 = vmatprep.subr.mxu0 0.0
    %3358 = vmatpush1.msra.mxu0 0.0
    %3359 = vmatprep.subr.mxu0 0.0
    %3360 = vmatpush1.msra.mxu0 0.0
    %3361 = vmatprep.subr.mxu0 0.0
    %3362 = vmatpush1.msra.mxu0 0.0
    %3363 = vmatprep.subr.mxu0 0.0
    %3364 = vmatpush1.msra.mxu0 0.0
    %3365 = vmatprep.subr.mxu0 0.0
    %3366 = vmatpush1.msra.mxu0 0.0
    %3367 = vmatprep.subr.mxu0 0.0
    %3368 = vmatpush1.msra.mxu0 0.0
    %3369 = vmatprep.subr.mxu0 0.0
    %3370 = vmatpush1.msra.mxu0 0.0
    %3371 = vmatprep.subr.mxu0 0.0
    %3372 = vmatpush1.msra.mxu0 0.0
    %3373 = vmatprep.subr.mxu0 0.0
    %3374 = vmatpush1.msra.mxu0 0.0
    %3375 = vmatprep.subr.mxu0 0.0
    %3376 = vmatpush1.msra.mxu0 0.0
    %3377 = vmatprep.subr.mxu0 0.0
    %3378 = vmatpush1.msra.mxu0 0.0
    %3379 = vmatprep.subr.mxu0 0.0
    %3380 = vmatpush1.msra.mxu0 0.0
    %3381 = vmatprep.subr.mxu0 0.0
    %3382 = vmatpush1.msra.mxu0 0.0
    %3383 = vmatprep.subr.mxu0 0.0
    %3384 = vmatpush1.msra.mxu0 0.0
    %3385 = vmatprep.subr.mxu0 0.0
    %3386 = vmatpush1.msra.mxu0 0.0
    %3387 = vmatprep.subr.mxu0 0.0
    %3388 = vmatpush1.msra.mxu0 0.0
    %3389 = vmatprep.subr.mxu0 0.0
    %3390 = vmatpush1.msra.mxu0 0.0
    %3391 = vmatprep.subr.mxu0 0.0
    %3392 = vmatpush1.msra.mxu0 0.0
    %3393 = vmatprep.subr.mxu0 0.0
    %3394 = vmatpush1.msra.mxu0 0.0
    %3395 = vmatprep.subr.mxu0 0.0
    %3396 = vmatpush1.msra.mxu0 0.0
    %3397 = vmatprep.subr.mxu0 0.0
    %3398 = vmatpush1.msra.mxu0 0.0
    %3399 = vmatprep.subr.mxu0 0.0
    %3400 = vmatpush1.msra.mxu0 0.0
    %3401 = vmatprep.subr.mxu0 0.0
    %3402 = vmatpush1.msra.mxu0 0.0
    %3403 = vmatprep.subr.mxu0 0.0
    %3404 = vmatpush1.msra.mxu0 0.0
    %3405 = vmatprep.subr.mxu0 0.0
    %3406 = vmatpush1.msra.mxu0 0.0
    %3407 = vmatprep.subr.mxu0 0.0
    %3408 = vmatpush1.msra.mxu0 0.0
    %3409 = vmatprep.subr.mxu0 0.0
    %3410 = vmatpush1.msra.mxu0 0.0
    %3411 = vmatprep.mubr.f32.mxu0 0.0
    %3412 = vmatmul.mubr.f32.gmra.mrb[0].mxu0 %v3345
    %v3413 = vpop.f32.mrb[0].mxu0
    %v3414 = vadd.f32 %v228, %v3413
    %v3415 = vpop.f32.mrb[0].mxu0
    %3416 = vdwg.mxu0
    %v3417 = vadd.f32 %v3342, %v3414
    %v3418 = vxor.u32 %v3417, 2147483648
    %v3419 = vmul.f32 %v3418, 1.442695
    %v3420 = vpow.pop %v3419
    %v3421 = vadd.f32 %v3420, 1.0
    %v3422 = vrcp.pop %v3421
    %v3423 = vmul.f32 1.0, %v3422
    %3425 = vrot.lane.b32.xlu0 %v3414, 112
    %v3426 = vpop.permute.xlu0 %3425
    %v3428 = vmul.f32 %v3423, %v3426
    %3430 = vrot.lane.b32.xlu0 %v3428, 16
    %v3431 = vpop.permute.xlu0 %3430
    %v3433 = vadd.f32 %v3342, %v3431
    %v3434 = vtanh.pop %v3433
    %v3435 = vsub.f32 1.0, %v3423
    %3437 = vrot.lane.b32.xlu0 %v3434, 120
    %v3438 = vpop.permute.xlu0 %3437
    %v3440 = vmul.f32 %v3435, %v3438
    %v3441 = vmul.f32 %v3423, %v2927
    %v3442 = vadd.f32 %v3440, %v3441
    %v3443 = vld [vmem:[%s603] sm:$0xf]
    %vm3444 = vcmp.ge.s32.totalorder %v3443, 32
    %v3445 = vsel %vm3444, 1, %v3443
    %3446 = vset.pattern.permute.xlu0 0
    %3447 = vperm.xlu0 %3446, %v3445
    %v3448 = vpop.permute.xlu0 %3447
    %vm3449 = vcmp.eq.s32.totalorder %v50, %v3448
    %v3450 = vsel %vm3449, 1, 0
    %v3451 = vcvt.s32.f32 %v3450
    %v3453 = vsel %vm70, %v3451, 0
    %3455 = vmatprep.subr.mxu0 0.0
    %3456 = vmatpush1.msra.mxu0 %v45
    %3457 = vmatprep.subr.mxu0 0.0
    %3458 = vmatpush1.msra.mxu0 %v46
    %3459 = vmatprep.subr.mxu0 0.0
    %3460 = vmatpush1.msra.mxu0 %v47
    %3461 = vmatprep.subr.mxu0 0.0
    %3462 = vmatpush1.msra.mxu0 %v48
    %3463 = vmatprep.subr.mxu0 0.0
    %3464 = vmatpush1.msra.mxu0 0.0
    %3465 = vmatprep.subr.mxu0 0.0
    %3466 = vmatpush1.msra.mxu0 0.0
    %3467 = vmatprep.subr.mxu0 0.0
    %3468 = vmatpush1.msra.mxu0 0.0
    %3469 = vmatprep.subr.mxu0 0.0
    %3470 = vmatpush1.msra.mxu0 0.0
    %3471 = vmatprep.subr.mxu0 0.0
    %3472 = vmatpush1.msra.mxu0 0.0
    %3473 = vmatprep.subr.mxu0 0.0
    %3474 = vmatpush1.msra.mxu0 0.0
    %3475 = vmatprep.subr.mxu0 0.0
    %3476 = vmatpush1.msra.mxu0 0.0
    %3477 = vmatprep.subr.mxu0 0.0
    %3478 = vmatpush1.msra.mxu0 0.0
    %3479 = vmatprep.subr.mxu0 0.0
    %3480 = vmatpush1.msra.mxu0 0.0
    %3481 = vmatprep.subr.mxu0 0.0
    %3482 = vmatpush1.msra.mxu0 0.0
    %3483 = vmatprep.subr.mxu0 0.0
    %3484 = vmatpush1.msra.mxu0 0.0
    %3485 = vmatprep.subr.mxu0 0.0
    %3486 = vmatpush1.msra.mxu0 0.0
    %3487 = vmatprep.subr.mxu0 0.0
    %3488 = vmatpush1.msra.mxu0 0.0
    %3489 = vmatprep.subr.mxu0 0.0
    %3490 = vmatpush1.msra.mxu0 0.0
    %3491 = vmatprep.subr.mxu0 0.0
    %3492 = vmatpush1.msra.mxu0 0.0
    %3493 = vmatprep.subr.mxu0 0.0
    %3494 = vmatpush1.msra.mxu0 0.0
    %3495 = vmatprep.subr.mxu0 0.0
    %3496 = vmatpush1.msra.mxu0 0.0
    %3497 = vmatprep.subr.mxu0 0.0
    %3498 = vmatpush1.msra.mxu0 0.0
    %3499 = vmatprep.subr.mxu0 0.0
    %3500 = vmatpush1.msra.mxu0 0.0
    %3501 = vmatprep.subr.mxu0 0.0
    %3502 = vmatpush1.msra.mxu0 0.0
    %3503 = vmatprep.subr.mxu0 0.0
    %3504 = vmatpush1.msra.mxu0 0.0
    %3505 = vmatprep.subr.mxu0 0.0
    %3506 = vmatpush1.msra.mxu0 0.0
    %3507 = vmatprep.subr.mxu0 0.0
    %3508 = vmatpush1.msra.mxu0 0.0
    %3509 = vmatprep.subr.mxu0 0.0
    %3510 = vmatpush1.msra.mxu0 0.0
    %3511 = vmatprep.subr.mxu0 0.0
    %3512 = vmatpush1.msra.mxu0 0.0
    %3513 = vmatprep.subr.mxu0 0.0
    %3514 = vmatpush1.msra.mxu0 0.0
    %3515 = vmatprep.subr.mxu0 0.0
    %3516 = vmatpush1.msra.mxu0 0.0
    %3517 = vmatprep.subr.mxu0 0.0
    %3518 = vmatpush1.msra.mxu0 0.0
    %3519 = vmatprep.mubr.f32.mxu0 0.0
    %3520 = vmatmul.mubr.f32.gmra.mrb[0].mxu0 %v3453
    %v3521 = vpop.f32.mrb[0].mxu0
    %v3522 = vadd.f32 0.0, %v3521
    %v3523 = vpop.f32.mrb[0].mxu0
    %3524 = vdwg.mxu0
    %v3526 = vsel %vm150, %v3522, 0
    %3528 = vmatprep.subr.mxu0 0.0
    %3529 = vmatpush1.msra.mxu0 %v56
    %3530 = vmatprep.subr.mxu0 0.0
    %3531 = vmatpush1.msra.mxu0 %v57
    %3532 = vmatprep.subr.mxu0 0.0
    %3533 = vmatpush1.msra.mxu0 0.0
    %3534 = vmatprep.subr.mxu0 0.0
    %3535 = vmatpush1.msra.mxu0 0.0
    %3536 = vmatprep.subr.mxu0 0.0
    %3537 = vmatpush1.msra.mxu0 0.0
    %3538 = vmatprep.subr.mxu0 0.0
    %3539 = vmatpush1.msra.mxu0 0.0
    %3540 = vmatprep.subr.mxu0 0.0
    %3541 = vmatpush1.msra.mxu0 0.0
    %3542 = vmatprep.subr.mxu0 0.0
    %3543 = vmatpush1.msra.mxu0 0.0
    %3544 = vmatprep.subr.mxu0 0.0
    %3545 = vmatpush1.msra.mxu0 0.0
    %3546 = vmatprep.subr.mxu0 0.0
    %3547 = vmatpush1.msra.mxu0 0.0
    %3548 = vmatprep.subr.mxu0 0.0
    %3549 = vmatpush1.msra.mxu0 0.0
    %3550 = vmatprep.subr.mxu0 0.0
    %3551 = vmatpush1.msra.mxu0 0.0
    %3552 = vmatprep.subr.mxu0 0.0
    %3553 = vmatpush1.msra.mxu0 0.0
    %3554 = vmatprep.subr.mxu0 0.0
    %3555 = vmatpush1.msra.mxu0 0.0
    %3556 = vmatprep.subr.mxu0 0.0
    %3557 = vmatpush1.msra.mxu0 0.0
    %3558 = vmatprep.subr.mxu0 0.0
    %3559 = vmatpush1.msra.mxu0 0.0
    %3560 = vmatprep.subr.mxu0 0.0
    %3561 = vmatpush1.msra.mxu0 0.0
    %3562 = vmatprep.subr.mxu0 0.0
    %3563 = vmatpush1.msra.mxu0 0.0
    %3564 = vmatprep.subr.mxu0 0.0
    %3565 = vmatpush1.msra.mxu0 0.0
    %3566 = vmatprep.subr.mxu0 0.0
    %3567 = vmatpush1.msra.mxu0 0.0
    %3568 = vmatprep.subr.mxu0 0.0
    %3569 = vmatpush1.msra.mxu0 0.0
    %3570 = vmatprep.subr.mxu0 0.0
    %3571 = vmatpush1.msra.mxu0 0.0
    %3572 = vmatprep.subr.mxu0 0.0
    %3573 = vmatpush1.msra.mxu0 0.0
    %3574 = vmatprep.subr.mxu0 0.0
    %3575 = vmatpush1.msra.mxu0 0.0
    %3576 = vmatprep.subr.mxu0 0.0
    %3577 = vmatpush1.msra.mxu0 0.0
    %3578 = vmatprep.subr.mxu0 0.0
    %3579 = vmatpush1.msra.mxu0 0.0
    %3580 = vmatprep.subr.mxu0 0.0
    %3581 = vmatpush1.msra.mxu0 0.0
    %3582 = vmatprep.subr.mxu0 0.0
    %3583 = vmatpush1.msra.mxu0 0.0
    %3584 = vmatprep.subr.mxu0 0.0
    %3585 = vmatpush1.msra.mxu0 0.0
    %3586 = vmatprep.subr.mxu0 0.0
    %3587 = vmatpush1.msra.mxu0 0.0
    %3588 = vmatprep.subr.mxu0 0.0
    %3589 = vmatpush1.msra.mxu0 0.0
    %3590 = vmatprep.subr.mxu0 0.0
    %3591 = vmatpush1.msra.mxu0 0.0
    %3592 = vmatprep.mubr.f32.mxu0 0.0
    %3593 = vmatmul.mubr.f32.gmra.mrb[0].mxu0 %v3526
    %v3594 = vpop.f32.mrb[0].mxu0
    %v3595 = vadd.f32 %v417, %v3594
    %v3596 = vpop.f32.mrb[0].mxu0
    %3597 = vdwg.mxu0
    %3599 = vrot.lane.b32.xlu0 %v3183, 120
    %v3600 = vpop.permute.xlu0 %3599
    %v3601 = vsel %vm230, %v3600, 0
    %3603 = vmatprep.subr.mxu0 0.0
    %3604 = vmatpush1.msra.mxu0 %v58
    %3605 = vmatprep.subr.mxu0 0.0
    %3606 = vmatpush1.msra.mxu0 0.0
    %3607 = vmatprep.subr.mxu0 0.0
    %3608 = vmatpush1.msra.mxu0 0.0
    %3609 = vmatprep.subr.mxu0 0.0
    %3610 = vmatpush1.msra.mxu0 0.0
    %3611 = vmatprep.subr.mxu0 0.0
    %3612 = vmatpush1.msra.mxu0 0.0
    %3613 = vmatprep.subr.mxu0 0.0
    %3614 = vmatpush1.msra.mxu0 0.0
    %3615 = vmatprep.subr.mxu0 0.0
    %3616 = vmatpush1.msra.mxu0 0.0
    %3617 = vmatprep.subr.mxu0 0.0
    %3618 = vmatpush1.msra.mxu0 0.0
    %3619 = vmatprep.subr.mxu0 0.0
    %3620 = vmatpush1.msra.mxu0 0.0
    %3621 = vmatprep.subr.mxu0 0.0
    %3622 = vmatpush1.msra.mxu0 0.0
    %3623 = vmatprep.subr.mxu0 0.0
    %3624 = vmatpush1.msra.mxu0 0.0
    %3625 = vmatprep.subr.mxu0 0.0
    %3626 = vmatpush1.msra.mxu0 0.0
    %3627 = vmatprep.subr.mxu0 0.0
    %3628 = vmatpush1.msra.mxu0 0.0
    %3629 = vmatprep.subr.mxu0 0.0
    %3630 = vmatpush1.msra.mxu0 0.0
    %3631 = vmatprep.subr.mxu0 0.0
    %3632 = vmatpush1.msra.mxu0 0.0
    %3633 = vmatprep.subr.mxu0 0.0
    %3634 = vmatpush1.msra.mxu0 0.0
    %3635 = vmatprep.subr.mxu0 0.0
    %3636 = vmatpush1.msra.mxu0 0.0
    %3637 = vmatprep.subr.mxu0 0.0
    %3638 = vmatpush1.msra.mxu0 0.0
    %3639 = vmatprep.subr.mxu0 0.0
    %3640 = vmatpush1.msra.mxu0 0.0
    %3641 = vmatprep.subr.mxu0 0.0
    %3642 = vmatpush1.msra.mxu0 0.0
    %3643 = vmatprep.subr.mxu0 0.0
    %3644 = vmatpush1.msra.mxu0 0.0
    %3645 = vmatprep.subr.mxu0 0.0
    %3646 = vmatpush1.msra.mxu0 0.0
    %3647 = vmatprep.subr.mxu0 0.0
    %3648 = vmatpush1.msra.mxu0 0.0
    %3649 = vmatprep.subr.mxu0 0.0
    %3650 = vmatpush1.msra.mxu0 0.0
    %3651 = vmatprep.subr.mxu0 0.0
    %3652 = vmatpush1.msra.mxu0 0.0
    %3653 = vmatprep.subr.mxu0 0.0
    %3654 = vmatpush1.msra.mxu0 0.0
    %3655 = vmatprep.subr.mxu0 0.0
    %3656 = vmatpush1.msra.mxu0 0.0
    %3657 = vmatprep.subr.mxu0 0.0
    %3658 = vmatpush1.msra.mxu0 0.0
    %3659 = vmatprep.subr.mxu0 0.0
    %3660 = vmatpush1.msra.mxu0 0.0
    %3661 = vmatprep.subr.mxu0 0.0
    %3662 = vmatpush1.msra.mxu0 0.0
    %3663 = vmatprep.subr.mxu0 0.0
    %3664 = vmatpush1.msra.mxu0 0.0
    %3665 = vmatprep.subr.mxu0 0.0
    %3666 = vmatpush1.msra.mxu0 0.0
    %3667 = vmatprep.mubr.f32.mxu0 0.0
    %3668 = vmatmul.mubr.f32.gmra.mrb[0].mxu0 %v3601
    %v3669 = vpop.f32.mrb[0].mxu0
    %v3670 = vadd.f32 %v496, %v3669
    %v3671 = vpop.f32.mrb[0].mxu0
    %3672 = vdwg.mxu0
    %v3673 = vadd.f32 %v3595, %v3670
    %v3674 = vxor.u32 %v3673, 2147483648
    %v3675 = vmul.f32 %v3674, 1.442695
    %v3676 = vpow.pop %v3675
    %v3677 = vadd.f32 %v3676, 1.0
    %v3678 = vrcp.pop %v3677
    %v3679 = vmul.f32 1.0, %v3678
    %3681 = vrot.lane.b32.xlu0 %v3670, 112
    %v3682 = vpop.permute.xlu0 %3681
    %v3684 = vmul.f32 %v3679, %v3682
    %3686 = vrot.lane.b32.xlu0 %v3684, 16
    %v3687 = vpop.permute.xlu0 %3686
    %v3689 = vadd.f32 %v3595, %v3687
    %v3690 = vtanh.pop %v3689
    %v3691 = vsub.f32 1.0, %v3679
    %3693 = vrot.lane.b32.xlu0 %v3690, 120
    %v3694 = vpop.permute.xlu0 %3693
    %v3696 = vmul.f32 %v3691, %v3694
    %v3697 = vmul.f32 %v3679, %v3183
    %v3698 = vadd.f32 %v3696, %v3697
    %3700 = vrot.lane.b32.xlu0 %v3442, 120
    %v3701 = vpop.permute.xlu0 %3700
    %3703 = vst.msk [vmem:[%s1120] sm:$0xf] %vm598, %v3701
    %3704 = vst.msk [vmem:[%s1118] sm:$0xf] %vm601, %v3698
    %v3705 = vld [vmem:[%s330] sm:$0xf]
    %vm3706 = vcmp.ge.s32.totalorder %v3705, 32
    %v3707 = vsel %vm3706, 1, %v3705
    %3708 = vset.pattern.permute.xlu0 0
    %3709 = vperm.xlu0 %3708, %v3707
    %v3710 = vpop.permute.xlu0 %3709
    %vm3711 = vcmp.eq.s32.totalorder %v50, %v3710
    %v3712 = vsel %vm3711, 1, 0
    %v3713 = vcvt.s32.f32 %v3712
    %v3715 = vsel %vm70, %v3713, 0
    %3717 = vmatprep.subr.mxu0 0.0
    %3718 = vmatpush1.msra.mxu0 %v45
    %3719 = vmatprep.subr.mxu0 0.0
    %3720 = vmatpush1.msra.mxu0 %v46
    %3721 = vmatprep.subr.mxu0 0.0
    %3722 = vmatpush1.msra.mxu0 %v47
    %3723 = vmatprep.subr.mxu0 0.0
    %3724 = vmatpush1.msra.mxu0 %v48
    %3725 = vmatprep.subr.mxu0 0.0
    %3726 = vmatpush1.msra.mxu0 0.0
    %3727 = vmatprep.subr.mxu0 0.0
    %3728 = vmatpush1.msra.mxu0 0.0
    %3729 = vmatprep.subr.mxu0 0.0
    %3730 = vmatpush1.msra.mxu0 0.0
    %3731 = vmatprep.subr.mxu0 0.0
    %3732 = vmatpush1.msra.mxu0 0.0
    %3733 = vmatprep.subr.mxu0 0.0
    %3734 = vmatpush1.msra.mxu0 0.0
    %3735 = vmatprep.subr.mxu0 0.0
    %3736 = vmatpush1.msra.mxu0 0.0
    %3737 = vmatprep.subr.mxu0 0.0
    %3738 = vmatpush1.msra.mxu0 0.0
    %3739 = vmatprep.subr.mxu0 0.0
    %3740 = vmatpush1.msra.mxu0 0.0
    %3741 = vmatprep.subr.mxu0 0.0
    %3742 = vmatpush1.msra.mxu0 0.0
    %3743 = vmatprep.subr.mxu0 0.0
    %3744 = vmatpush1.msra.mxu0 0.0
    %3745 = vmatprep.subr.mxu0 0.0
    %3746 = vmatpush1.msra.mxu0 0.0
    %3747 = vmatprep.subr.mxu0 0.0
    %3748 = vmatpush1.msra.mxu0 0.0
    %3749 = vmatprep.subr.mxu0 0.0
    %3750 = vmatpush1.msra.mxu0 0.0
    %3751 = vmatprep.subr.mxu0 0.0
    %3752 = vmatpush1.msra.mxu0 0.0
    %3753 = vmatprep.subr.mxu0 0.0
    %3754 = vmatpush1.msra.mxu0 0.0
    %3755 = vmatprep.subr.mxu0 0.0
    %3756 = vmatpush1.msra.mxu0 0.0
    %3757 = vmatprep.subr.mxu0 0.0
    %3758 = vmatpush1.msra.mxu0 0.0
    %3759 = vmatprep.subr.mxu0 0.0
    %3760 = vmatpush1.msra.mxu0 0.0
    %3761 = vmatprep.subr.mxu0 0.0
    %3762 = vmatpush1.msra.mxu0 0.0
    %3763 = vmatprep.subr.mxu0 0.0
    %3764 = vmatpush1.msra.mxu0 0.0
    %3765 = vmatprep.subr.mxu0 0.0
    %3766 = vmatpush1.msra.mxu0 0.0
    %3767 = vmatprep.subr.mxu0 0.0
    %3768 = vmatpush1.msra.mxu0 0.0
    %3769 = vmatprep.subr.mxu0 0.0
    %3770 = vmatpush1.msra.mxu0 0.0
    %3771 = vmatprep.subr.mxu0 0.0
    %3772 = vmatpush1.msra.mxu0 0.0
    %3773 = vmatprep.subr.mxu0 0.0
    %3774 = vmatpush1.msra.mxu0 0.0
    %3775 = vmatprep.subr.mxu0 0.0
    %3776 = vmatpush1.msra.mxu0 0.0
    %3777 = vmatprep.subr.mxu0 0.0
    %3778 = vmatpush1.msra.mxu0 0.0
    %3779 = vmatprep.subr.mxu0 0.0
    %3780 = vmatpush1.msra.mxu0 0.0
    %3781 = vmatprep.mubr.f32.mxu0 0.0
    %3782 = vmatmul.mubr.f32.gmra.mrb[0].mxu0 %v3715
    %v3783 = vpop.f32.mrb[0].mxu0
    %v3784 = vadd.f32 0.0, %v3783
    %v3785 = vpop.f32.mrb[0].mxu0
    %3786 = vdwg.mxu0
    %v3788 = vsel %vm150, %v3784, 0
    %3790 = vmatprep.subr.mxu0 0.0
    %3791 = vmatpush1.msra.mxu0 %v51
    %3792 = vmatprep.subr.mxu0 0.0
    %3793 = vmatpush1.msra.mxu0 %v52
    %3794 = vmatprep.subr.mxu0 0.0
    %3795 = vmatpush1.msra.mxu0 0.0
    %3796 = vmatprep.subr.mxu0 0.0
    %3797 = vmatpush1.msra.mxu0 0.0
    %3798 = vmatprep.subr.mxu0 0.0
    %3799 = vmatpush1.msra.mxu0 0.0
    %3800 = vmatprep.subr.mxu0 0.0
    %3801 = vmatpush1.msra.mxu0 0.0
    %3802 = vmatprep.subr.mxu0 0.0
    %3803 = vmatpush1.msra.mxu0 0.0
    %3804 = vmatprep.subr.mxu0 0.0
    %3805 = vmatpush1.msra.mxu0 0.0
    %3806 = vmatprep.subr.mxu0 0.0
    %3807 = vmatpush1.msra.mxu0 0.0
    %3808 = vmatprep.subr.mxu0 0.0
    %3809 = vmatpush1.msra.mxu0 0.0
    %3810 = vmatprep.subr.mxu0 0.0
    %3811 = vmatpush1.msra.mxu0 0.0
    %3812 = vmatprep.subr.mxu0 0.0
    %3813 = vmatpush1.msra.mxu0 0.0
    %3814 = vmatprep.subr.mxu0 0.0
    %3815 = vmatpush1.msra.mxu0 0.0
    %3816 = vmatprep.subr.mxu0 0.0
    %3817 = vmatpush1.msra.mxu0 0.0
    %3818 = vmatprep.subr.mxu0 0.0
    %3819 = vmatpush1.msra.mxu0 0.0
    %3820 = vmatprep.subr.mxu0 0.0
    %3821 = vmatpush1.msra.mxu0 0.0
    %3822 = vmatprep.subr.mxu0 0.0
    %3823 = vmatpush1.msra.mxu0 0.0
    %3824 = vmatprep.subr.mxu0 0.0
    %3825 = vmatpush1.msra.mxu0 0.0
    %3826 = vmatprep.subr.mxu0 0.0
    %3827 = vmatpush1.msra.mxu0 0.0
    %3828 = vmatprep.subr.mxu0 0.0
    %3829 = vmatpush1.msra.mxu0 0.0
    %3830 = vmatprep.subr.mxu0 0.0
    %3831 = vmatpush1.msra.mxu0 0.0
    %3832 = vmatprep.subr.mxu0 0.0
    %3833 = vmatpush1.msra.mxu0 0.0
    %3834 = vmatprep.subr.mxu0 0.0
    %3835 = vmatpush1.msra.mxu0 0.0
    %3836 = vmatprep.subr.mxu0 0.0
    %3837 = vmatpush1.msra.mxu0 0.0
    %3838 = vmatprep.subr.mxu0 0.0
    %3839 = vmatpush1.msra.mxu0 0.0
    %3840 = vmatprep.subr.mxu0 0.0
    %3841 = vmatpush1.msra.mxu0 0.0
    %3842 = vmatprep.subr.mxu0 0.0
    %3843 = vmatpush1.msra.mxu0 0.0
    %3844 = vmatprep.subr.mxu0 0.0
    %3845 = vmatpush1.msra.mxu0 0.0
    %3846 = vmatprep.subr.mxu0 0.0
    %3847 = vmatpush1.msra.mxu0 0.0
    %3848 = vmatprep.subr.mxu0 0.0
    %3849 = vmatpush1.msra.mxu0 0.0
    %3850 = vmatprep.subr.mxu0 0.0
    %3851 = vmatpush1.msra.mxu0 0.0
    %3852 = vmatprep.subr.mxu0 0.0
    %3853 = vmatpush1.msra.mxu0 0.0
    %3854 = vmatprep.mubr.f32.mxu0 0.0
    %3855 = vmatmul.mubr.f32.gmra.mrb[0].mxu0 %v3788
    %v3856 = vpop.f32.mrb[0].mxu0
    %v3857 = vadd.f32 %v148, %v3856
    %v3858 = vpop.f32.mrb[0].mxu0
    %3859 = vdwg.mxu0
    %v3860 = vsel %vm230, %v3701, 0
    %3862 = vmatprep.subr.mxu0 0.0
    %3863 = vmatpush1.msra.mxu0 %v53
    %3864 = vmatprep.subr.mxu0 0.0
    %3865 = vmatpush1.msra.mxu0 0.0
    %3866 = vmatprep.subr.mxu0 0.0
    %3867 = vmatpush1.msra.mxu0 0.0
    %3868 = vmatprep.subr.mxu0 0.0
    %3869 = vmatpush1.msra.mxu0 0.0
    %3870 = vmatprep.subr.mxu0 0.0
    %3871 = vmatpush1.msra.mxu0 0.0
    %3872 = vmatprep.subr.mxu0 0.0
    %3873 = vmatpush1.msra.mxu0 0.0
    %3874 = vmatprep.subr.mxu0 0.0
    %3875 = vmatpush1.msra.mxu0 0.0
    %3876 = vmatprep.subr.mxu0 0.0
    %3877 = vmatpush1.msra.mxu0 0.0
    %3878 = vmatprep.subr.mxu0 0.0
    %3879 = vmatpush1.msra.mxu0 0.0
    %3880 = vmatprep.subr.mxu0 0.0
    %3881 = vmatpush1.msra.mxu0 0.0
    %3882 = vmatprep.subr.mxu0 0.0
    %3883 = vmatpush1.msra.mxu0 0.0
    %3884 = vmatprep.subr.mxu0 0.0
    %3885 = vmatpush1.msra.mxu0 0.0
    %3886 = vmatprep.subr.mxu0 0.0
    %3887 = vmatpush1.msra.mxu0 0.0
    %3888 = vmatprep.subr.mxu0 0.0
    %3889 = vmatpush1.msra.mxu0 0.0
    %3890 = vmatprep.subr.mxu0 0.0
    %3891 = vmatpush1.msra.mxu0 0.0
    %3892 = vmatprep.subr.mxu0 0.0
    %3893 = vmatpush1.msra.mxu0 0.0
    %3894 = vmatprep.subr.mxu0 0.0
    %3895 = vmatpush1.msra.mxu0 0.0
    %3896 = vmatprep.subr.mxu0 0.0
    %3897 = vmatpush1.msra.mxu0 0.0
    %3898 = vmatprep.subr.mxu0 0.0
    %3899 = vmatpush1.msra.mxu0 0.0
    %3900 = vmatprep.subr.mxu0 0.0
    %3901 = vmatpush1.msra.mxu0 0.0
    %3902 = vmatprep.subr.mxu0 0.0
    %3903 = vmatpush1.msra.mxu0 0.0
    %3904 = vmatprep.subr.mxu0 0.0
    %3905 = vmatpush1.msra.mxu0 0.0
    %3906 = vmatprep.subr.mxu0 0.0
    %3907 = vmatpush1.msra.mxu0 0.0
    %3908 = vmatprep.subr.mxu0 0.0
    %3909 = vmatpush1.msra.mxu0 0.0
    %3910 = vmatprep.subr.mxu0 0.0
    %3911 = vmatpush1.msra.mxu0 0.0
    %3912 = vmatprep.subr.mxu0 0.0
    %3913 = vmatpush1.msra.mxu0 0.0
    %3914 = vmatprep.subr.mxu0 0.0
    %3915 = vmatpush1.msra.mxu0 0.0
    %3916 = vmatprep.subr.mxu0 0.0
    %3917 = vmatpush1.msra.mxu0 0.0
    %3918 = vmatprep.subr.mxu0 0.0
    %3919 = vmatpush1.msra.mxu0 0.0
    %3920 = vmatprep.subr.mxu0 0.0
    %3921 = vmatpush1.msra.mxu0 0.0
    %3922 = vmatprep.subr.mxu0 0.0
    %3923 = vmatpush1.msra.mxu0 0.0
    %3924 = vmatprep.subr.mxu0 0.0
    %3925 = vmatpush1.msra.mxu0 0.0
    %3926 = vmatprep.mubr.f32.mxu0 0.0
    %3927 = vmatmul.mubr.f32.gmra.mrb[0].mxu0 %v3860
    %v3928 = vpop.f32.mrb[0].mxu0
    %v3929 = vadd.f32 %v228, %v3928
    %v3930 = vpop.f32.mrb[0].mxu0
    %3931 = vdwg.mxu0
    %v3932 = vadd.f32 %v3857, %v3929
    %v3933 = vxor.u32 %v3932, 2147483648
    %v3934 = vmul.f32 %v3933, 1.442695
    %v3935 = vpow.pop %v3934
    %v3936 = vadd.f32 %v3935, 1.0
    %v3937 = vrcp.pop %v3936
    %v3938 = vmul.f32 1.0, %v3937
    %3940 = vrot.lane.b32.xlu0 %v3929, 112
    %v3941 = vpop.permute.xlu0 %3940
    %v3943 = vmul.f32 %v3938, %v3941
    %3945 = vrot.lane.b32.xlu0 %v3943, 16
    %v3946 = vpop.permute.xlu0 %3945
    %v3948 = vadd.f32 %v3857, %v3946
    %v3949 = vtanh.pop %v3948
    %v3950 = vsub.f32 1.0, %v3938
    %3952 = vrot.lane.b32.xlu0 %v3949, 120
    %v3953 = vpop.permute.xlu0 %3952
    %v3955 = vmul.f32 %v3950, %v3953
    %v3956 = vmul.f32 %v3938, %v3442
    %v3957 = vadd.f32 %v3955, %v3956
    %v3958 = vld [vmem:[%s0] sm:$0xf]
    %vm3959 = vcmp.ge.s32.totalorder %v3958, 32
    %v3960 = vsel %vm3959, 1, %v3958
    %3961 = vset.pattern.permute.xlu0 0
    %3962 = vperm.xlu0 %3961, %v3960
    %v3963 = vpop.permute.xlu0 %3962
    %vm3964 = vcmp.eq.s32.totalorder %v50, %v3963
    %v3965 = vsel %vm3964, 1, 0
    %v3966 = vcvt.s32.f32 %v3965
    %v3968 = vsel %vm70, %v3966, 0
    %3970 = vmatprep.subr.mxu0 0.0
    %3971 = vmatpush1.msra.mxu0 %v45
    %3972 = vmatprep.subr.mxu0 0.0
    %3973 = vmatpush1.msra.mxu0 %v46
    %3974 = vmatprep.subr.mxu0 0.0
    %3975 = vmatpush1.msra.mxu0 %v47
    %3976 = vmatprep.subr.mxu0 0.0
    %3977 = vmatpush1.msra.mxu0 %v48
    %3978 = vmatprep.subr.mxu0 0.0
    %3979 = vmatpush1.msra.mxu0 0.0
    %3980 = vmatprep.subr.mxu0 0.0
    %3981 = vmatpush1.msra.mxu0 0.0
    %3982 = vmatprep.subr.mxu0 0.0
    %3983 = vmatpush1.msra.mxu0 0.0
    %3984 = vmatprep.subr.mxu0 0.0
    %3985 = vmatpush1.msra.mxu0 0.0
    %3986 = vmatprep.subr.mxu0 0.0
    %3987 = vmatpush1.msra.mxu0 0.0
    %3988 = vmatprep.subr.mxu0 0.0
    %3989 = vmatpush1.msra.mxu0 0.0
    %3990 = vmatprep.subr.mxu0 0.0
    %3991 = vmatpush1.msra.mxu0 0.0
    %3992 = vmatprep.subr.mxu0 0.0
    %3993 = vmatpush1.msra.mxu0 0.0
    %3994 = vmatprep.subr.mxu0 0.0
    %3995 = vmatpush1.msra.mxu0 0.0
    %3996 = vmatprep.subr.mxu0 0.0
    %3997 = vmatpush1.msra.mxu0 0.0
    %3998 = vmatprep.subr.mxu0 0.0
    %3999 = vmatpush1.msra.mxu0 0.0
    %4000 = vmatprep.subr.mxu0 0.0
    %4001 = vmatpush1.msra.mxu0 0.0
    %4002 = vmatprep.subr.mxu0 0.0
    %4003 = vmatpush1.msra.mxu0 0.0
    %4004 = vmatprep.subr.mxu0 0.0
    %4005 = vmatpush1.msra.mxu0 0.0
    %4006 = vmatprep.subr.mxu0 0.0
    %4007 = vmatpush1.msra.mxu0 0.0
    %4008 = vmatprep.subr.mxu0 0.0
    %4009 = vmatpush1.msra.mxu0 0.0
    %4010 = vmatprep.subr.mxu0 0.0
    %4011 = vmatpush1.msra.mxu0 0.0
    %4012 = vmatprep.subr.mxu0 0.0
    %4013 = vmatpush1.msra.mxu0 0.0
    %4014 = vmatprep.subr.mxu0 0.0
    %4015 = vmatpush1.msra.mxu0 0.0
    %4016 = vmatprep.subr.mxu0 0.0
    %4017 = vmatpush1.msra.mxu0 0.0
    %4018 = vmatprep.subr.mxu0 0.0
    %4019 = vmatpush1.msra.mxu0 0.0
    %4020 = vmatprep.subr.mxu0 0.0
    %4021 = vmatpush1.msra.mxu0 0.0
    %4022 = vmatprep.subr.mxu0 0.0
    %4023 = vmatpush1.msra.mxu0 0.0
    %4024 = vmatprep.subr.mxu0 0.0
    %4025 = vmatpush1.msra.mxu0 0.0
    %4026 = vmatprep.subr.mxu0 0.0
    %4027 = vmatpush1.msra.mxu0 0.0
    %4028 = vmatprep.subr.mxu0 0.0
    %4029 = vmatpush1.msra.mxu0 0.0
    %4030 = vmatprep.subr.mxu0 0.0
    %4031 = vmatpush1.msra.mxu0 0.0
    %4032 = vmatprep.subr.mxu0 0.0
    %4033 = vmatpush1.msra.mxu0 0.0
    %4034 = vmatprep.mubr.f32.mxu0 0.0
    %4035 = vmatmul.mubr.f32.gmra.mrb[0].mxu0 %v3968
    %v4036 = vpop.f32.mrb[0].mxu0
    %v4037 = vadd.f32 0.0, %v4036
    %v4038 = vpop.f32.mrb[0].mxu0
    %4039 = vdwg.mxu0
    %v4041 = vsel %vm150, %v4037, 0
    %4043 = vmatprep.subr.mxu0 0.0
    %4044 = vmatpush1.msra.mxu0 %v56
    %4045 = vmatprep.subr.mxu0 0.0
    %4046 = vmatpush1.msra.mxu0 %v57
    %4047 = vmatprep.subr.mxu0 0.0
    %4048 = vmatpush1.msra.mxu0 0.0
    %4049 = vmatprep.subr.mxu0 0.0
    %4050 = vmatpush1.msra.mxu0 0.0
    %4051 = vmatprep.subr.mxu0 0.0
    %4052 = vmatpush1.msra.mxu0 0.0
    %4053 = vmatprep.subr.mxu0 0.0
    %4054 = vmatpush1.msra.mxu0 0.0
    %4055 = vmatprep.subr.mxu0 0.0
    %4056 = vmatpush1.msra.mxu0 0.0
    %4057 = vmatprep.subr.mxu0 0.0
    %4058 = vmatpush1.msra.mxu0 0.0
    %4059 = vmatprep.subr.mxu0 0.0
    %4060 = vmatpush1.msra.mxu0 0.0
    %4061 = vmatprep.subr.mxu0 0.0
    %4062 = vmatpush1.msra.mxu0 0.0
    %4063 = vmatprep.subr.mxu0 0.0
    %4064 = vmatpush1.msra.mxu0 0.0
    %4065 = vmatprep.subr.mxu0 0.0
    %4066 = vmatpush1.msra.mxu0 0.0
    %4067 = vmatprep.subr.mxu0 0.0
    %4068 = vmatpush1.msra.mxu0 0.0
    %4069 = vmatprep.subr.mxu0 0.0
    %4070 = vmatpush1.msra.mxu0 0.0
    %4071 = vmatprep.subr.mxu0 0.0
    %4072 = vmatpush1.msra.mxu0 0.0
    %4073 = vmatprep.subr.mxu0 0.0
    %4074 = vmatpush1.msra.mxu0 0.0
    %4075 = vmatprep.subr.mxu0 0.0
    %4076 = vmatpush1.msra.mxu0 0.0
    %4077 = vmatprep.subr.mxu0 0.0
    %4078 = vmatpush1.msra.mxu0 0.0
    %4079 = vmatprep.subr.mxu0 0.0
    %4080 = vmatpush1.msra.mxu0 0.0
    %4081 = vmatprep.subr.mxu0 0.0
    %4082 = vmatpush1.msra.mxu0 0.0
    %4083 = vmatprep.subr.mxu0 0.0
    %4084 = vmatpush1.msra.mxu0 0.0
    %4085 = vmatprep.subr.mxu0 0.0
    %4086 = vmatpush1.msra.mxu0 0.0
    %4087 = vmatprep.subr.mxu0 0.0
    %4088 = vmatpush1.msra.mxu0 0.0
    %4089 = vmatprep.subr.mxu0 0.0
    %4090 = vmatpush1.msra.mxu0 0.0
    %4091 = vmatprep.subr.mxu0 0.0
    %4092 = vmatpush1.msra.mxu0 0.0
    %4093 = vmatprep.subr.mxu0 0.0
    %4094 = vmatpush1.msra.mxu0 0.0
    %4095 = vmatprep.subr.mxu0 0.0
    %4096 = vmatpush1.msra.mxu0 0.0
    %4097 = vmatprep.subr.mxu0 0.0
    %4098 = vmatpush1.msra.mxu0 0.0
    %4099 = vmatprep.subr.mxu0 0.0
    %4100 = vmatpush1.msra.mxu0 0.0
    %4101 = vmatprep.subr.mxu0 0.0
    %4102 = vmatpush1.msra.mxu0 0.0
    %4103 = vmatprep.subr.mxu0 0.0
    %4104 = vmatpush1.msra.mxu0 0.0
    %4105 = vmatprep.subr.mxu0 0.0
    %4106 = vmatpush1.msra.mxu0 0.0
    %4107 = vmatprep.mubr.f32.mxu0 0.0
    %4108 = vmatmul.mubr.f32.gmra.mrb[0].mxu0 %v4041
    %v4109 = vpop.f32.mrb[0].mxu0
    %v4110 = vadd.f32 %v417, %v4109
    %v4111 = vpop.f32.mrb[0].mxu0
    %4112 = vdwg.mxu0
    %4114 = vrot.lane.b32.xlu0 %v3698, 120
    %v4115 = vpop.permute.xlu0 %4114
    %v4116 = vsel %vm230, %v4115, 0
    %4118 = vmatprep.subr.mxu0 0.0
    %4119 = vmatpush1.msra.mxu0 %v58
    %4120 = vmatprep.subr.mxu0 0.0
    %4121 = vmatpush1.msra.mxu0 0.0
    %4122 = vmatprep.subr.mxu0 0.0
    %4123 = vmatpush1.msra.mxu0 0.0
    %4124 = vmatprep.subr.mxu0 0.0
    %4125 = vmatpush1.msra.mxu0 0.0
    %4126 = vmatprep.subr.mxu0 0.0
    %4127 = vmatpush1.msra.mxu0 0.0
    %4128 = vmatprep.subr.mxu0 0.0
    %4129 = vmatpush1.msra.mxu0 0.0
    %4130 = vmatprep.subr.mxu0 0.0
    %4131 = vmatpush1.msra.mxu0 0.0
    %4132 = vmatprep.subr.mxu0 0.0
    %4133 = vmatpush1.msra.mxu0 0.0
    %4134 = vmatprep.subr.mxu0 0.0
    %4135 = vmatpush1.msra.mxu0 0.0
    %4136 = vmatprep.subr.mxu0 0.0
    %4137 = vmatpush1.msra.mxu0 0.0
    %4138 = vmatprep.subr.mxu0 0.0
    %4139 = vmatpush1.msra.mxu0 0.0
    %4140 = vmatprep.subr.mxu0 0.0
    %4141 = vmatpush1.msra.mxu0 0.0
    %4142 = vmatprep.subr.mxu0 0.0
    %4143 = vmatpush1.msra.mxu0 0.0
    %4144 = vmatprep.subr.mxu0 0.0
    %4145 = vmatpush1.msra.mxu0 0.0
    %4146 = vmatprep.subr.mxu0 0.0
    %4147 = vmatpush1.msra.mxu0 0.0
    %4148 = vmatprep.subr.mxu0 0.0
    %4149 = vmatpush1.msra.mxu0 0.0
    %4150 = vmatprep.subr.mxu0 0.0
    %4151 = vmatpush1.msra.mxu0 0.0
    %4152 = vmatprep.subr.mxu0 0.0
    %4153 = vmatpush1.msra.mxu0 0.0
    %4154 = vmatprep.subr.mxu0 0.0
    %4155 = vmatpush1.msra.mxu0 0.0
    %4156 = vmatprep.subr.mxu0 0.0
    %4157 = vmatpush1.msra.mxu0 0.0
    %4158 = vmatprep.subr.mxu0 0.0
    %4159 = vmatpush1.msra.mxu0 0.0
    %4160 = vmatprep.subr.mxu0 0.0
    %4161 = vmatpush1.msra.mxu0 0.0
    %4162 = vmatprep.subr.mxu0 0.0
    %4163 = vmatpush1.msra.mxu0 0.0
    %4164 = vmatprep.subr.mxu0 0.0
    %4165 = vmatpush1.msra.mxu0 0.0
    %4166 = vmatprep.subr.mxu0 0.0
    %4167 = vmatpush1.msra.mxu0 0.0
    %4168 = vmatprep.subr.mxu0 0.0
    %4169 = vmatpush1.msra.mxu0 0.0
    %4170 = vmatprep.subr.mxu0 0.0
    %4171 = vmatpush1.msra.mxu0 0.0
    %4172 = vmatprep.subr.mxu0 0.0
    %4173 = vmatpush1.msra.mxu0 0.0
    %4174 = vmatprep.subr.mxu0 0.0
    %4175 = vmatpush1.msra.mxu0 0.0
    %4176 = vmatprep.subr.mxu0 0.0
    %4177 = vmatpush1.msra.mxu0 0.0
    %4178 = vmatprep.subr.mxu0 0.0
    %4179 = vmatpush1.msra.mxu0 0.0
    %4180 = vmatprep.subr.mxu0 0.0
    %4181 = vmatpush1.msra.mxu0 0.0
    %4182 = vmatprep.mubr.f32.mxu0 0.0
    %4183 = vmatmul.mubr.f32.gmra.mrb[0].mxu0 %v4116
    %v4184 = vpop.f32.mrb[0].mxu0
    %v4185 = vadd.f32 %v496, %v4184
    %v4186 = vpop.f32.mrb[0].mxu0
    %4187 = vdwg.mxu0
    %v4188 = vadd.f32 %v4110, %v4185
    %v4189 = vxor.u32 %v4188, 2147483648
    %v4190 = vmul.f32 %v4189, 1.442695
    %v4191 = vpow.pop %v4190
    %v4192 = vadd.f32 %v4191, 1.0
    %v4193 = vrcp.pop %v4192
    %v4194 = vmul.f32 1.0, %v4193
    %4196 = vrot.lane.b32.xlu0 %v4185, 112
    %v4197 = vpop.permute.xlu0 %4196
    %v4199 = vmul.f32 %v4194, %v4197
    %4201 = vrot.lane.b32.xlu0 %v4199, 16
    %v4202 = vpop.permute.xlu0 %4201
    %v4204 = vadd.f32 %v4110, %v4202
    %v4205 = vtanh.pop %v4204
    %v4206 = vsub.f32 1.0, %v4194
    %4208 = vrot.lane.b32.xlu0 %v4205, 120
    %v4209 = vpop.permute.xlu0 %4208
    %v4211 = vmul.f32 %v4206, %v4209
    %v4212 = vmul.f32 %v4194, %v3698
    %v4213 = vadd.f32 %v4211, %v4212
    %4215 = vrot.lane.b32.xlu0 %v3957, 120
    %v4216 = vpop.permute.xlu0 %4215
    %4218 = vst.msk [vmem:[%s600] sm:$0xf] %vm598, %v4216
    %4219 = vst.msk [vmem:[#allocation2] sm:$0xf] %vm601, %v4213
    %v4220 = vld [vmem:[%s10] sm:$0xff]
    %v4221 = vld [vmem:[%s10 + $0x8] sm:$0xff]
    %4223 = vrot.lane.b32.xlu0 %v4213, 120
    %v4224 = vpop.permute.xlu0 %4223
    %v4225 = vsel %vm230, %v4224, 0
    %4227 = vmatprep.subr.mxu0 0.0
    %4228 = vmatpush1.msra.mxu0 %v4221
    %4229 = vmatprep.subr.mxu0 0.0
    %4230 = vmatpush1.msra.mxu0 0.0
    %4231 = vmatprep.subr.mxu0 0.0
    %4232 = vmatpush1.msra.mxu0 0.0
    %4233 = vmatprep.subr.mxu0 0.0
    %4234 = vmatpush1.msra.mxu0 0.0
    %4235 = vmatprep.subr.mxu0 0.0
    %4236 = vmatpush1.msra.mxu0 0.0
    %4237 = vmatprep.subr.mxu0 0.0
    %4238 = vmatpush1.msra.mxu0 0.0
    %4239 = vmatprep.subr.mxu0 0.0
    %4240 = vmatpush1.msra.mxu0 0.0
    %4241 = vmatprep.subr.mxu0 0.0
    %4242 = vmatpush1.msra.mxu0 0.0
    %4243 = vmatprep.subr.mxu0 0.0
    %4244 = vmatpush1.msra.mxu0 0.0
    %4245 = vmatprep.subr.mxu0 0.0
    %4246 = vmatpush1.msra.mxu0 0.0
    %4247 = vmatprep.subr.mxu0 0.0
    %4248 = vmatpush1.msra.mxu0 0.0
    %4249 = vmatprep.subr.mxu0 0.0
    %4250 = vmatpush1.msra.mxu0 0.0
    %4251 = vmatprep.subr.mxu0 0.0
    %4252 = vmatpush1.msra.mxu0 0.0
    %4253 = vmatprep.subr.mxu0 0.0
    %4254 = vmatpush1.msra.mxu0 0.0
    %4255 = vmatprep.subr.mxu0 0.0
    %4256 = vmatpush1.msra.mxu0 0.0
    %4257 = vmatprep.subr.mxu0 0.0
    %4258 = vmatpush1.msra.mxu0 0.0
    %4259 = vmatprep.subr.mxu0 0.0
    %4260 = vmatpush1.msra.mxu0 0.0
    %4261 = vmatprep.subr.mxu0 0.0
    %4262 = vmatpush1.msra.mxu0 0.0
    %4263 = vmatprep.subr.mxu0 0.0
    %4264 = vmatpush1.msra.mxu0 0.0
    %4265 = vmatprep.subr.mxu0 0.0
    %4266 = vmatpush1.msra.mxu0 0.0
    %4267 = vmatprep.subr.mxu0 0.0
    %4268 = vmatpush1.msra.mxu0 0.0
    %4269 = vmatprep.subr.mxu0 0.0
    %4270 = vmatpush1.msra.mxu0 0.0
    %4271 = vmatprep.subr.mxu0 0.0
    %4272 = vmatpush1.msra.mxu0 0.0
    %4273 = vmatprep.subr.mxu0 0.0
    %4274 = vmatpush1.msra.mxu0 0.0
    %4275 = vmatprep.subr.mxu0 0.0
    %4276 = vmatpush1.msra.mxu0 0.0
    %4277 = vmatprep.subr.mxu0 0.0
    %4278 = vmatpush1.msra.mxu0 0.0
    %4279 = vmatprep.subr.mxu0 0.0
    %4280 = vmatpush1.msra.mxu0 0.0
    %4281 = vmatprep.subr.mxu0 0.0
    %4282 = vmatpush1.msra.mxu0 0.0
    %4283 = vmatprep.subr.mxu0 0.0
    %4284 = vmatpush1.msra.mxu0 0.0
    %4285 = vmatprep.subr.mxu0 0.0
    %4286 = vmatpush1.msra.mxu0 0.0
    %4287 = vmatprep.subr.mxu0 0.0
    %4288 = vmatpush1.msra.mxu0 0.0
    %4289 = vmatprep.subr.mxu0 0.0
    %4290 = vmatpush1.msra.mxu0 0.0
    %4291 = vmatprep.mubr.f32.mxu0 0.0
    %4292 = vmatmul.mubr.f32.gmra.mrb[0].mxu0 %v4225
    %v4293 = vpop.f32.mrb[0].mxu0
    %v4294 = vadd.f32 0.0, %v4293
    %v4295 = vpop.f32.mrb[0].mxu0
    %4296 = vdwg.mxu0
    %v4297 = vsel %vm230, %v4216, 0
    %4299 = vmatprep.subr.mxu0 0.0
    %4300 = vmatpush1.msra.mxu0 %v4220
    %4301 = vmatprep.subr.mxu0 0.0
    %4302 = vmatpush1.msra.mxu0 0.0
    %4303 = vmatprep.subr.mxu0 0.0
    %4304 = vmatpush1.msra.mxu0 0.0
    %4305 = vmatprep.subr.mxu0 0.0
    %4306 = vmatpush1.msra.mxu0 0.0
    %4307 = vmatprep.subr.mxu0 0.0
    %4308 = vmatpush1.msra.mxu0 0.0
    %4309 = vmatprep.subr.mxu0 0.0
    %4310 = vmatpush1.msra.mxu0 0.0
    %4311 = vmatprep.subr.mxu0 0.0
    %4312 = vmatpush1.msra.mxu0 0.0
    %4313 = vmatprep.subr.mxu0 0.0
    %4314 = vmatpush1.msra.mxu0 0.0
    %4315 = vmatprep.subr.mxu0 0.0
    %4316 = vmatpush1.msra.mxu0 0.0
    %4317 = vmatprep.subr.mxu0 0.0
    %4318 = vmatpush1.msra.mxu0 0.0
    %4319 = vmatprep.subr.mxu0 0.0
    %4320 = vmatpush1.msra.mxu0 0.0
    %4321 = vmatprep.subr.mxu0 0.0
    %4322 = vmatpush1.msra.mxu0 0.0
    %4323 = vmatprep.subr.mxu0 0.0
    %4324 = vmatpush1.msra.mxu0 0.0
    %4325 = vmatprep.subr.mxu0 0.0
    %4326 = vmatpush1.msra.mxu0 0.0
    %4327 = vmatprep.subr.mxu0 0.0
    %4328 = vmatpush1.msra.mxu0 0.0
    %4329 = vmatprep.subr.mxu0 0.0
    %4330 = vmatpush1.msra.mxu0 0.0
    %4331 = vmatprep.subr.mxu0 0.0
    %4332 = vmatpush1.msra.mxu0 0.0
    %4333 = vmatprep.subr.mxu0 0.0
    %4334 = vmatpush1.msra.mxu0 0.0
    %4335 = vmatprep.subr.mxu0 0.0
    %4336 = vmatpush1.msra.mxu0 0.0
    %4337 = vmatprep.subr.mxu0 0.0
    %4338 = vmatpush1.msra.mxu0 0.0
    %4339 = vmatprep.subr.mxu0 0.0
    %4340 = vmatpush1.msra.mxu0 0.0
    %4341 = vmatprep.subr.mxu0 0.0
    %4342 = vmatpush1.msra.mxu0 0.0
    %4343 = vmatprep.subr.mxu0 0.0
    %4344 = vmatpush1.msra.mxu0 0.0
    %4345 = vmatprep.subr.mxu0 0.0
    %4346 = vmatpush1.msra.mxu0 0.0
    %4347 = vmatprep.subr.mxu0 0.0
    %4348 = vmatpush1.msra.mxu0 0.0
    %4349 = vmatprep.subr.mxu0 0.0
    %4350 = vmatpush1.msra.mxu0 0.0
    %4351 = vmatprep.subr.mxu0 0.0
    %4352 = vmatpush1.msra.mxu0 0.0
    %4353 = vmatprep.subr.mxu0 0.0
    %4354 = vmatpush1.msra.mxu0 0.0
    %4355 = vmatprep.subr.mxu0 0.0
    %4356 = vmatpush1.msra.mxu0 0.0
    %4357 = vmatprep.subr.mxu0 0.0
    %4358 = vmatpush1.msra.mxu0 0.0
    %4359 = vmatprep.subr.mxu0 0.0
    %4360 = vmatpush1.msra.mxu0 0.0
    %4361 = vmatprep.subr.mxu0 0.0
    %4362 = vmatpush1.msra.mxu0 0.0
    %4363 = vmatprep.mubr.f32.mxu0 0.0
    %4364 = vmatmul.mubr.f32.gmra.mrb[0].mxu0 %v4297
    %v4365 = vpop.f32.mrb[0].mxu0
    %v4366 = vadd.f32 %v4294, %v4365
    %v4367 = vpop.f32.mrb[0].mxu0
    %4368 = vdwg.mxu0
    %v4369 = vld [vmem:[%s11] sm:$0x1]
    %v4371 = vlaneseq
    %v4372 = vshrl.u32 %v4371, 7
    %v4373 = vsub.s32 0, %v4372
    %v4374 = vrot.slane %v4369, %v4373
    %v4376 = vadd.f32 %v4366, %v4374
    %v4377 = vtanh.pop %v4376
    %4378 = vst.msk [vmem:[#allocation4] sm:$0xf] %vm598, %v4377
    // Predicated region
    $region50: #{tpu_custom_call.1} parent=1 // pred_check
      _
    $region51: #{tpu_custom_call.1} parent=1 // pred_check_branch
      %4380 = sbr.rel (0) target = $region53
    $region52: #{tpu_custom_call.1} parent=1 // pred_region
      %s4382 = ssub.s32 512, 512
      %4383 = vsyncadd [#allocation3], %s4382
      %s4384 = sshll.u32 [#allocation2], 4
      %s4385 = int_to_ptr.vmem [resolvable:$true] %s4384
      %4390 = dma.vmem_to_hbm [thread:$0]  %s4385, 512, %s12, [#allocation3], 64, 64, 4
    $region53: #{tpu_custom_call.1} parent=1 // pred_fallthru
      _
    // Predicated region
    $region54: #{tpu_custom_call.1} parent=1 // pred_check
      _
    $region55: #{tpu_custom_call.1} parent=1 // pred_check_branch
      %4392 = sbr.rel (0) target = $region57
    $region56: #{tpu_custom_call.1} parent=1 // pred_region
      %s4394 = ssub.s32 64, 64
      %4395 = vsyncadd [#allocation5], %s4394
      %s4397 = sshll.u32 [#allocation4], 4
      %s4398 = int_to_ptr.vmem [resolvable:$true] %s4397
      %4400 = dma.vmem_to_hbm [thread:$0]  %s4398, 64, %s13, [#allocation5]
    $region57: #{tpu_custom_call.1} parent=1 // pred_fallthru
      _
    // Predicated region
    $region58: #{tpu_custom_call.1} parent=1 // pred_check
      _
    $region59: #{tpu_custom_call.1} parent=1 // pred_check_branch
      %4402 = sbr.rel (0) target = $region61
    $region60: #{tpu_custom_call.1} parent=1 // pred_region
      %4403 = dma.done [#allocation3], 512
    $region61: #{tpu_custom_call.1} parent=1 // pred_fallthru
      _
    // Predicated region
    $region62: #{tpu_custom_call.1} parent=1 // pred_check
      _
    $region63: #{tpu_custom_call.1} parent=1 // pred_check_branch
      %4405 = sbr.rel (0) target = $region65
    $region64: #{tpu_custom_call.1} parent=1 // pred_region
      %4406 = dma.done [#allocation5], 64
    $region65: #{tpu_custom_call.1} parent=1 // pred_fallthru
      _
    %4407 = vsyncpa [#allocation3], 1
    %4408 = vsyncpa [#allocation5], 1

</llo_original>
